<compile_context>
chip_gen: v7x
topology: tpu7x:2x2x1
jax: 0.10.0
libtpu: 0.0.40
codegen_flags: <defaults>
</compile_context>

<pallas_src>
from functools import partial

import numpy as np

import jax
import jax.numpy as jnp
from jax.experimental import pallas as pl
from jax.experimental.pallas import tpu as pltpu

HIDDEN_SIZE = 512
_LANES = 128  # lane-dense output padding


# ---------------------------------------------------------------------------
# Kernel bodies
# ---------------------------------------------------------------------------

def _q_net(xs, xa, w1s, w1a, w2, w3, small):
    """One Q-net on VMEM-resident values.

    xs:   (B, S)  bf16      xa:   (B, A)  bf16
    w1s:  (S, H)  bf16      w1a:  (A, H)  bf16
    w2,w3:(H, H)  bf16
    small:(5, H)  f32  rows = [b1, b2, b3, w4_row, b4(@col 0)]
    returns (B, 1) f32
    """
    b1 = small[0:1, :]
    b2 = small[1:2, :]
    b3 = small[2:3, :]
    w4 = small[3:4, :]
    b4 = small[4:5, 0:1]          # (1, 1)

    # Layer 1: fused "concat" as a split matmul (mathematically identical).
    h = (jnp.dot(xs, w1s, preferred_element_type=jnp.float32)
         + jnp.dot(xa, w1a, preferred_element_type=jnp.float32)
         + b1)
    h = jnp.maximum(h, 0.0).astype(jnp.bfloat16)

    # Layers 2-3: bf16 MXU matmuls, f32 accumulate, ReLU.
    h = jnp.dot(h, w2, preferred_element_type=jnp.float32) + b2
    h = jnp.maximum(h, 0.0).astype(jnp.bfloat16)
    h = jnp.dot(h, w3, preferred_element_type=jnp.float32) + b3
    h = jnp.maximum(h, 0.0)       # keep f32 for the VPU final layer

    # Layer 4 (512 -> 1) on VPU/XLU: mul + cross-lane reduce (MXU stays free).
    return jnp.sum(h * w4, axis=-1, keepdims=True) + b4


def _critic_fused_kernel(s_ref, a_ref, w1s_ref, w1a_ref, w2_ref, w3_ref,
                         small_ref, out_ref):
    """Single invocation (no grid): both Q-nets statically unrolled."""
    xs = s_ref[...].astype(jnp.bfloat16)
    xa = a_ref[...].astype(jnp.bfloat16)
    for n in range(2):            # static unroll over the two Q-nets
        q = _q_net(xs, xa, w1s_ref[n], w1a_ref[n], w2_ref[n], w3_ref[n],
                   small_ref[n])
        out_ref[n] = jnp.broadcast_to(q, out_ref.shape[1:])


def _critic_pernet_kernel(s_ref, a_ref, w1s_ref, w1a_ref, w2_ref, w3_ref,
                          small_ref, out_ref):
    """grid=(2,) path: one grid step == one Q-net (one TensorCore on v7x)."""
    xs = s_ref[...].astype(jnp.bfloat16)
    xa = a_ref[...].astype(jnp.bfloat16)
    q = _q_net(xs, xa, w1s_ref[0], w1a_ref[0], w2_ref[0], w3_ref[0],
               small_ref[0])
    out_ref[0] = jnp.broadcast_to(q, out_ref.shape[1:])


# ---------------------------------------------------------------------------
# Parameter init (PyTorch nn.Linear default init, weights pre-transposed)
# ---------------------------------------------------------------------------

def init_linear(key, in_f, out_f):
    """nn.Linear default init: U(-1/sqrt(in_f), 1/sqrt(in_f)).
    Weight returned pre-transposed as (in_f, out_f); bias as (1, out_f)."""
    kw, kb = jax.random.split(key)
    bound = 1.0 / np.sqrt(float(in_f))
    w = jax.random.uniform(kw, (in_f, out_f), jnp.float32, -bound, bound)
    b = jax.random.uniform(kb, (1, out_f), jnp.float32, -bound, bound)
    return w, b


def init_critic_params(key, state_size, action_size):
    """Params for both Q-nets, stacked along a leading axis of size 2.

    Returns (w1s, w1a, w2, w3, small) where
      w1s:  (2, S, H) bf16     w1a: (2, A, H) bf16
      w2 :  (2, H, H) bf16     w3 : (2, H, H) bf16
      small:(2, 5, H) f32  rows = [b1, b2, b3, w4_row, b4(@col 0)]
    """
    in_dim = state_size + action_size
    H = HIDDEN_SIZE
    w1s_l, w1a_l, w2_l, w3_l, small_l = [], [], [], [], []
    for _net in range(2):                       # q1 then q2
        key, k1, k2, k3, k4 = jax.random.split(key, 5)
        w1, b1 = init_linear(k1, in_dim, H)
        w2, b2 = init_linear(k2, H, H)
        w3, b3 = init_linear(k3, H, H)
        w4, b4 = init_linear(k4, H, 1)
        w1s_l.append(w1[:state_size])
        w1a_l.append(w1[state_size:])
        w2_l.append(w2)
        w3_l.append(w3)
        b4_row = jnp.zeros((1, H), jnp.float32).at[0, 0].set(b4[0, 0])
        small_l.append(jnp.concatenate([b1, b2, b3, w4.T, b4_row], axis=0))

    return (jnp.stack(w1s_l).astype(jnp.bfloat16),
            jnp.stack(w1a_l).astype(jnp.bfloat16),
            jnp.stack(w2_l).astype(jnp.bfloat16),
            jnp.stack(w3_l).astype(jnp.bfloat16),
            jnp.stack(small_l).astype(jnp.float32))


# ---------------------------------------------------------------------------
# Wrapper
# ---------------------------------------------------------------------------

def _detect_multi_tensorcore():
    """True on chips with >1 TensorCore per device (v4 / v5p / v7x)."""
    try:
        kind = jax.devices()[0].device_kind.lower()
    except Exception:
        return False
    single_tc_markers = ("v5e", "v5 lite", "v5litepod", "v6e", "v6 lite", "lite")
    return not any(m in kind for m in single_tc_markers)


_MULTI_TC = _detect_multi_tensorcore()


@partial(jax.jit, static_argnames=("per_net_grid",))
def _critic_forward_impl(state, action, params, *, per_net_grid):
    w1s, w1a, w2, w3, small = params
    B, S = state.shape
    A = action.shape[1]
    H = HIDDEN_SIZE
    in_dim = S + A

    out_shape = jax.ShapeDtypeStruct((2, B, _LANES), jnp.float32)
    flops = 2 * 2 * (B * in_dim * H + 2 * B * H * H + B * H)  # 2 nets, 2 flops/MAC
    bytes_accessed = (sum(int(p.size) * p.dtype.itemsize for p in params)
                      + state.size * state.dtype.itemsize
                      + action.size * action.dtype.itemsize
                      + 2 * B * _LANES * 4)
    cost = pl.CostEstimate(flops=flops, transcendentals=0,
                           bytes_accessed=bytes_accessed)

    if per_net_grid:
        # Multi-TensorCore chips: one Q-net per grid step / core.
        shared = lambda shp: pl.BlockSpec(shp, lambda n: (0,) * len(shp))
        per_net = lambda shp: pl.BlockSpec((1,) + shp,
                                           lambda n: (n,) + (0,) * len(shp))
        out = pl.pallas_call(
            _critic_pernet_kernel,
            out_shape=out_shape,
            grid=(2,),
            in_specs=[shared((B, S)),        # state
                      shared((B, A)),        # action
                      per_net((S, H)),       # w1s
                      per_net((A, H)),       # w1a
                      per_net((H, H)),       # w2
                      per_net((H, H)),       # w3
                      per_net((5, H))],      # packed small params
            out_specs=per_net((B, _LANES)),
            compiler_params=pltpu.CompilerParams(
                dimension_semantics=("parallel",)),
            cost_estimate=cost,
        )(state, action, w1s, w1a, w2, w3, small)
    else:
        # Single-TensorCore chips: one invocation, both nets unrolled in-body.
        out = pl.pallas_call(
            _critic_fused_kernel,
            out_shape=out_shape,
            cost_estimate=cost,
        )(state, action, w1s, w1a, w2, w3, small)

    # Lane-dense slab -> (B, 1) per net.
    return out[0, :, 0:1], out[1, :, 0:1]


def critic_forward(state, action, params, per_net_grid=None):
    if per_net_grid is None:
        per_net_grid = _MULTI_TC
    return _critic_forward_impl(state, action, params,
                                per_net_grid=per_net_grid)


# ---------------------------------------------------------------------------
# Plain-JAX reference (f32 math on the bf16-quantized weights)
# ---------------------------------------------------------------------------

def reference_forward(state, action, params):
    w1s, w1a, w2, w3, small = [p.astype(jnp.float32) for p in params]

    def net(n):
        b1, b2, b3, w4 = small[n, 0:1], small[n, 1:2], small[n, 2:3], small[n, 3:4]
        b4 = small[n, 4, 0]
        h = jnp.maximum(state @ w1s[n] + action @ w1a[n] + b1, 0.0)
        h = jnp.maximum(h @ w2[n] + b2, 0.0)
        h = jnp.maximum(h @ w3[n] + b3, 0.0)
        return jnp.sum(h * w4, axis=-1, keepdims=True) + b4

    return net(0), net(1)


# ---------------------------------------------------------------------------

if __name__ == "__main__":
    key = jax.random.PRNGKey(0)
    k_s, k_a, k_p = jax.random.split(key, 3)

    batch = 8
    state_size = 8
    action_size = 4

    state = jax.random.normal(k_s, (batch, state_size), jnp.float32)
    action = jax.random.normal(k_a, (batch, action_size), jnp.float32)
    params = init_critic_params(k_p, state_size, action_size)

    r1, r2 = reference_forward(state, action, params)

    # Path 1: fused single-invocation kernel (default on v5e / v6e).
    q1, q2 = critic_forward(state, action, params, per_net_grid=False)
    jax.block_until_ready((q1, q2))
    assert q1.shape == (batch, 1) and q2.shape == (batch, 1)
    # bf16 activations between layers => relaxed tolerance vs. the f32 reference.
    assert jnp.allclose(q1, r1, atol=2e-2, rtol=2e-2)
    assert jnp.allclose(q2, r2, atol=2e-2, rtol=2e-2)

    # Path 2: grid=(2,) "parallel" kernel (used on multi-TensorCore chips).
    g1, g2 = critic_forward(state, action, params, per_net_grid=True)
    jax.block_until_ready((g1, g2))
    assert g1.shape == (batch, 1) and g2.shape == (batch, 1)
    assert jnp.allclose(g1, r1, atol=2e-2, rtol=2e-2)
    assert jnp.allclose(g2, r2, atol=2e-2, rtol=2e-2)

    print("KERNEL_OK")
</pallas_src>

<mosaic_0001>
module attributes {stable_mosaic.version = 11 : i64} {
  func.func @_critic_fused_kernel(%arg0: memref<8x8xf32, #tpu.memory_space<vmem>>, %arg1: memref<8x4xf32, #tpu.memory_space<vmem>>, %arg2: memref<2x8x512xbf16, #tpu.memory_space<vmem>>, %arg3: memref<2x4x512xbf16, #tpu.memory_space<vmem>>, %arg4: memref<2x512x512xbf16, #tpu.memory_space<vmem>>, %arg5: memref<2x512x512xbf16, #tpu.memory_space<vmem>>, %arg6: memref<2x5x512xf32, #tpu.memory_space<vmem>>, %arg7: memref<2x8x128xf32, #tpu.memory_space<vmem>>) attributes {dimension_semantics = [], scalar_prefetch = 0 : i64, scratch_operands = 0 : i64, tpu.core_type = #tpu.core_type<tc>} {
    %c0 = arith.constant 0 : index
    %c0_0 = arith.constant 0 : index
    %0 = vector.load %arg0[%c0, %c0_0] : memref<8x8xf32, #tpu.memory_space<vmem>>, vector<8x8xf32>
    %1 = arith.truncf %0 : vector<8x8xf32> to vector<8x8xbf16>
    %c0_1 = arith.constant 0 : index
    %c0_2 = arith.constant 0 : index
    %2 = vector.load %arg1[%c0_1, %c0_2] : memref<8x4xf32, #tpu.memory_space<vmem>>, vector<8x4xf32>
    %3 = arith.truncf %2 : vector<8x4xf32> to vector<8x4xbf16>
    %c0_3 = arith.constant 0 : index
    %c0_4 = arith.constant 0 : index
    %c0_5 = arith.constant 0 : index
    %4 = vector.load %arg2[%c0_3, %c0_4, %c0_5] : memref<2x8x512xbf16, #tpu.memory_space<vmem>>, vector<1x8x512xbf16>
    %5 = vector.shape_cast %4 : vector<1x8x512xbf16> to vector<8x512xbf16>
    %c0_6 = arith.constant 0 : index
    %c0_7 = arith.constant 0 : index
    %c0_8 = arith.constant 0 : index
    %6 = vector.load %arg3[%c0_6, %c0_7, %c0_8] : memref<2x4x512xbf16, #tpu.memory_space<vmem>>, vector<1x4x512xbf16>
    %7 = vector.shape_cast %6 : vector<1x4x512xbf16> to vector<4x512xbf16>
    %c0_9 = arith.constant 0 : index
    %c0_10 = arith.constant 0 : index
    %c0_11 = arith.constant 0 : index
    %8 = vector.load %arg4[%c0_9, %c0_10, %c0_11] : memref<2x512x512xbf16, #tpu.memory_space<vmem>>, vector<1x512x512xbf16>
    %9 = vector.shape_cast %8 : vector<1x512x512xbf16> to vector<512x512xbf16>
    %c0_12 = arith.constant 0 : index
    %c0_13 = arith.constant 0 : index
    %c0_14 = arith.constant 0 : index
    %10 = vector.load %arg5[%c0_12, %c0_13, %c0_14] : memref<2x512x512xbf16, #tpu.memory_space<vmem>>, vector<1x512x512xbf16>
    %11 = vector.shape_cast %10 : vector<1x512x512xbf16> to vector<512x512xbf16>
    %c0_15 = arith.constant 0 : index
    %c0_16 = arith.constant 0 : index
    %c0_17 = arith.constant 0 : index
    %12 = vector.load %arg6[%c0_15, %c0_16, %c0_17] : memref<2x5x512xf32, #tpu.memory_space<vmem>>, vector<1x5x512xf32>
    %13 = vector.shape_cast %12 : vector<1x5x512xf32> to vector<5x512xf32>
    %14 = vector.extract_strided_slice %13 {offsets = [0, 0], sizes = [1, 512], strides = [1, 1]} : vector<5x512xf32> to vector<1x512xf32>
    %15 = vector.extract_strided_slice %13 {offsets = [1, 0], sizes = [1, 512], strides = [1, 1]} : vector<5x512xf32> to vector<1x512xf32>
    %16 = vector.extract_strided_slice %13 {offsets = [2, 0], sizes = [1, 512], strides = [1, 1]} : vector<5x512xf32> to vector<1x512xf32>
    %17 = vector.extract_strided_slice %13 {offsets = [3, 0], sizes = [1, 512], strides = [1, 1]} : vector<5x512xf32> to vector<1x512xf32>
    %18 = vector.extract_strided_slice %13 {offsets = [4, 0], sizes = [1, 1], strides = [1, 1]} : vector<5x512xf32> to vector<1x1xf32>
    %cst = arith.constant dense<0.000000e+00> : vector<8x512xf32>
    %19 = tpu.matmul %1, %5, %cst {dimension_numbers = #tpu.dot_dimension_numbers<[1], [0], [0], [1], [0, 0, 1, 1], [], []>} : vector<8x8xbf16>, vector<8x512xbf16>, vector<8x512xf32> -> vector<8x512xf32>
    %cst_18 = arith.constant dense<0.000000e+00> : vector<8x512xf32>
    %20 = tpu.matmul %3, %7, %cst_18 {dimension_numbers = #tpu.dot_dimension_numbers<[1], [0], [0], [1], [0, 0, 1, 1], [], []>} : vector<8x4xbf16>, vector<4x512xbf16>, vector<8x512xf32> -> vector<8x512xf32>
    %21 = arith.addf %19, %20 : vector<8x512xf32>
    %22 = vector.broadcast %14 : vector<1x512xf32> to vector<8x512xf32>
    %23 = arith.addf %21, %22 : vector<8x512xf32>
    %cst_19 = arith.constant 0.000000e+00 : f32
    %24 = vector.broadcast %cst_19 : f32 to vector<8x512xf32>
    %25 = arith.maximumf %23, %24 : vector<8x512xf32>
    %26 = arith.truncf %25 : vector<8x512xf32> to vector<8x512xbf16>
    %cst_20 = arith.constant dense<0.000000e+00> : vector<8x512xf32>
    %27 = tpu.matmul %26, %9, %cst_20 {dimension_numbers = #tpu.dot_dimension_numbers<[1], [0], [0], [1], [0, 0, 1, 1], [], []>} : vector<8x512xbf16>, vector<512x512xbf16>, vector<8x512xf32> -> vector<8x512xf32>
    %28 = vector.broadcast %15 : vector<1x512xf32> to vector<8x512xf32>
    %29 = arith.addf %27, %28 : vector<8x512xf32>
    %cst_21 = arith.constant 0.000000e+00 : f32
    %30 = vector.broadcast %cst_21 : f32 to vector<8x512xf32>
    %31 = arith.maximumf %29, %30 : vector<8x512xf32>
    %32 = arith.truncf %31 : vector<8x512xf32> to vector<8x512xbf16>
    %cst_22 = arith.constant dense<0.000000e+00> : vector<8x512xf32>
    %33 = tpu.matmul %32, %11, %cst_22 {dimension_numbers = #tpu.dot_dimension_numbers<[1], [0], [0], [1], [0, 0, 1, 1], [], []>} : vector<8x512xbf16>, vector<512x512xbf16>, vector<8x512xf32> -> vector<8x512xf32>
    %34 = vector.broadcast %16 : vector<1x512xf32> to vector<8x512xf32>
    %35 = arith.addf %33, %34 : vector<8x512xf32>
    %cst_23 = arith.constant 0.000000e+00 : f32
    %36 = vector.broadcast %cst_23 : f32 to vector<8x512xf32>
    %37 = arith.maximumf %35, %36 : vector<8x512xf32>
    %38 = vector.broadcast %17 : vector<1x512xf32> to vector<8x512xf32>
    %39 = arith.mulf %37, %38 : vector<8x512xf32>
    %cst_24 = arith.constant dense<0.000000e+00> : vector<8xf32>
    %40 = vector.multi_reduction <add>, %39, %cst_24 [1] : vector<8x512xf32> to vector<8xf32>
    %41 = vector.shape_cast %40 : vector<8xf32> to vector<8x1xf32>
    %42 = vector.broadcast %18 : vector<1x1xf32> to vector<8x1xf32>
    %43 = arith.addf %41, %42 : vector<8x1xf32>
    %44 = vector.shape_cast %43 : vector<8x1xf32> to vector<8x1xf32>
    %45 = vector.broadcast %44 : vector<8x1xf32> to vector<8x128xf32>
    %c0_25 = arith.constant 0 : index
    %c0_26 = arith.constant 0 : index
    %c0_27 = arith.constant 0 : index
    %46 = vector.load %arg7[%c0_25, %c0_26, %c0_27] : memref<2x8x128xf32, #tpu.memory_space<vmem>>, vector<1x8x128xf32>
    %47 = vector.shape_cast %46 : vector<1x8x128xf32> to vector<8x128xf32>
    %48 = vector.shape_cast %45 : vector<8x128xf32> to vector<1x8x128xf32>
    tpu.vector_store %arg7[%c0_25, %c0_26, %c0_27], %48 {strides = array<i32>} : memref<2x8x128xf32, #tpu.memory_space<vmem>>, vector<1x8x128xf32>,
    %c1 = arith.constant 1 : index
    %c0_28 = arith.constant 0 : index
    %c0_29 = arith.constant 0 : index
    %49 = vector.load %arg2[%c1, %c0_28, %c0_29] : memref<2x8x512xbf16, #tpu.memory_space<vmem>>, vector<1x8x512xbf16>
    %50 = vector.shape_cast %49 : vector<1x8x512xbf16> to vector<8x512xbf16>
    %c1_30 = arith.constant 1 : index
    %c0_31 = arith.constant 0 : index
    %c0_32 = arith.constant 0 : index
    %51 = vector.load %arg3[%c1_30, %c0_31, %c0_32] : memref<2x4x512xbf16, #tpu.memory_space<vmem>>, vector<1x4x512xbf16>
    %52 = vector.shape_cast %51 : vector<1x4x512xbf16> to vector<4x512xbf16>
    %c1_33 = arith.constant 1 : index
    %c0_34 = arith.constant 0 : index
    %c0_35 = arith.constant 0 : index
    %53 = vector.load %arg4[%c1_33, %c0_34, %c0_35] : memref<2x512x512xbf16, #tpu.memory_space<vmem>>, vector<1x512x512xbf16>
    %54 = vector.shape_cast %53 : vector<1x512x512xbf16> to vector<512x512xbf16>
    %c1_36 = arith.constant 1 : index
    %c0_37 = arith.constant 0 : index
    %c0_38 = arith.constant 0 : index
    %55 = vector.load %arg5[%c1_36, %c0_37, %c0_38] : memref<2x512x512xbf16, #tpu.memory_space<vmem>>, vector<1x512x512xbf16>
    %56 = vector.shape_cast %55 : vector<1x512x512xbf16> to vector<512x512xbf16>
    %c1_39 = arith.constant 1 : index
    %c0_40 = arith.constant 0 : index
    %c0_41 = arith.constant 0 : index
    %57 = vector.load %arg6[%c1_39, %c0_40, %c0_41] : memref<2x5x512xf32, #tpu.memory_space<vmem>>, vector<1x5x512xf32>
    %58 = vector.shape_cast %57 : vector<1x5x512xf32> to vector<5x512xf32>
    %59 = vector.extract_strided_slice %58 {offsets = [0, 0], sizes = [1, 512], strides = [1, 1]} : vector<5x512xf32> to vector<1x512xf32>
    %60 = vector.extract_strided_slice %58 {offsets = [1, 0], sizes = [1, 512], strides = [1, 1]} : vector<5x512xf32> to vector<1x512xf32>
    %61 = vector.extract_strided_slice %58 {offsets = [2, 0], sizes = [1, 512], strides = [1, 1]} : vector<5x512xf32> to vector<1x512xf32>
    %62 = vector.extract_strided_slice %58 {offsets = [3, 0], sizes = [1, 512], strides = [1, 1]} : vector<5x512xf32> to vector<1x512xf32>
    %63 = vector.extract_strided_slice %58 {offsets = [4, 0], sizes = [1, 1], strides = [1, 1]} : vector<5x512xf32> to vector<1x1xf32>
    %cst_42 = arith.constant dense<0.000000e+00> : vector<8x512xf32>
    %64 = tpu.matmul %1, %50, %cst_42 {dimension_numbers = #tpu.dot_dimension_numbers<[1], [0], [0], [1], [0, 0, 1, 1], [], []>} : vector<8x8xbf16>, vector<8x512xbf16>, vector<8x512xf32> -> vector<8x512xf32>
    %cst_43 = arith.constant dense<0.000000e+00> : vector<8x512xf32>
    %65 = tpu.matmul %3, %52, %cst_43 {dimension_numbers = #tpu.dot_dimension_numbers<[1], [0], [0], [1], [0, 0, 1, 1], [], []>} : vector<8x4xbf16>, vector<4x512xbf16>, vector<8x512xf32> -> vector<8x512xf32>
    %66 = arith.addf %64, %65 : vector<8x512xf32>
    %67 = vector.broadcast %59 : vector<1x512xf32> to vector<8x512xf32>
    %68 = arith.addf %66, %67 : vector<8x512xf32>
    %cst_44 = arith.constant 0.000000e+00 : f32
    %69 = vector.broadcast %cst_44 : f32 to vector<8x512xf32>
    %70 = arith.maximumf %68, %69 : vector<8x512xf32>
    %71 = arith.truncf %70 : vector<8x512xf32> to vector<8x512xbf16>
    %cst_45 = arith.constant dense<0.000000e+00> : vector<8x512xf32>
    %72 = tpu.matmul %71, %54, %cst_45 {dimension_numbers = #tpu.dot_dimension_numbers<[1], [0], [0], [1], [0, 0, 1, 1], [], []>} : vector<8x512xbf16>, vector<512x512xbf16>, vector<8x512xf32> -> vector<8x512xf32>
    %73 = vector.broadcast %60 : vector<1x512xf32> to vector<8x512xf32>
    %74 = arith.addf %72, %73 : vector<8x512xf32>
    %cst_46 = arith.constant 0.000000e+00 : f32
    %75 = vector.broadcast %cst_46 : f32 to vector<8x512xf32>
    %76 = arith.maximumf %74, %75 : vector<8x512xf32>
    %77 = arith.truncf %76 : vector<8x512xf32> to vector<8x512xbf16>
    %cst_47 = arith.constant dense<0.000000e+00> : vector<8x512xf32>
    %78 = tpu.matmul %77, %56, %cst_47 {dimension_numbers = #tpu.dot_dimension_numbers<[1], [0], [0], [1], [0, 0, 1, 1], [], []>} : vector<8x512xbf16>, vector<512x512xbf16>, vector<8x512xf32> -> vector<8x512xf32>
    %79 = vector.broadcast %61 : vector<1x512xf32> to vector<8x512xf32>
    %80 = arith.addf %78, %79 : vector<8x512xf32>
    %cst_48 = arith.constant 0.000000e+00 : f32
    %81 = vector.broadcast %cst_48 : f32 to vector<8x512xf32>
    %82 = arith.maximumf %80, %81 : vector<8x512xf32>
    %83 = vector.broadcast %62 : vector<1x512xf32> to vector<8x512xf32>
    %84 = arith.mulf %82, %83 : vector<8x512xf32>
    %cst_49 = arith.constant dense<0.000000e+00> : vector<8xf32>
    %85 = vector.multi_reduction <add>, %84, %cst_49 [1] : vector<8x512xf32> to vector<8xf32>
    %86 = vector.shape_cast %85 : vector<8xf32> to vector<8x1xf32>
    %87 = vector.broadcast %63 : vector<1x1xf32> to vector<8x1xf32>
    %88 = arith.addf %86, %87 : vector<8x1xf32>
    %89 = vector.shape_cast %88 : vector<8x1xf32> to vector<8x1xf32>
    %90 = vector.broadcast %89 : vector<8x1xf32> to vector<8x128xf32>
    %c1_50 = arith.constant 1 : index
    %c0_51 = arith.constant 0 : index
    %c0_52 = arith.constant 0 : index
    %91 = vector.load %arg7[%c1_50, %c0_51, %c0_52] : memref<2x8x128xf32, #tpu.memory_space<vmem>>, vector<1x8x128xf32>
    %92 = vector.shape_cast %91 : vector<1x8x128xf32> to vector<8x128xf32>
    %93 = vector.shape_cast %90 : vector<8x128xf32> to vector<1x8x128xf32>
    tpu.vector_store %arg7[%c1_50, %c0_51, %c0_52], %93 {strides = array<i32>} : memref<2x8x128xf32, #tpu.memory_space<vmem>>, vector<1x8x128xf32>,
    return
  }
}

</mosaic_0001>

<llo_original>
// kernel: _critic_forward_impl.1
$region0: #{_critic_forward_impl.1}
  #allocation0 [shape = 'u32[]', space=smem, size = 0x4, offset = 0x4, fixed_abs, tag = 'smem constant byte address 0x4 - core index']
  #allocation1 [shape = 'u32[144,128]{1,0:T(1,128)}', space=vmem, size = 0x12000, scoped, tag = 'internal scratch']
  %s0 = inlined_call_operand.vmem [shape: f32[8,8], index: 0, kind: input, shape index: {}]
  %s1 = inlined_call_operand.vmem [shape: f32[8,4], index: 1, kind: input, shape index: {}]
  %s2 = inlined_call_operand.vmem [shape: bf16[2,8,512], index: 2, kind: input, shape index: {}]
  %s3 = inlined_call_operand.vmem [shape: bf16[2,4,512], index: 3, kind: input, shape index: {}]
  %s4 = inlined_call_operand.hbm [shape: bf16[2,512,512], index: 4, kind: input, shape index: {}]
  %s5 = inlined_call_operand.hbm [shape: bf16[2,512,512], index: 5, kind: input, shape index: {}]
  %s6 = inlined_call_operand.vmem [shape: f32[2,5,512], index: 6, kind: input, shape index: {}]
  %s7 = inlined_call_operand.vmem [shape: f32[2,8,128], index: 7, kind: output, shape index: {}]
  %s8 = sld [smem:[#allocation0]]
  $region46: #{_critic_forward_impl.1} parent=0
    _
  %s10 = ssub.s32 1, %s8
  %s11 = scalar_select 0, %s10, %s8
  $region1: #{_critic_forward_impl.1} parent=0
    #allocation2 [shape = 'u8[1048576]{0}', space=vmem, size = 0x100000, scoped, tag = 'input window, operand 4, single buffered']
    #allocation3 [shape = 's32[1]{0}', space=sflag, size = 0x4, scoped, tag = 'scoped memory for _critic_forward_impl.1']
    #allocation4 [shape = 'u8[1048576]{0}', space=vmem, size = 0x100000, scoped, tag = 'input window, operand 5, single buffered']
    #allocation5 [shape = 's32[1]{0}', space=sflag, size = 0x4, scoped, tag = 'scoped memory for _critic_forward_impl.1']
    %12 = vsyncpa [#allocation3], 0
    %13 = vsyncpa [#allocation5], 0
    // Predicated region
    $region2: #{_critic_forward_impl.1} parent=1 // pred_check
      _
    $region3: #{_critic_forward_impl.1} parent=1 // pred_check_branch
      %15 = sbr.rel (0) target = $region5
    $region4: #{_critic_forward_impl.1} parent=1 // pred_region
      _
    $region5: #{_critic_forward_impl.1} parent=1 // pred_fallthru
      _
    // Predicated region
    $region6: #{_critic_forward_impl.1} parent=1 // pred_check
      _
    $region7: #{_critic_forward_impl.1} parent=1 // pred_check_branch
      %17 = sbr.rel (0) target = $region9
    $region8: #{_critic_forward_impl.1} parent=1 // pred_region
      _
    $region9: #{_critic_forward_impl.1} parent=1 // pred_fallthru
      _
    // Predicated region
    $region10: #{_critic_forward_impl.1} parent=1 // pred_check
      _
    $region11: #{_critic_forward_impl.1} parent=1 // pred_check_branch
      %19 = sbr.rel (0) target = $region13
    $region12: #{_critic_forward_impl.1} parent=1 // pred_region
      _
    $region13: #{_critic_forward_impl.1} parent=1 // pred_fallthru
      _
    // Predicated region
    $region14: #{_critic_forward_impl.1} parent=1 // pred_check
      _
    $region15: #{_critic_forward_impl.1} parent=1 // pred_check_branch
      %21 = sbr.rel (0) target = $region17
    $region16: #{_critic_forward_impl.1} parent=1 // pred_region
      _
    $region17: #{_critic_forward_impl.1} parent=1 // pred_fallthru
      _
    // Predicated region
    $region18: #{_critic_forward_impl.1} parent=1 // pred_check
      _
    $region19: #{_critic_forward_impl.1} parent=1 // pred_check_branch
      %23 = sbr.rel (0) target = $region21
    $region20: #{_critic_forward_impl.1} parent=1 // pred_region
      %s25 = ssub.s32 32768, 32768
      %26 = vsyncadd [#allocation3], %s25
      %s27 = sshll.u32 [#allocation2], 4
      %s28 = int_to_ptr.vmem [resolvable:$true] %s27
      %33 = dma.hbm_to_vmem [thread:$0]  %s4, 32768, %s28, [#allocation3], 256, 256, 16
    $region21: #{_critic_forward_impl.1} parent=1 // pred_fallthru
      _
    // Predicated region
    $region22: #{_critic_forward_impl.1} parent=1 // pred_check
      _
    $region23: #{_critic_forward_impl.1} parent=1 // pred_check_branch
      %35 = sbr.rel (0) target = $region25
    $region24: #{_critic_forward_impl.1} parent=1 // pred_region
      %s37 = ssub.s32 32768, 32768
      %38 = vsyncadd [#allocation5], %s37
      %s39 = sshll.u32 [#allocation4], 4
      %s40 = int_to_ptr.vmem [resolvable:$true] %s39
      %45 = dma.hbm_to_vmem [thread:$0]  %s5, 32768, %s40, [#allocation5], 256, 256, 16
    $region25: #{_critic_forward_impl.1} parent=1 // pred_fallthru
      _
    // Predicated region
    $region26: #{_critic_forward_impl.1} parent=1 // pred_check
      _
    $region27: #{_critic_forward_impl.1} parent=1 // pred_check_branch
      %47 = sbr.rel (0) target = $region29
    $region28: #{_critic_forward_impl.1} parent=1 // pred_region
      _
    $region29: #{_critic_forward_impl.1} parent=1 // pred_fallthru
      _
    // Predicated region
    $region30: #{_critic_forward_impl.1} parent=1 // pred_check
      _
    $region31: #{_critic_forward_impl.1} parent=1 // pred_check_branch
      %49 = sbr.rel (0) target = $region33
    $region32: #{_critic_forward_impl.1} parent=1 // pred_region
      %50 = dma.done [#allocation3], 32768
    $region33: #{_critic_forward_impl.1} parent=1 // pred_fallthru
      _
    // Predicated region
    $region34: #{_critic_forward_impl.1} parent=1 // pred_check
      _
    $region35: #{_critic_forward_impl.1} parent=1 // pred_check_branch
      %52 = sbr.rel (0) target = $region37
    $region36: #{_critic_forward_impl.1} parent=1 // pred_region
      %53 = dma.done [#allocation5], 32768
    $region37: #{_critic_forward_impl.1} parent=1 // pred_fallthru
      _
    %v55 = vld [vmem:[%s0] sm:$0xff]
    %v56 = vpack.c.bf16 %v55, %v55
    %v57 = vld [vmem:[%s1] sm:$0xff]
    %v58 = vpack.c.bf16 %v57, %v57
    %v59 = vld [vmem:[%s2] sm:$0xff]
    %v60 = vld [vmem:[%s2 + $0x8] sm:$0xff]
    %v61 = vld [vmem:[%s3] sm:$0xff]
    %v62 = vld [vmem:[#allocation2] sm:$0xff]
    %v63 = vld [vmem:[#allocation2 + $0x8] sm:$0xff]
    %v64 = vld [vmem:[#allocation2 + $0x10] sm:$0xff]
    %v65 = vld [vmem:[#allocation2 + $0x18] sm:$0xff]
    %v66 = vld [vmem:[#allocation2 + $0x20] sm:$0xff]
    %v67 = vld [vmem:[#allocation2 + $0x28] sm:$0xff]
    %v68 = vld [vmem:[#allocation2 + $0x30] sm:$0xff]
    %v69 = vld [vmem:[#allocation2 + $0x38] sm:$0xff]
    %v70 = vld [vmem:[#allocation2 + $0x40] sm:$0xff]
    %v71 = vld [vmem:[#allocation2 + $0x48] sm:$0xff]
    %v72 = vld [vmem:[#allocation2 + $0x50] sm:$0xff]
    %v73 = vld [vmem:[#allocation2 + $0x58] sm:$0xff]
    %v74 = vld [vmem:[#allocation2 + $0x60] sm:$0xff]
    %v75 = vld [vmem:[#allocation2 + $0x68] sm:$0xff]
    %v76 = vld [vmem:[#allocation2 + $0x70] sm:$0xff]
    %v77 = vld [vmem:[#allocation2 + $0x78] sm:$0xff]
    %v78 = vld [vmem:[#allocation2 + $0x80] sm:$0xff]
    %v79 = vld [vmem:[#allocation2 + $0x88] sm:$0xff]
    %v80 = vld [vmem:[#allocation2 + $0x90] sm:$0xff]
    %v81 = vld [vmem:[#allocation2 + $0x98] sm:$0xff]
    %v82 = vld [vmem:[#allocation2 + $0xa0] sm:$0xff]
    %v83 = vld [vmem:[#allocation2 + $0xa8] sm:$0xff]
    %v84 = vld [vmem:[#allocation2 + $0xb0] sm:$0xff]
    %v85 = vld [vmem:[#allocation2 + $0xb8] sm:$0xff]
    %v86 = vld [vmem:[#allocation2 + $0xc0] sm:$0xff]
    %v87 = vld [vmem:[#allocation2 + $0xc8] sm:$0xff]
    %v88 = vld [vmem:[#allocation2 + $0xd0] sm:$0xff]
    %v89 = vld [vmem:[#allocation2 + $0xd8] sm:$0xff]
    %v90 = vld [vmem:[#allocation2 + $0xe0] sm:$0xff]
    %v91 = vld [vmem:[#allocation2 + $0xe8] sm:$0xff]
    %v92 = vld [vmem:[#allocation2 + $0xf0] sm:$0xff]
    %v93 = vld [vmem:[#allocation2 + $0xf8] sm:$0xff]
    %v94 = vld [vmem:[#allocation2 + $0x100] sm:$0xff]
    %v95 = vld [vmem:[#allocation2 + $0x108] sm:$0xff]
    %v96 = vld [vmem:[#allocation2 + $0x110] sm:$0xff]
    %v97 = vld [vmem:[#allocation2 + $0x118] sm:$0xff]
    %v98 = vld [vmem:[#allocation2 + $0x120] sm:$0xff]
    %v99 = vld [vmem:[#allocation2 + $0x128] sm:$0xff]
    %v100 = vld [vmem:[#allocation2 + $0x130] sm:$0xff]
    %v101 = vld [vmem:[#allocation2 + $0x138] sm:$0xff]
    %v102 = vld [vmem:[#allocation2 + $0x140] sm:$0xff]
    %v103 = vld [vmem:[#allocation2 + $0x148] sm:$0xff]
    %v104 = vld [vmem:[#allocation2 + $0x150] sm:$0xff]
    %v105 = vld [vmem:[#allocation2 + $0x158] sm:$0xff]
    %v106 = vld [vmem:[#allocation2 + $0x160] sm:$0xff]
    %v107 = vld [vmem:[#allocation2 + $0x168] sm:$0xff]
    %v108 = vld [vmem:[#allocation2 + $0x170] sm:$0xff]
    %v109 = vld [vmem:[#allocation2 + $0x178] sm:$0xff]
    %v110 = vld [vmem:[#allocation2 + $0x180] sm:$0xff]
    %v111 = vld [vmem:[#allocation2 + $0x188] sm:$0xff]
    %v112 = vld [vmem:[#allocation2 + $0x190] sm:$0xff]
    %v113 = vld [vmem:[#allocation2 + $0x198] sm:$0xff]
    %v114 = vld [vmem:[#allocation2 + $0x1a0] sm:$0xff]
    %v115 = vld [vmem:[#allocation2 + $0x1a8] sm:$0xff]
    %v116 = vld [vmem:[#allocation2 + $0x1b0] sm:$0xff]
    %v117 = vld [vmem:[#allocation2 + $0x1b8] sm:$0xff]
    %v118 = vld [vmem:[#allocation2 + $0x1c0] sm:$0xff]
    %v119 = vld [vmem:[#allocation2 + $0x1c8] sm:$0xff]
    %v120 = vld [vmem:[#allocation2 + $0x1d0] sm:$0xff]
    %v121 = vld [vmem:[#allocation2 + $0x1d8] sm:$0xff]
    %v122 = vld [vmem:[#allocation2 + $0x1e0] sm:$0xff]
    %v123 = vld [vmem:[#allocation2 + $0x1e8] sm:$0xff]
    %v124 = vld [vmem:[#allocation2 + $0x1f0] sm:$0xff]
    %v125 = vld [vmem:[#allocation2 + $0x1f8] sm:$0xff]
    %v126 = vld [vmem:[#allocation2 + $0x200] sm:$0xff]
    %v127 = vld [vmem:[#allocation2 + $0x208] sm:$0xff]
    %v128 = vld [vmem:[#allocation2 + $0x210] sm:$0xff]
    %v129 = vld [vmem:[#allocation2 + $0x218] sm:$0xff]
    %v130 = vld [vmem:[#allocation2 + $0x220] sm:$0xff]
    %v131 = vld [vmem:[#allocation2 + $0x228] sm:$0xff]
    %v132 = vld [vmem:[#allocation2 + $0x230] sm:$0xff]
    %v133 = vld [vmem:[#allocation2 + $0x238] sm:$0xff]
    %v134 = vld [vmem:[#allocation2 + $0x240] sm:$0xff]
    %v135 = vld [vmem:[#allocation2 + $0x248] sm:$0xff]
    %v136 = vld [vmem:[#allocation2 + $0x250] sm:$0xff]
    %v137 = vld [vmem:[#allocation2 + $0x258] sm:$0xff]
    %v138 = vld [vmem:[#allocation2 + $0x260] sm:$0xff]
    %v139 = vld [vmem:[#allocation2 + $0x268] sm:$0xff]
    %v140 = vld [vmem:[#allocation2 + $0x270] sm:$0xff]
    %v141 = vld [vmem:[#allocation2 + $0x278] sm:$0xff]
    %v142 = vld [vmem:[#allocation2 + $0x280] sm:$0xff]
    %v143 = vld [vmem:[#allocation2 + $0x288] sm:$0xff]
    %v144 = vld [vmem:[#allocation2 + $0x290] sm:$0xff]
    %v145 = vld [vmem:[#allocation2 + $0x298] sm:$0xff]
    %v146 = vld [vmem:[#allocation2 + $0x2a0] sm:$0xff]
    %v147 = vld [vmem:[#allocation2 + $0x2a8] sm:$0xff]
    %v148 = vld [vmem:[#allocation2 + $0x2b0] sm:$0xff]
    %v149 = vld [vmem:[#allocation2 + $0x2b8] sm:$0xff]
    %v150 = vld [vmem:[#allocation2 + $0x2c0] sm:$0xff]
    %v151 = vld [vmem:[#allocation2 + $0x2c8] sm:$0xff]
    %v152 = vld [vmem:[#allocation2 + $0x2d0] sm:$0xff]
    %v153 = vld [vmem:[#allocation2 + $0x2d8] sm:$0xff]
    %v154 = vld [vmem:[#allocation2 + $0x2e0] sm:$0xff]
    %v155 = vld [vmem:[#allocation2 + $0x2e8] sm:$0xff]
    %v156 = vld [vmem:[#allocation2 + $0x2f0] sm:$0xff]
    %v157 = vld [vmem:[#allocation2 + $0x2f8] sm:$0xff]
    %v158 = vld [vmem:[#allocation2 + $0x300] sm:$0xff]
    %v159 = vld [vmem:[#allocation2 + $0x308] sm:$0xff]
    %v160 = vld [vmem:[#allocation2 + $0x310] sm:$0xff]
    %v161 = vld [vmem:[#allocation2 + $0x318] sm:$0xff]
    %v162 = vld [vmem:[#allocation2 + $0x320] sm:$0xff]
    %v163 = vld [vmem:[#allocation2 + $0x328] sm:$0xff]
    %v164 = vld [vmem:[#allocation2 + $0x330] sm:$0xff]
    %v165 = vld [vmem:[#allocation2 + $0x338] sm:$0xff]
    %v166 = vld [vmem:[#allocation2 + $0x340] sm:$0xff]
    %v167 = vld [vmem:[#allocation2 + $0x348] sm:$0xff]
    %v168 = vld [vmem:[#allocation2 + $0x350] sm:$0xff]
    %v169 = vld [vmem:[#allocation2 + $0x358] sm:$0xff]
    %v170 = vld [vmem:[#allocation2 + $0x360] sm:$0xff]
    %v171 = vld [vmem:[#allocation2 + $0x368] sm:$0xff]
    %v172 = vld [vmem:[#allocation2 + $0x370] sm:$0xff]
    %v173 = vld [vmem:[#allocation2 + $0x378] sm:$0xff]
    %v174 = vld [vmem:[#allocation2 + $0x380] sm:$0xff]
    %v175 = vld [vmem:[#allocation2 + $0x388] sm:$0xff]
    %v176 = vld [vmem:[#allocation2 + $0x390] sm:$0xff]
    %v177 = vld [vmem:[#allocation2 + $0x398] sm:$0xff]
    %v178 = vld [vmem:[#allocation2 + $0x3a0] sm:$0xff]
    %v179 = vld [vmem:[#allocation2 + $0x3a8] sm:$0xff]
    %v180 = vld [vmem:[#allocation2 + $0x3b0] sm:$0xff]
    %v181 = vld [vmem:[#allocation2 + $0x3b8] sm:$0xff]
    %v182 = vld [vmem:[#allocation2 + $0x3c0] sm:$0xff]
    %v183 = vld [vmem:[#allocation2 + $0x3c8] sm:$0xff]
    %v184 = vld [vmem:[#allocation2 + $0x3d0] sm:$0xff]
    %v185 = vld [vmem:[#allocation2 + $0x3d8] sm:$0xff]
    %v186 = vld [vmem:[#allocation2 + $0x3e0] sm:$0xff]
    %v187 = vld [vmem:[#allocation2 + $0x3e8] sm:$0xff]
    %v188 = vld [vmem:[#allocation2 + $0x3f0] sm:$0xff]
    %v189 = vld [vmem:[#allocation2 + $0x3f8] sm:$0xff]
    %v190 = vld [vmem:[#allocation4] sm:$0xff]
    %v191 = vld [vmem:[#allocation4 + $0x8] sm:$0xff]
    %v192 = vld [vmem:[#allocation4 + $0x10] sm:$0xff]
    %v193 = vld [vmem:[#allocation4 + $0x18] sm:$0xff]
    %v194 = vld [vmem:[#allocation4 + $0x20] sm:$0xff]
    %v195 = vld [vmem:[#allocation4 + $0x28] sm:$0xff]
    %v196 = vld [vmem:[#allocation4 + $0x30] sm:$0xff]
    %v197 = vld [vmem:[#allocation4 + $0x38] sm:$0xff]
    %v198 = vld [vmem:[#allocation4 + $0x40] sm:$0xff]
    %v199 = vld [vmem:[#allocation4 + $0x48] sm:$0xff]
    %v200 = vld [vmem:[#allocation4 + $0x50] sm:$0xff]
    %v201 = vld [vmem:[#allocation4 + $0x58] sm:$0xff]
    %v202 = vld [vmem:[#allocation4 + $0x60] sm:$0xff]
    %v203 = vld [vmem:[#allocation4 + $0x68] sm:$0xff]
    %v204 = vld [vmem:[#allocation4 + $0x70] sm:$0xff]
    %v205 = vld [vmem:[#allocation4 + $0x78] sm:$0xff]
    %v206 = vld [vmem:[#allocation4 + $0x80] sm:$0xff]
    %v207 = vld [vmem:[#allocation4 + $0x88] sm:$0xff]
    %v208 = vld [vmem:[#allocation4 + $0x90] sm:$0xff]
    %v209 = vld [vmem:[#allocation4 + $0x98] sm:$0xff]
    %v210 = vld [vmem:[#allocation4 + $0xa0] sm:$0xff]
    %v211 = vld [vmem:[#allocation4 + $0xa8] sm:$0xff]
    %v212 = vld [vmem:[#allocation4 + $0xb0] sm:$0xff]
    %v213 = vld [vmem:[#allocation4 + $0xb8] sm:$0xff]
    %v214 = vld [vmem:[#allocation4 + $0xc0] sm:$0xff]
    %v215 = vld [vmem:[#allocation4 + $0xc8] sm:$0xff]
    %v216 = vld [vmem:[#allocation4 + $0xd0] sm:$0xff]
    %v217 = vld [vmem:[#allocation4 + $0xd8] sm:$0xff]
    %v218 = vld [vmem:[#allocation4 + $0xe0] sm:$0xff]
    %v219 = vld [vmem:[#allocation4 + $0xe8] sm:$0xff]
    %v220 = vld [vmem:[#allocation4 + $0xf0] sm:$0xff]
    %v221 = vld [vmem:[#allocation4 + $0xf8] sm:$0xff]
    %v222 = vld [vmem:[#allocation4 + $0x100] sm:$0xff]
    %v223 = vld [vmem:[#allocation4 + $0x108] sm:$0xff]
    %v224 = vld [vmem:[#allocation4 + $0x110] sm:$0xff]
    %v225 = vld [vmem:[#allocation4 + $0x118] sm:$0xff]
    %v226 = vld [vmem:[#allocation4 + $0x120] sm:$0xff]
    %v227 = vld [vmem:[#allocation4 + $0x128] sm:$0xff]
    %v228 = vld [vmem:[#allocation4 + $0x130] sm:$0xff]
    %v229 = vld [vmem:[#allocation4 + $0x138] sm:$0xff]
    %v230 = vld [vmem:[#allocation4 + $0x140] sm:$0xff]
    %v231 = vld [vmem:[#allocation4 + $0x148] sm:$0xff]
    %v232 = vld [vmem:[#allocation4 + $0x150] sm:$0xff]
    %v233 = vld [vmem:[#allocation4 + $0x158] sm:$0xff]
    %v234 = vld [vmem:[#allocation4 + $0x160] sm:$0xff]
    %v235 = vld [vmem:[#allocation4 + $0x168] sm:$0xff]
    %v236 = vld [vmem:[#allocation4 + $0x170] sm:$0xff]
    %v237 = vld [vmem:[#allocation4 + $0x178] sm:$0xff]
    %v238 = vld [vmem:[#allocation4 + $0x180] sm:$0xff]
    %v239 = vld [vmem:[#allocation4 + $0x188] sm:$0xff]
    %v240 = vld [vmem:[#allocation4 + $0x190] sm:$0xff]
    %v241 = vld [vmem:[#allocation4 + $0x198] sm:$0xff]
    %v242 = vld [vmem:[#allocation4 + $0x1a0] sm:$0xff]
    %v243 = vld [vmem:[#allocation4 + $0x1a8] sm:$0xff]
    %v244 = vld [vmem:[#allocation4 + $0x1b0] sm:$0xff]
    %v245 = vld [vmem:[#allocation4 + $0x1b8] sm:$0xff]
    %v246 = vld [vmem:[#allocation4 + $0x1c0] sm:$0xff]
    %v247 = vld [vmem:[#allocation4 + $0x1c8] sm:$0xff]
    %v248 = vld [vmem:[#allocation4 + $0x1d0] sm:$0xff]
    %v249 = vld [vmem:[#allocation4 + $0x1d8] sm:$0xff]
    %v250 = vld [vmem:[#allocation4 + $0x1e0] sm:$0xff]
    %v251 = vld [vmem:[#allocation4 + $0x1e8] sm:$0xff]
    %v252 = vld [vmem:[#allocation4 + $0x1f0] sm:$0xff]
    %v253 = vld [vmem:[#allocation4 + $0x1f8] sm:$0xff]
    %v254 = vld [vmem:[#allocation4 + $0x200] sm:$0xff]
    %v255 = vld [vmem:[#allocation4 + $0x208] sm:$0xff]
    %v256 = vld [vmem:[#allocation4 + $0x210] sm:$0xff]
    %v257 = vld [vmem:[#allocation4 + $0x218] sm:$0xff]
    %v258 = vld [vmem:[#allocation4 + $0x220] sm:$0xff]
    %v259 = vld [vmem:[#allocation4 + $0x228] sm:$0xff]
    %v260 = vld [vmem:[#allocation4 + $0x230] sm:$0xff]
    %v261 = vld [vmem:[#allocation4 + $0x238] sm:$0xff]
    %v262 = vld [vmem:[#allocation4 + $0x240] sm:$0xff]
    %v263 = vld [vmem:[#allocation4 + $0x248] sm:$0xff]
    %v264 = vld [vmem:[#allocation4 + $0x250] sm:$0xff]
    %v265 = vld [vmem:[#allocation4 + $0x258] sm:$0xff]
    %v266 = vld [vmem:[#allocation4 + $0x260] sm:$0xff]
    %v267 = vld [vmem:[#allocation4 + $0x268] sm:$0xff]
    %v268 = vld [vmem:[#allocation4 + $0x270] sm:$0xff]
    %v269 = vld [vmem:[#allocation4 + $0x278] sm:$0xff]
    %v270 = vld [vmem:[#allocation4 + $0x280] sm:$0xff]
    %v271 = vld [vmem:[#allocation4 + $0x288] sm:$0xff]
    %v272 = vld [vmem:[#allocation4 + $0x290] sm:$0xff]
    %v273 = vld [vmem:[#allocation4 + $0x298] sm:$0xff]
    %v274 = vld [vmem:[#allocation4 + $0x2a0] sm:$0xff]
    %v275 = vld [vmem:[#allocation4 + $0x2a8] sm:$0xff]
    %v276 = vld [vmem:[#allocation4 + $0x2b0] sm:$0xff]
    %v277 = vld [vmem:[#allocation4 + $0x2b8] sm:$0xff]
    %v278 = vld [vmem:[#allocation4 + $0x2c0] sm:$0xff]
    %v279 = vld [vmem:[#allocation4 + $0x2c8] sm:$0xff]
    %v280 = vld [vmem:[#allocation4 + $0x2d0] sm:$0xff]
    %v281 = vld [vmem:[#allocation4 + $0x2d8] sm:$0xff]
    %v282 = vld [vmem:[#allocation4 + $0x2e0] sm:$0xff]
    %v283 = vld [vmem:[#allocation4 + $0x2e8] sm:$0xff]
    %v284 = vld [vmem:[#allocation4 + $0x2f0] sm:$0xff]
    %v285 = vld [vmem:[#allocation4 + $0x2f8] sm:$0xff]
    %v286 = vld [vmem:[#allocation4 + $0x300] sm:$0xff]
    %v287 = vld [vmem:[#allocation4 + $0x308] sm:$0xff]
    %v288 = vld [vmem:[#allocation4 + $0x310] sm:$0xff]
    %v289 = vld [vmem:[#allocation4 + $0x318] sm:$0xff]
    %v290 = vld [vmem:[#allocation4 + $0x320] sm:$0xff]
    %v291 = vld [vmem:[#allocation4 + $0x328] sm:$0xff]
    %v292 = vld [vmem:[#allocation4 + $0x330] sm:$0xff]
    %v293 = vld [vmem:[#allocation4 + $0x338] sm:$0xff]
    %v294 = vld [vmem:[#allocation4 + $0x340] sm:$0xff]
    %v295 = vld [vmem:[#allocation4 + $0x348] sm:$0xff]
    %v296 = vld [vmem:[#allocation4 + $0x350] sm:$0xff]
    %v297 = vld [vmem:[#allocation4 + $0x358] sm:$0xff]
    %v298 = vld [vmem:[#allocation4 + $0x360] sm:$0xff]
    %v299 = vld [vmem:[#allocation4 + $0x368] sm:$0xff]
    %v300 = vld [vmem:[#allocation4 + $0x370] sm:$0xff]
    %v301 = vld [vmem:[#allocation4 + $0x378] sm:$0xff]
    %v302 = vld [vmem:[#allocation4 + $0x380] sm:$0xff]
    %v303 = vld [vmem:[#allocation4 + $0x388] sm:$0xff]
    %v304 = vld [vmem:[#allocation4 + $0x390] sm:$0xff]
    %v305 = vld [vmem:[#allocation4 + $0x398] sm:$0xff]
    %v306 = vld [vmem:[#allocation4 + $0x3a0] sm:$0xff]
    %v307 = vld [vmem:[#allocation4 + $0x3a8] sm:$0xff]
    %v308 = vld [vmem:[#allocation4 + $0x3b0] sm:$0xff]
    %v309 = vld [vmem:[#allocation4 + $0x3b8] sm:$0xff]
    %v310 = vld [vmem:[#allocation4 + $0x3c0] sm:$0xff]
    %v311 = vld [vmem:[#allocation4 + $0x3c8] sm:$0xff]
    %v312 = vld [vmem:[#allocation4 + $0x3d0] sm:$0xff]
    %v313 = vld [vmem:[#allocation4 + $0x3d8] sm:$0xff]
    %v314 = vld [vmem:[#allocation4 + $0x3e0] sm:$0xff]
    %v315 = vld [vmem:[#allocation4 + $0x3e8] sm:$0xff]
    %v316 = vld [vmem:[#allocation4 + $0x3f0] sm:$0xff]
    %v317 = vld [vmem:[#allocation4 + $0x3f8] sm:$0xff]
    %v318 = vld [vmem:[%s6] sm:$0x1f]
    %v319 = vld [vmem:[%s6 + $0x8] sm:$0x1f]
    %v320 = vld [vmem:[%s6 + $0x10] sm:$0x1f]
    %v321 = vld [vmem:[%s6 + $0x18] sm:$0x1f]
    %v323 = vcombine.high %v61, %v61
    %v325 = vunpack.c.l.s4 1983009808
    %v326 = vunpack.c.0.s8 %v325
    %v327 = vlaneseq
    %v328 = vshrl.u32 %v327, 7
    %v329 = vsub.s32 %v326, %v328
    %v330 = vrot.slane %v61, %v329
    %v332 = vunpack.c.l.s4 1983009808
    %v333 = vunpack.c.0.s8 %v332
    %v334 = vlaneseq
    %v335 = vshrl.u32 %v334, 7
    %v336 = vsub.s32 %v333, %v335
    %v337 = vrot.slane %v323, %v336
    %v338 = vcombine.high %v330, %v330
    %v339 = vcombine.high %v337, %v337
    %vm340 = vcmask 31744
    %v342 = vsel %vm340, %v58, 0
    %vm344 = vcmask 1041408
    %v346 = vsel %vm344, %v330, 0
    %v349 = vsel %vm344, %v338, 0
    %v352 = vsel %vm344, %v337, 0
    %v355 = vsel %vm344, %v339, 0
    %357 = vmatprep.subr.bf16.mxu0 %v349
    %358 = vmatpush1.bf16.msra.mxu0 %v346
    %359 = vmatprep.subr.bf16.mxu0 0
    %360 = vmatpush1.bf16.msra.mxu0 0
    %361 = vmatprep.subr.bf16.mxu0 0
    %362 = vmatpush1.bf16.msra.mxu0 0
    %363 = vmatprep.subr.bf16.mxu0 0
    %364 = vmatpush1.bf16.msra.mxu0 0
    %365 = vmatprep.subr.bf16.mxu0 0
    %366 = vmatpush1.bf16.msra.mxu0 0
    %367 = vmatprep.subr.bf16.mxu0 0
    %368 = vmatpush1.bf16.msra.mxu0 0
    %369 = vmatprep.subr.bf16.mxu0 0
    %370 = vmatpush1.bf16.msra.mxu0 0
    %371 = vmatprep.subr.bf16.mxu0 0
    %372 = vmatpush1.bf16.msra.mxu0 0
    %373 = vmatprep.subr.bf16.mxu0 0
    %374 = vmatpush1.bf16.msra.mxu0 0
    %375 = vmatprep.subr.bf16.mxu0 0
    %376 = vmatpush1.bf16.msra.mxu0 0
    %377 = vmatprep.subr.bf16.mxu0 0
    %378 = vmatpush1.bf16.msra.mxu0 0
    %379 = vmatprep.subr.bf16.mxu0 0
    %380 = vmatpush1.bf16.msra.mxu0 0
    %381 = vmatprep.subr.bf16.mxu0 0
    %382 = vmatpush1.bf16.msra.mxu0 0
    %383 = vmatprep.subr.bf16.mxu0 0
    %384 = vmatpush1.bf16.msra.mxu0 0
    %385 = vmatprep.subr.bf16.mxu0 0
    %386 = vmatpush1.bf16.msra.mxu0 0
    %387 = vmatprep.subr.bf16.mxu0 0
    %388 = vmatpush1.bf16.msra.mxu0 0
    %389 = vmatprep.mubr.bf16.mxu0 0
    %390 = vmatmul.mubr.bf16.gmra.mrb[0].mxu0 %v342
    %v391 = vpop.f32.mrb[0].mxu0
    %v392 = vadd.f32 0.0, %v391
    %v393 = vpop.f32.mrb[0].mxu0
    %v394 = vadd.f32 0.0, %v393
    %v395 = vpop.f32.mrb[0].mxu0
    %v396 = vpop.f32.mrb[0].mxu0
    %397 = vdwg.mxu0
    %398 = vmatprep.subr.bf16.mxu0 %v355
    %399 = vmatpush1.bf16.msra.mxu0 %v352
    %400 = vmatprep.subr.bf16.mxu0 0
    %401 = vmatpush1.bf16.msra.mxu0 0
    %402 = vmatprep.subr.bf16.mxu0 0
    %403 = vmatpush1.bf16.msra.mxu0 0
    %404 = vmatprep.subr.bf16.mxu0 0
    %405 = vmatpush1.bf16.msra.mxu0 0
    %406 = vmatprep.subr.bf16.mxu0 0
    %407 = vmatpush1.bf16.msra.mxu0 0
    %408 = vmatprep.subr.bf16.mxu0 0
    %409 = vmatpush1.bf16.msra.mxu0 0
    %410 = vmatprep.subr.bf16.mxu0 0
    %411 = vmatpush1.bf16.msra.mxu0 0
    %412 = vmatprep.subr.bf16.mxu0 0
    %413 = vmatpush1.bf16.msra.mxu0 0
    %414 = vmatprep.subr.bf16.mxu0 0
    %415 = vmatpush1.bf16.msra.mxu0 0
    %416 = vmatprep.subr.bf16.mxu0 0
    %417 = vmatpush1.bf16.msra.mxu0 0
    %418 = vmatprep.subr.bf16.mxu0 0
    %419 = vmatpush1.bf16.msra.mxu0 0
    %420 = vmatprep.subr.bf16.mxu0 0
    %421 = vmatpush1.bf16.msra.mxu0 0
    %422 = vmatprep.subr.bf16.mxu0 0
    %423 = vmatpush1.bf16.msra.mxu0 0
    %424 = vmatprep.subr.bf16.mxu0 0
    %425 = vmatpush1.bf16.msra.mxu0 0
    %426 = vmatprep.subr.bf16.mxu0 0
    %427 = vmatpush1.bf16.msra.mxu0 0
    %428 = vmatprep.subr.bf16.mxu0 0
    %429 = vmatpush1.bf16.msra.mxu0 0
    %430 = vmatprep.mubr.bf16.mxu0 0
    %431 = vmatmul.mubr.bf16.gmra.mrb[0].mxu0 %v342
    %v432 = vpop.f32.mrb[0].mxu0
    %v433 = vadd.f32 0.0, %v432
    %v434 = vpop.f32.mrb[0].mxu0
    %v435 = vadd.f32 0.0, %v434
    %v436 = vpop.f32.mrb[0].mxu0
    %v437 = vpop.f32.mrb[0].mxu0
    %438 = vdwg.mxu0
    %v441 = vunpack.c.l.b16 %v59
    %v442 = vunpack.c.h.b16 %v59
    %v443 = vunpack.c.l.b16 %v60
    %v444 = vunpack.c.h.b16 %v60
    %v445 = vpack.c.b16 %v441, %v441
    %v446 = vpack.c.b16 %v442, %v442
    %v447 = vpack.c.b16 %v443, %v443
    %v448 = vpack.c.b16 %v444, %v444
    %vm449 = vcmask 64512
    %v451 = vsel %vm449, %v56, 0
    %vm453 = vcmask 1043456
    %v455 = vsel %vm453, %v445, 0
    %v458 = vsel %vm453, %v446, 0
    %v461 = vsel %vm453, %v447, 0
    %v464 = vsel %vm453, %v448, 0
    %466 = vmatprep.subr.bf16.mxu0 %v458
    %467 = vmatpush1.bf16.msra.mxu0 %v455
    %468 = vmatprep.subr.bf16.mxu0 0
    %469 = vmatpush1.bf16.msra.mxu0 0
    %470 = vmatprep.subr.bf16.mxu0 0
    %471 = vmatpush1.bf16.msra.mxu0 0
    %472 = vmatprep.subr.bf16.mxu0 0
    %473 = vmatpush1.bf16.msra.mxu0 0
    %474 = vmatprep.subr.bf16.mxu0 0
    %475 = vmatpush1.bf16.msra.mxu0 0
    %476 = vmatprep.subr.bf16.mxu0 0
    %477 = vmatpush1.bf16.msra.mxu0 0
    %478 = vmatprep.subr.bf16.mxu0 0
    %479 = vmatpush1.bf16.msra.mxu0 0
    %480 = vmatprep.subr.bf16.mxu0 0
    %481 = vmatpush1.bf16.msra.mxu0 0
    %482 = vmatprep.subr.bf16.mxu0 0
    %483 = vmatpush1.bf16.msra.mxu0 0
    %484 = vmatprep.subr.bf16.mxu0 0
    %485 = vmatpush1.bf16.msra.mxu0 0
    %486 = vmatprep.subr.bf16.mxu0 0
    %487 = vmatpush1.bf16.msra.mxu0 0
    %488 = vmatprep.subr.bf16.mxu0 0
    %489 = vmatpush1.bf16.msra.mxu0 0
    %490 = vmatprep.subr.bf16.mxu0 0
    %491 = vmatpush1.bf16.msra.mxu0 0
    %492 = vmatprep.subr.bf16.mxu0 0
    %493 = vmatpush1.bf16.msra.mxu0 0
    %494 = vmatprep.subr.bf16.mxu0 0
    %495 = vmatpush1.bf16.msra.mxu0 0
    %496 = vmatprep.subr.bf16.mxu0 0
    %497 = vmatpush1.bf16.msra.mxu0 0
    %498 = vmatprep.mubr.bf16.mxu0 0
    %499 = vmatmul.mubr.bf16.gmra.mrb[0].mxu0 %v451
    %v500 = vpop.f32.mrb[0].mxu0
    %v501 = vadd.f32 %v392, %v500
    %v502 = vpop.f32.mrb[0].mxu0
    %v503 = vadd.f32 %v394, %v502
    %v504 = vpop.f32.mrb[0].mxu0
    %v505 = vpop.f32.mrb[0].mxu0
    %506 = vdwg.mxu0
    %507 = vmatprep.subr.bf16.mxu0 %v464
    %508 = vmatpush1.bf16.msra.mxu0 %v461
    %509 = vmatprep.subr.bf16.mxu0 0
    %510 = vmatpush1.bf16.msra.mxu0 0
    %511 = vmatprep.subr.bf16.mxu0 0
    %512 = vmatpush1.bf16.msra.mxu0 0
    %513 = vmatprep.subr.bf16.mxu0 0
    %514 = vmatpush1.bf16.msra.mxu0 0
    %515 = vmatprep.subr.bf16.mxu0 0
    %516 = vmatpush1.bf16.msra.mxu0 0
    %517 = vmatprep.subr.bf16.mxu0 0
    %518 = vmatpush1.bf16.msra.mxu0 0
    %519 = vmatprep.subr.bf16.mxu0 0
    %520 = vmatpush1.bf16.msra.mxu0 0
    %521 = vmatprep.subr.bf16.mxu0 0
    %522 = vmatpush1.bf16.msra.mxu0 0
    %523 = vmatprep.subr.bf16.mxu0 0
    %524 = vmatpush1.bf16.msra.mxu0 0
    %525 = vmatprep.subr.bf16.mxu0 0
    %526 = vmatpush1.bf16.msra.mxu0 0
    %527 = vmatprep.subr.bf16.mxu0 0
    %528 = vmatpush1.bf16.msra.mxu0 0
    %529 = vmatprep.subr.bf16.mxu0 0
    %530 = vmatpush1.bf16.msra.mxu0 0
    %531 = vmatprep.subr.bf16.mxu0 0
    %532 = vmatpush1.bf16.msra.mxu0 0
    %533 = vmatprep.subr.bf16.mxu0 0
    %534 = vmatpush1.bf16.msra.mxu0 0
    %535 = vmatprep.subr.bf16.mxu0 0
    %536 = vmatpush1.bf16.msra.mxu0 0
    %537 = vmatprep.subr.bf16.mxu0 0
    %538 = vmatpush1.bf16.msra.mxu0 0
    %539 = vmatprep.mubr.bf16.mxu0 0
    %540 = vmatmul.mubr.bf16.gmra.mrb[0].mxu0 %v451
    %v541 = vpop.f32.mrb[0].mxu0
    %v542 = vadd.f32 %v433, %v541
    %v543 = vpop.f32.mrb[0].mxu0
    %v544 = vadd.f32 %v435, %v543
    %v545 = vpop.f32.mrb[0].mxu0
    %v546 = vpop.f32.mrb[0].mxu0
    %547 = vdwg.mxu0
    %v548 = vlaneseq
    %v549 = vshrl.u32 %v548, 7
    %v550 = vsub.s32 0, %v549
    %v551 = vrot.slane %v318, %v550
    %v552 = vlaneseq
    %v553 = vshrl.u32 %v552, 7
    %v554 = vsub.s32 0, %v553
    %v555 = vrot.slane %v319, %v554
    %v556 = vlaneseq
    %v557 = vshrl.u32 %v556, 7
    %v558 = vsub.s32 0, %v557
    %v559 = vrot.slane %v320, %v558
    %v560 = vlaneseq
    %v561 = vshrl.u32 %v560, 7
    %v562 = vsub.s32 0, %v561
    %v563 = vrot.slane %v321, %v562
    %v564 = vadd.f32 %v501, %v551
    %v565 = vadd.f32 %v503, %v555
    %v566 = vadd.f32 %v542, %v559
    %v567 = vadd.f32 %v544, %v563
    %v568 = vmax.f32 %v564, 0.0
    %v569 = vmax.f32 %v565, 0.0
    %v570 = vmax.f32 %v566, 0.0
    %v571 = vmax.f32 %v567, 0.0
    %v572 = vpack.c.bf16 %v568, %v568
    %v573 = vpack.c.bf16 %v569, %v569
    %v574 = vpack.c.bf16 %v570, %v570
    %v575 = vpack.c.bf16 %v571, %v571
    %v576 = vlaneseq
    %v577 = vshrl.u32 %v576, 7
    %v578 = vsub.s32 1, %v577
    %v579 = vrot.slane %v318, %v578
    %v580 = vlaneseq
    %v581 = vshrl.u32 %v580, 7
    %v582 = vsub.s32 1, %v581
    %v583 = vrot.slane %v319, %v582
    %v584 = vlaneseq
    %v585 = vshrl.u32 %v584, 7
    %v586 = vsub.s32 1, %v585
    %v587 = vrot.slane %v320, %v586
    %v588 = vlaneseq
    %v589 = vshrl.u32 %v588, 7
    %v590 = vsub.s32 1, %v589
    %v591 = vrot.slane %v321, %v590
    %v720 = vunpack.c.l.b16 %v62
    %v721 = vunpack.c.h.b16 %v62
    %v722 = vunpack.c.l.b16 %v63
    %v723 = vunpack.c.h.b16 %v63
    %v724 = vunpack.c.l.b16 %v64
    %v725 = vunpack.c.h.b16 %v64
    %v726 = vunpack.c.l.b16 %v65
    %v727 = vunpack.c.h.b16 %v65
    %v728 = vunpack.c.l.b16 %v66
    %v729 = vunpack.c.h.b16 %v66
    %v730 = vunpack.c.l.b16 %v67
    %v731 = vunpack.c.h.b16 %v67
    %v732 = vunpack.c.l.b16 %v68
    %v733 = vunpack.c.h.b16 %v68
    %v734 = vunpack.c.l.b16 %v69
    %v735 = vunpack.c.h.b16 %v69
    %v736 = vunpack.c.l.b16 %v70
    %v737 = vunpack.c.h.b16 %v70
    %v738 = vunpack.c.l.b16 %v71
    %v739 = vunpack.c.h.b16 %v71
    %v740 = vunpack.c.l.b16 %v72
    %v741 = vunpack.c.h.b16 %v72
    %v742 = vunpack.c.l.b16 %v73
    %v743 = vunpack.c.h.b16 %v73
    %v744 = vunpack.c.l.b16 %v74
    %v745 = vunpack.c.h.b16 %v74
    %v746 = vunpack.c.l.b16 %v75
    %v747 = vunpack.c.h.b16 %v75
    %v748 = vunpack.c.l.b16 %v76
    %v749 = vunpack.c.h.b16 %v76
    %v750 = vunpack.c.l.b16 %v77
    %v751 = vunpack.c.h.b16 %v77
    %v752 = vunpack.c.l.b16 %v78
    %v753 = vunpack.c.h.b16 %v78
    %v754 = vunpack.c.l.b16 %v79
    %v755 = vunpack.c.h.b16 %v79
    %v756 = vunpack.c.l.b16 %v80
    %v757 = vunpack.c.h.b16 %v80
    %v758 = vunpack.c.l.b16 %v81
    %v759 = vunpack.c.h.b16 %v81
    %v760 = vunpack.c.l.b16 %v82
    %v761 = vunpack.c.h.b16 %v82
    %v762 = vunpack.c.l.b16 %v83
    %v763 = vunpack.c.h.b16 %v83
    %v764 = vunpack.c.l.b16 %v84
    %v765 = vunpack.c.h.b16 %v84
    %v766 = vunpack.c.l.b16 %v85
    %v767 = vunpack.c.h.b16 %v85
    %v768 = vunpack.c.l.b16 %v86
    %v769 = vunpack.c.h.b16 %v86
    %v770 = vunpack.c.l.b16 %v87
    %v771 = vunpack.c.h.b16 %v87
    %v772 = vunpack.c.l.b16 %v88
    %v773 = vunpack.c.h.b16 %v88
    %v774 = vunpack.c.l.b16 %v89
    %v775 = vunpack.c.h.b16 %v89
    %v776 = vunpack.c.l.b16 %v90
    %v777 = vunpack.c.h.b16 %v90
    %v778 = vunpack.c.l.b16 %v91
    %v779 = vunpack.c.h.b16 %v91
    %v780 = vunpack.c.l.b16 %v92
    %v781 = vunpack.c.h.b16 %v92
    %v782 = vunpack.c.l.b16 %v93
    %v783 = vunpack.c.h.b16 %v93
    %v784 = vunpack.c.l.b16 %v94
    %v785 = vunpack.c.h.b16 %v94
    %v786 = vunpack.c.l.b16 %v95
    %v787 = vunpack.c.h.b16 %v95
    %v788 = vunpack.c.l.b16 %v96
    %v789 = vunpack.c.h.b16 %v96
    %v790 = vunpack.c.l.b16 %v97
    %v791 = vunpack.c.h.b16 %v97
    %v792 = vunpack.c.l.b16 %v98
    %v793 = vunpack.c.h.b16 %v98
    %v794 = vunpack.c.l.b16 %v99
    %v795 = vunpack.c.h.b16 %v99
    %v796 = vunpack.c.l.b16 %v100
    %v797 = vunpack.c.h.b16 %v100
    %v798 = vunpack.c.l.b16 %v101
    %v799 = vunpack.c.h.b16 %v101
    %v800 = vunpack.c.l.b16 %v102
    %v801 = vunpack.c.h.b16 %v102
    %v802 = vunpack.c.l.b16 %v103
    %v803 = vunpack.c.h.b16 %v103
    %v804 = vunpack.c.l.b16 %v104
    %v805 = vunpack.c.h.b16 %v104
    %v806 = vunpack.c.l.b16 %v105
    %v807 = vunpack.c.h.b16 %v105
    %v808 = vunpack.c.l.b16 %v106
    %v809 = vunpack.c.h.b16 %v106
    %v810 = vunpack.c.l.b16 %v107
    %v811 = vunpack.c.h.b16 %v107
    %v812 = vunpack.c.l.b16 %v108
    %v813 = vunpack.c.h.b16 %v108
    %v814 = vunpack.c.l.b16 %v109
    %v815 = vunpack.c.h.b16 %v109
    %v816 = vunpack.c.l.b16 %v110
    %v817 = vunpack.c.h.b16 %v110
    %v818 = vunpack.c.l.b16 %v111
    %v819 = vunpack.c.h.b16 %v111
    %v820 = vunpack.c.l.b16 %v112
    %v821 = vunpack.c.h.b16 %v112
    %v822 = vunpack.c.l.b16 %v113
    %v823 = vunpack.c.h.b16 %v113
    %v824 = vunpack.c.l.b16 %v114
    %v825 = vunpack.c.h.b16 %v114
    %v826 = vunpack.c.l.b16 %v115
    %v827 = vunpack.c.h.b16 %v115
    %v828 = vunpack.c.l.b16 %v116
    %v829 = vunpack.c.h.b16 %v116
    %v830 = vunpack.c.l.b16 %v117
    %v831 = vunpack.c.h.b16 %v117
    %v832 = vunpack.c.l.b16 %v118
    %v833 = vunpack.c.h.b16 %v118
    %v834 = vunpack.c.l.b16 %v119
    %v835 = vunpack.c.h.b16 %v119
    %v836 = vunpack.c.l.b16 %v120
    %v837 = vunpack.c.h.b16 %v120
    %v838 = vunpack.c.l.b16 %v121
    %v839 = vunpack.c.h.b16 %v121
    %v840 = vunpack.c.l.b16 %v122
    %v841 = vunpack.c.h.b16 %v122
    %v842 = vunpack.c.l.b16 %v123
    %v843 = vunpack.c.h.b16 %v123
    %v844 = vunpack.c.l.b16 %v124
    %v845 = vunpack.c.h.b16 %v124
    %v846 = vunpack.c.l.b16 %v125
    %v847 = vunpack.c.h.b16 %v125
    %v848 = vunpack.c.l.b16 %v126
    %v849 = vunpack.c.h.b16 %v126
    %v850 = vunpack.c.l.b16 %v127
    %v851 = vunpack.c.h.b16 %v127
    %v852 = vunpack.c.l.b16 %v128
    %v853 = vunpack.c.h.b16 %v128
    %v854 = vunpack.c.l.b16 %v129
    %v855 = vunpack.c.h.b16 %v129
    %v856 = vunpack.c.l.b16 %v130
    %v857 = vunpack.c.h.b16 %v130
    %v858 = vunpack.c.l.b16 %v131
    %v859 = vunpack.c.h.b16 %v131
    %v860 = vunpack.c.l.b16 %v132
    %v861 = vunpack.c.h.b16 %v132
    %v862 = vunpack.c.l.b16 %v133
    %v863 = vunpack.c.h.b16 %v133
    %v864 = vunpack.c.l.b16 %v134
    %v865 = vunpack.c.h.b16 %v134
    %v866 = vunpack.c.l.b16 %v135
    %v867 = vunpack.c.h.b16 %v135
    %v868 = vunpack.c.l.b16 %v136
    %v869 = vunpack.c.h.b16 %v136
    %v870 = vunpack.c.l.b16 %v137
    %v871 = vunpack.c.h.b16 %v137
    %v872 = vunpack.c.l.b16 %v138
    %v873 = vunpack.c.h.b16 %v138
    %v874 = vunpack.c.l.b16 %v139
    %v875 = vunpack.c.h.b16 %v139
    %v876 = vunpack.c.l.b16 %v140
    %v877 = vunpack.c.h.b16 %v140
    %v878 = vunpack.c.l.b16 %v141
    %v879 = vunpack.c.h.b16 %v141
    %v880 = vunpack.c.l.b16 %v142
    %v881 = vunpack.c.h.b16 %v142
    %v882 = vunpack.c.l.b16 %v143
    %v883 = vunpack.c.h.b16 %v143
    %v884 = vunpack.c.l.b16 %v144
    %v885 = vunpack.c.h.b16 %v144
    %v886 = vunpack.c.l.b16 %v145
    %v887 = vunpack.c.h.b16 %v145
    %v888 = vunpack.c.l.b16 %v146
    %v889 = vunpack.c.h.b16 %v146
    %v890 = vunpack.c.l.b16 %v147
    %v891 = vunpack.c.h.b16 %v147
    %v892 = vunpack.c.l.b16 %v148
    %v893 = vunpack.c.h.b16 %v148
    %v894 = vunpack.c.l.b16 %v149
    %v895 = vunpack.c.h.b16 %v149
    %v896 = vunpack.c.l.b16 %v150
    %v897 = vunpack.c.h.b16 %v150
    %v898 = vunpack.c.l.b16 %v151
    %v899 = vunpack.c.h.b16 %v151
    %v900 = vunpack.c.l.b16 %v152
    %v901 = vunpack.c.h.b16 %v152
    %v902 = vunpack.c.l.b16 %v153
    %v903 = vunpack.c.h.b16 %v153
    %v904 = vunpack.c.l.b16 %v154
    %v905 = vunpack.c.h.b16 %v154
    %v906 = vunpack.c.l.b16 %v155
    %v907 = vunpack.c.h.b16 %v155
    %v908 = vunpack.c.l.b16 %v156
    %v909 = vunpack.c.h.b16 %v156
    %v910 = vunpack.c.l.b16 %v157
    %v911 = vunpack.c.h.b16 %v157
    %v912 = vunpack.c.l.b16 %v158
    %v913 = vunpack.c.h.b16 %v158
    %v914 = vunpack.c.l.b16 %v159
    %v915 = vunpack.c.h.b16 %v159
    %v916 = vunpack.c.l.b16 %v160
    %v917 = vunpack.c.h.b16 %v160
    %v918 = vunpack.c.l.b16 %v161
    %v919 = vunpack.c.h.b16 %v161
    %v920 = vunpack.c.l.b16 %v162
    %v921 = vunpack.c.h.b16 %v162
    %v922 = vunpack.c.l.b16 %v163
    %v923 = vunpack.c.h.b16 %v163
    %v924 = vunpack.c.l.b16 %v164
    %v925 = vunpack.c.h.b16 %v164
    %v926 = vunpack.c.l.b16 %v165
    %v927 = vunpack.c.h.b16 %v165
    %v928 = vunpack.c.l.b16 %v166
    %v929 = vunpack.c.h.b16 %v166
    %v930 = vunpack.c.l.b16 %v167
    %v931 = vunpack.c.h.b16 %v167
    %v932 = vunpack.c.l.b16 %v168
    %v933 = vunpack.c.h.b16 %v168
    %v934 = vunpack.c.l.b16 %v169
    %v935 = vunpack.c.h.b16 %v169
    %v936 = vunpack.c.l.b16 %v170
    %v937 = vunpack.c.h.b16 %v170
    %v938 = vunpack.c.l.b16 %v171
    %v939 = vunpack.c.h.b16 %v171
    %v940 = vunpack.c.l.b16 %v172
    %v941 = vunpack.c.h.b16 %v172
    %v942 = vunpack.c.l.b16 %v173
    %v943 = vunpack.c.h.b16 %v173
    %v944 = vunpack.c.l.b16 %v174
    %v945 = vunpack.c.h.b16 %v174
    %v946 = vunpack.c.l.b16 %v175
    %v947 = vunpack.c.h.b16 %v175
    %v948 = vunpack.c.l.b16 %v176
    %v949 = vunpack.c.h.b16 %v176
    %v950 = vunpack.c.l.b16 %v177
    %v951 = vunpack.c.h.b16 %v177
    %v952 = vunpack.c.l.b16 %v178
    %v953 = vunpack.c.h.b16 %v178
    %v954 = vunpack.c.l.b16 %v179
    %v955 = vunpack.c.h.b16 %v179
    %v956 = vunpack.c.l.b16 %v180
    %v957 = vunpack.c.h.b16 %v180
    %v958 = vunpack.c.l.b16 %v181
    %v959 = vunpack.c.h.b16 %v181
    %v960 = vunpack.c.l.b16 %v182
    %v961 = vunpack.c.h.b16 %v182
    %v962 = vunpack.c.l.b16 %v183
    %v963 = vunpack.c.h.b16 %v183
    %v964 = vunpack.c.l.b16 %v184
    %v965 = vunpack.c.h.b16 %v184
    %v966 = vunpack.c.l.b16 %v185
    %v967 = vunpack.c.h.b16 %v185
    %v968 = vunpack.c.l.b16 %v186
    %v969 = vunpack.c.h.b16 %v186
    %v970 = vunpack.c.l.b16 %v187
    %v971 = vunpack.c.h.b16 %v187
    %v972 = vunpack.c.l.b16 %v188
    %v973 = vunpack.c.h.b16 %v188
    %v974 = vunpack.c.l.b16 %v189
    %v975 = vunpack.c.h.b16 %v189
    %v976 = vpack.c.b16 %v724, %v720
    %v977 = vpack.c.b16 %v725, %v721
    %v978 = vpack.c.b16 %v726, %v722
    %v979 = vpack.c.b16 %v727, %v723
    %v980 = vpack.c.b16 %v732, %v728
    %v981 = vpack.c.b16 %v733, %v729
    %v982 = vpack.c.b16 %v734, %v730
    %v983 = vpack.c.b16 %v735, %v731
    %v984 = vpack.c.b16 %v740, %v736
    %v985 = vpack.c.b16 %v741, %v737
    %v986 = vpack.c.b16 %v742, %v738
    %v987 = vpack.c.b16 %v743, %v739
    %v988 = vpack.c.b16 %v748, %v744
    %v989 = vpack.c.b16 %v749, %v745
    %v990 = vpack.c.b16 %v750, %v746
    %v991 = vpack.c.b16 %v751, %v747
    %v992 = vpack.c.b16 %v756, %v752
    %v993 = vpack.c.b16 %v757, %v753
    %v994 = vpack.c.b16 %v758, %v754
    %v995 = vpack.c.b16 %v759, %v755
    %v996 = vpack.c.b16 %v764, %v760
    %v997 = vpack.c.b16 %v765, %v761
    %v998 = vpack.c.b16 %v766, %v762
    %v999 = vpack.c.b16 %v767, %v763
    %v1000 = vpack.c.b16 %v772, %v768
    %v1001 = vpack.c.b16 %v773, %v769
    %v1002 = vpack.c.b16 %v774, %v770
    %v1003 = vpack.c.b16 %v775, %v771
    %v1004 = vpack.c.b16 %v780, %v776
    %v1005 = vpack.c.b16 %v781, %v777
    %v1006 = vpack.c.b16 %v782, %v778
    %v1007 = vpack.c.b16 %v783, %v779
    %v1008 = vpack.c.b16 %v788, %v784
    %v1009 = vpack.c.b16 %v789, %v785
    %v1010 = vpack.c.b16 %v790, %v786
    %v1011 = vpack.c.b16 %v791, %v787
    %v1012 = vpack.c.b16 %v796, %v792
    %v1013 = vpack.c.b16 %v797, %v793
    %v1014 = vpack.c.b16 %v798, %v794
    %v1015 = vpack.c.b16 %v799, %v795
    %v1016 = vpack.c.b16 %v804, %v800
    %v1017 = vpack.c.b16 %v805, %v801
    %v1018 = vpack.c.b16 %v806, %v802
    %v1019 = vpack.c.b16 %v807, %v803
    %v1020 = vpack.c.b16 %v812, %v808
    %v1021 = vpack.c.b16 %v813, %v809
    %v1022 = vpack.c.b16 %v814, %v810
    %v1023 = vpack.c.b16 %v815, %v811
    %v1024 = vpack.c.b16 %v820, %v816
    %v1025 = vpack.c.b16 %v821, %v817
    %v1026 = vpack.c.b16 %v822, %v818
    %v1027 = vpack.c.b16 %v823, %v819
    %v1028 = vpack.c.b16 %v828, %v824
    %v1029 = vpack.c.b16 %v829, %v825
    %v1030 = vpack.c.b16 %v830, %v826
    %v1031 = vpack.c.b16 %v831, %v827
    %v1032 = vpack.c.b16 %v836, %v832
    %v1033 = vpack.c.b16 %v837, %v833
    %v1034 = vpack.c.b16 %v838, %v834
    %v1035 = vpack.c.b16 %v839, %v835
    %v1036 = vpack.c.b16 %v844, %v840
    %v1037 = vpack.c.b16 %v845, %v841
    %v1038 = vpack.c.b16 %v846, %v842
    %v1039 = vpack.c.b16 %v847, %v843
    %v1040 = vpack.c.b16 %v852, %v848
    %v1041 = vpack.c.b16 %v853, %v849
    %v1042 = vpack.c.b16 %v854, %v850
    %v1043 = vpack.c.b16 %v855, %v851
    %v1044 = vpack.c.b16 %v860, %v856
    %v1045 = vpack.c.b16 %v861, %v857
    %v1046 = vpack.c.b16 %v862, %v858
    %v1047 = vpack.c.b16 %v863, %v859
    %v1048 = vpack.c.b16 %v868, %v864
    %v1049 = vpack.c.b16 %v869, %v865
    %v1050 = vpack.c.b16 %v870, %v866
    %v1051 = vpack.c.b16 %v871, %v867
    %v1052 = vpack.c.b16 %v876, %v872
    %v1053 = vpack.c.b16 %v877, %v873
    %v1054 = vpack.c.b16 %v878, %v874
    %v1055 = vpack.c.b16 %v879, %v875
    %v1056 = vpack.c.b16 %v884, %v880
    %v1057 = vpack.c.b16 %v885, %v881
    %v1058 = vpack.c.b16 %v886, %v882
    %v1059 = vpack.c.b16 %v887, %v883
    %v1060 = vpack.c.b16 %v892, %v888
    %v1061 = vpack.c.b16 %v893, %v889
    %v1062 = vpack.c.b16 %v894, %v890
    %v1063 = vpack.c.b16 %v895, %v891
    %v1064 = vpack.c.b16 %v900, %v896
    %v1065 = vpack.c.b16 %v901, %v897
    %v1066 = vpack.c.b16 %v902, %v898
    %v1067 = vpack.c.b16 %v903, %v899
    %v1068 = vpack.c.b16 %v908, %v904
    %v1069 = vpack.c.b16 %v909, %v905
    %v1070 = vpack.c.b16 %v910, %v906
    %v1071 = vpack.c.b16 %v911, %v907
    %v1072 = vpack.c.b16 %v916, %v912
    %v1073 = vpack.c.b16 %v917, %v913
    %v1074 = vpack.c.b16 %v918, %v914
    %v1075 = vpack.c.b16 %v919, %v915
    %v1076 = vpack.c.b16 %v924, %v920
    %v1077 = vpack.c.b16 %v925, %v921
    %v1078 = vpack.c.b16 %v926, %v922
    %v1079 = vpack.c.b16 %v927, %v923
    %v1080 = vpack.c.b16 %v932, %v928
    %v1081 = vpack.c.b16 %v933, %v929
    %v1082 = vpack.c.b16 %v934, %v930
    %v1083 = vpack.c.b16 %v935, %v931
    %v1084 = vpack.c.b16 %v940, %v936
    %v1085 = vpack.c.b16 %v941, %v937
    %v1086 = vpack.c.b16 %v942, %v938
    %v1087 = vpack.c.b16 %v943, %v939
    %v1088 = vpack.c.b16 %v948, %v944
    %v1089 = vpack.c.b16 %v949, %v945
    %v1090 = vpack.c.b16 %v950, %v946
    %v1091 = vpack.c.b16 %v951, %v947
    %v1092 = vpack.c.b16 %v956, %v952
    %v1093 = vpack.c.b16 %v957, %v953
    %v1094 = vpack.c.b16 %v958, %v954
    %v1095 = vpack.c.b16 %v959, %v955
    %v1096 = vpack.c.b16 %v964, %v960
    %v1097 = vpack.c.b16 %v965, %v961
    %v1098 = vpack.c.b16 %v966, %v962
    %v1099 = vpack.c.b16 %v967, %v963
    %v1100 = vpack.c.b16 %v972, %v968
    %v1101 = vpack.c.b16 %v973, %v969
    %v1102 = vpack.c.b16 %v974, %v970
    %v1103 = vpack.c.b16 %v975, %v971
    %1232 = vmatprep.subr.bf16.mxu0 %v977
    %1233 = vmatpush1.bf16.msra.mxu0 %v976
    %1234 = vmatprep.subr.bf16.mxu0 %v981
    %1235 = vmatpush1.bf16.msra.mxu0 %v980
    %1236 = vmatprep.subr.bf16.mxu0 %v985
    %1237 = vmatpush1.bf16.msra.mxu0 %v984
    %1238 = vmatprep.subr.bf16.mxu0 %v989
    %1239 = vmatpush1.bf16.msra.mxu0 %v988
    %1240 = vmatprep.subr.bf16.mxu0 %v993
    %1241 = vmatpush1.bf16.msra.mxu0 %v992
    %1242 = vmatprep.subr.bf16.mxu0 %v997
    %1243 = vmatpush1.bf16.msra.mxu0 %v996
    %1244 = vmatprep.subr.bf16.mxu0 %v1001
    %1245 = vmatpush1.bf16.msra.mxu0 %v1000
    %1246 = vmatprep.subr.bf16.mxu0 %v1005
    %1247 = vmatpush1.bf16.msra.mxu0 %v1004
    %1248 = vmatprep.subr.bf16.mxu0 %v1009
    %1249 = vmatpush1.bf16.msra.mxu0 %v1008
    %1250 = vmatprep.subr.bf16.mxu0 %v1013
    %1251 = vmatpush1.bf16.msra.mxu0 %v1012
    %1252 = vmatprep.subr.bf16.mxu0 %v1017
    %1253 = vmatpush1.bf16.msra.mxu0 %v1016
    %1254 = vmatprep.subr.bf16.mxu0 %v1021
    %1255 = vmatpush1.bf16.msra.mxu0 %v1020
    %1256 = vmatprep.subr.bf16.mxu0 %v1025
    %1257 = vmatpush1.bf16.msra.mxu0 %v1024
    %1258 = vmatprep.subr.bf16.mxu0 %v1029
    %1259 = vmatpush1.bf16.msra.mxu0 %v1028
    %1260 = vmatprep.subr.bf16.mxu0 %v1033
    %1261 = vmatpush1.bf16.msra.mxu0 %v1032
    %1262 = vmatprep.subr.bf16.mxu0 %v1037
    %1263 = vmatpush1.bf16.msra.mxu0 %v1036
    %1264 = vmatprep.mubr.bf16.mxu0 %v573
    %1265 = vmatmul.mubr.bf16.gmra.mrb[0].mxu0 %v572
    %v1266 = vpop.f32.mrb[0].mxu0
    %v1267 = vadd.f32 %v579, %v1266
    %v1268 = vpop.f32.mrb[0].mxu0
    %v1269 = vadd.f32 %v583, %v1268
    %v1270 = vpop.f32.mrb[0].mxu0
    %v1271 = vpop.f32.mrb[0].mxu0
    %1272 = vdwg.mxu0
    %1273 = vmatprep.subr.bf16.mxu0 %v1041
    %1274 = vmatpush1.bf16.msra.mxu0 %v1040
    %1275 = vmatprep.subr.bf16.mxu0 %v1045
    %1276 = vmatpush1.bf16.msra.mxu0 %v1044
    %1277 = vmatprep.subr.bf16.mxu0 %v1049
    %1278 = vmatpush1.bf16.msra.mxu0 %v1048
    %1279 = vmatprep.subr.bf16.mxu0 %v1053
    %1280 = vmatpush1.bf16.msra.mxu0 %v1052
    %1281 = vmatprep.subr.bf16.mxu0 %v1057
    %1282 = vmatpush1.bf16.msra.mxu0 %v1056
    %1283 = vmatprep.subr.bf16.mxu0 %v1061
    %1284 = vmatpush1.bf16.msra.mxu0 %v1060
    %1285 = vmatprep.subr.bf16.mxu0 %v1065
    %1286 = vmatpush1.bf16.msra.mxu0 %v1064
    %1287 = vmatprep.subr.bf16.mxu0 %v1069
    %1288 = vmatpush1.bf16.msra.mxu0 %v1068
    %1289 = vmatprep.subr.bf16.mxu0 %v1073
    %1290 = vmatpush1.bf16.msra.mxu0 %v1072
    %1291 = vmatprep.subr.bf16.mxu0 %v1077
    %1292 = vmatpush1.bf16.msra.mxu0 %v1076
    %1293 = vmatprep.subr.bf16.mxu0 %v1081
    %1294 = vmatpush1.bf16.msra.mxu0 %v1080
    %1295 = vmatprep.subr.bf16.mxu0 %v1085
    %1296 = vmatpush1.bf16.msra.mxu0 %v1084
    %1297 = vmatprep.subr.bf16.mxu0 %v1089
    %1298 = vmatpush1.bf16.msra.mxu0 %v1088
    %1299 = vmatprep.subr.bf16.mxu0 %v1093
    %1300 = vmatpush1.bf16.msra.mxu0 %v1092
    %1301 = vmatprep.subr.bf16.mxu0 %v1097
    %1302 = vmatpush1.bf16.msra.mxu0 %v1096
    %1303 = vmatprep.subr.bf16.mxu0 %v1101
    %1304 = vmatpush1.bf16.msra.mxu0 %v1100
    %1305 = vmatprep.mubr.bf16.mxu0 %v575
    %1306 = vmatmul.mubr.bf16.gmra.mrb[0].mxu0 %v574
    %v1307 = vpop.f32.mrb[0].mxu0
    %v1308 = vadd.f32 %v1267, %v1307
    %v1309 = vpop.f32.mrb[0].mxu0
    %v1310 = vadd.f32 %v1269, %v1309
    %v1311 = vpop.f32.mrb[0].mxu0
    %v1312 = vpop.f32.mrb[0].mxu0
    %1313 = vdwg.mxu0
    %1314 = vmatprep.subr.bf16.mxu0 %v979
    %1315 = vmatpush1.bf16.msra.mxu0 %v978
    %1316 = vmatprep.subr.bf16.mxu0 %v983
    %1317 = vmatpush1.bf16.msra.mxu0 %v982
    %1318 = vmatprep.subr.bf16.mxu0 %v987
    %1319 = vmatpush1.bf16.msra.mxu0 %v986
    %1320 = vmatprep.subr.bf16.mxu0 %v991
    %1321 = vmatpush1.bf16.msra.mxu0 %v990
    %1322 = vmatprep.subr.bf16.mxu0 %v995
    %1323 = vmatpush1.bf16.msra.mxu0 %v994
    %1324 = vmatprep.subr.bf16.mxu0 %v999
    %1325 = vmatpush1.bf16.msra.mxu0 %v998
    %1326 = vmatprep.subr.bf16.mxu0 %v1003
    %1327 = vmatpush1.bf16.msra.mxu0 %v1002
    %1328 = vmatprep.subr.bf16.mxu0 %v1007
    %1329 = vmatpush1.bf16.msra.mxu0 %v1006
    %1330 = vmatprep.subr.bf16.mxu0 %v1011
    %1331 = vmatpush1.bf16.msra.mxu0 %v1010
    %1332 = vmatprep.subr.bf16.mxu0 %v1015
    %1333 = vmatpush1.bf16.msra.mxu0 %v1014
    %1334 = vmatprep.subr.bf16.mxu0 %v1019
    %1335 = vmatpush1.bf16.msra.mxu0 %v1018
    %1336 = vmatprep.subr.bf16.mxu0 %v1023
    %1337 = vmatpush1.bf16.msra.mxu0 %v1022
    %1338 = vmatprep.subr.bf16.mxu0 %v1027
    %1339 = vmatpush1.bf16.msra.mxu0 %v1026
    %1340 = vmatprep.subr.bf16.mxu0 %v1031
    %1341 = vmatpush1.bf16.msra.mxu0 %v1030
    %1342 = vmatprep.subr.bf16.mxu0 %v1035
    %1343 = vmatpush1.bf16.msra.mxu0 %v1034
    %1344 = vmatprep.subr.bf16.mxu0 %v1039
    %1345 = vmatpush1.bf16.msra.mxu0 %v1038
    %1346 = vmatprep.mubr.bf16.mxu0 %v573
    %1347 = vmatmul.mubr.bf16.gmra.mrb[0].mxu0 %v572
    %v1348 = vpop.f32.mrb[0].mxu0
    %v1349 = vadd.f32 %v587, %v1348
    %v1350 = vpop.f32.mrb[0].mxu0
    %v1351 = vadd.f32 %v591, %v1350
    %v1352 = vpop.f32.mrb[0].mxu0
    %v1353 = vpop.f32.mrb[0].mxu0
    %1354 = vdwg.mxu0
    %1355 = vmatprep.subr.bf16.mxu0 %v1043
    %1356 = vmatpush1.bf16.msra.mxu0 %v1042
    %1357 = vmatprep.subr.bf16.mxu0 %v1047
    %1358 = vmatpush1.bf16.msra.mxu0 %v1046
    %1359 = vmatprep.subr.bf16.mxu0 %v1051
    %1360 = vmatpush1.bf16.msra.mxu0 %v1050
    %1361 = vmatprep.subr.bf16.mxu0 %v1055
    %1362 = vmatpush1.bf16.msra.mxu0 %v1054
    %1363 = vmatprep.subr.bf16.mxu0 %v1059
    %1364 = vmatpush1.bf16.msra.mxu0 %v1058
    %1365 = vmatprep.subr.bf16.mxu0 %v1063
    %1366 = vmatpush1.bf16.msra.mxu0 %v1062
    %1367 = vmatprep.subr.bf16.mxu0 %v1067
    %1368 = vmatpush1.bf16.msra.mxu0 %v1066
    %1369 = vmatprep.subr.bf16.mxu0 %v1071
    %1370 = vmatpush1.bf16.msra.mxu0 %v1070
    %1371 = vmatprep.subr.bf16.mxu0 %v1075
    %1372 = vmatpush1.bf16.msra.mxu0 %v1074
    %1373 = vmatprep.subr.bf16.mxu0 %v1079
    %1374 = vmatpush1.bf16.msra.mxu0 %v1078
    %1375 = vmatprep.subr.bf16.mxu0 %v1083
    %1376 = vmatpush1.bf16.msra.mxu0 %v1082
    %1377 = vmatprep.subr.bf16.mxu0 %v1087
    %1378 = vmatpush1.bf16.msra.mxu0 %v1086
    %1379 = vmatprep.subr.bf16.mxu0 %v1091
    %1380 = vmatpush1.bf16.msra.mxu0 %v1090
    %1381 = vmatprep.subr.bf16.mxu0 %v1095
    %1382 = vmatpush1.bf16.msra.mxu0 %v1094
    %1383 = vmatprep.subr.bf16.mxu0 %v1099
    %1384 = vmatpush1.bf16.msra.mxu0 %v1098
    %1385 = vmatprep.subr.bf16.mxu0 %v1103
    %1386 = vmatpush1.bf16.msra.mxu0 %v1102
    %1387 = vmatprep.mubr.bf16.mxu0 %v575
    %1388 = vmatmul.mubr.bf16.gmra.mrb[0].mxu0 %v574
    %v1389 = vpop.f32.mrb[0].mxu0
    %v1390 = vadd.f32 %v1349, %v1389
    %v1391 = vpop.f32.mrb[0].mxu0
    %v1392 = vadd.f32 %v1351, %v1391
    %v1393 = vpop.f32.mrb[0].mxu0
    %v1394 = vpop.f32.mrb[0].mxu0
    %1395 = vdwg.mxu0
    %v1396 = vmax.f32 %v1308, 0.0
    %v1397 = vmax.f32 %v1310, 0.0
    %v1398 = vmax.f32 %v1390, 0.0
    %v1399 = vmax.f32 %v1392, 0.0
    %v1400 = vpack.c.bf16 %v1396, %v1396
    %v1401 = vpack.c.bf16 %v1397, %v1397
    %v1402 = vpack.c.bf16 %v1398, %v1398
    %v1403 = vpack.c.bf16 %v1399, %v1399
    %v1404 = vlaneseq
    %v1405 = vshrl.u32 %v1404, 7
    %v1406 = vsub.s32 2, %v1405
    %v1407 = vrot.slane %v318, %v1406
    %v1408 = vlaneseq
    %v1409 = vshrl.u32 %v1408, 7
    %v1410 = vsub.s32 2, %v1409
    %v1411 = vrot.slane %v319, %v1410
    %v1412 = vlaneseq
    %v1413 = vshrl.u32 %v1412, 7
    %v1414 = vsub.s32 2, %v1413
    %v1415 = vrot.slane %v320, %v1414
    %v1416 = vlaneseq
    %v1417 = vshrl.u32 %v1416, 7
    %v1418 = vsub.s32 2, %v1417
    %v1419 = vrot.slane %v321, %v1418
    %v1548 = vunpack.c.l.b16 %v190
    %v1549 = vunpack.c.h.b16 %v190
    %v1550 = vunpack.c.l.b16 %v191
    %v1551 = vunpack.c.h.b16 %v191
    %v1552 = vunpack.c.l.b16 %v192
    %v1553 = vunpack.c.h.b16 %v192
    %v1554 = vunpack.c.l.b16 %v193
    %v1555 = vunpack.c.h.b16 %v193
    %v1556 = vunpack.c.l.b16 %v194
    %v1557 = vunpack.c.h.b16 %v194
    %v1558 = vunpack.c.l.b16 %v195
    %v1559 = vunpack.c.h.b16 %v195
    %v1560 = vunpack.c.l.b16 %v196
    %v1561 = vunpack.c.h.b16 %v196
    %v1562 = vunpack.c.l.b16 %v197
    %v1563 = vunpack.c.h.b16 %v197
    %v1564 = vunpack.c.l.b16 %v198
    %v1565 = vunpack.c.h.b16 %v198
    %v1566 = vunpack.c.l.b16 %v199
    %v1567 = vunpack.c.h.b16 %v199
    %v1568 = vunpack.c.l.b16 %v200
    %v1569 = vunpack.c.h.b16 %v200
    %v1570 = vunpack.c.l.b16 %v201
    %v1571 = vunpack.c.h.b16 %v201
    %v1572 = vunpack.c.l.b16 %v202
    %v1573 = vunpack.c.h.b16 %v202
    %v1574 = vunpack.c.l.b16 %v203
    %v1575 = vunpack.c.h.b16 %v203
    %v1576 = vunpack.c.l.b16 %v204
    %v1577 = vunpack.c.h.b16 %v204
    %v1578 = vunpack.c.l.b16 %v205
    %v1579 = vunpack.c.h.b16 %v205
    %v1580 = vunpack.c.l.b16 %v206
    %v1581 = vunpack.c.h.b16 %v206
    %v1582 = vunpack.c.l.b16 %v207
    %v1583 = vunpack.c.h.b16 %v207
    %v1584 = vunpack.c.l.b16 %v208
    %v1585 = vunpack.c.h.b16 %v208
    %v1586 = vunpack.c.l.b16 %v209
    %v1587 = vunpack.c.h.b16 %v209
    %v1588 = vunpack.c.l.b16 %v210
    %v1589 = vunpack.c.h.b16 %v210
    %v1590 = vunpack.c.l.b16 %v211
    %v1591 = vunpack.c.h.b16 %v211
    %v1592 = vunpack.c.l.b16 %v212
    %v1593 = vunpack.c.h.b16 %v212
    %v1594 = vunpack.c.l.b16 %v213
    %v1595 = vunpack.c.h.b16 %v213
    %v1596 = vunpack.c.l.b16 %v214
    %v1597 = vunpack.c.h.b16 %v214
    %v1598 = vunpack.c.l.b16 %v215
    %v1599 = vunpack.c.h.b16 %v215
    %v1600 = vunpack.c.l.b16 %v216
    %v1601 = vunpack.c.h.b16 %v216
    %v1602 = vunpack.c.l.b16 %v217
    %v1603 = vunpack.c.h.b16 %v217
    %v1604 = vunpack.c.l.b16 %v218
    %v1605 = vunpack.c.h.b16 %v218
    %v1606 = vunpack.c.l.b16 %v219
    %v1607 = vunpack.c.h.b16 %v219
    %v1608 = vunpack.c.l.b16 %v220
    %v1609 = vunpack.c.h.b16 %v220
    %v1610 = vunpack.c.l.b16 %v221
    %v1611 = vunpack.c.h.b16 %v221
    %v1612 = vunpack.c.l.b16 %v222
    %v1613 = vunpack.c.h.b16 %v222
    %v1614 = vunpack.c.l.b16 %v223
    %v1615 = vunpack.c.h.b16 %v223
    %v1616 = vunpack.c.l.b16 %v224
    %v1617 = vunpack.c.h.b16 %v224
    %v1618 = vunpack.c.l.b16 %v225
    %v1619 = vunpack.c.h.b16 %v225
    %v1620 = vunpack.c.l.b16 %v226
    %v1621 = vunpack.c.h.b16 %v226
    %v1622 = vunpack.c.l.b16 %v227
    %v1623 = vunpack.c.h.b16 %v227
    %v1624 = vunpack.c.l.b16 %v228
    %v1625 = vunpack.c.h.b16 %v228
    %v1626 = vunpack.c.l.b16 %v229
    %v1627 = vunpack.c.h.b16 %v229
    %v1628 = vunpack.c.l.b16 %v230
    %v1629 = vunpack.c.h.b16 %v230
    %v1630 = vunpack.c.l.b16 %v231
    %v1631 = vunpack.c.h.b16 %v231
    %v1632 = vunpack.c.l.b16 %v232
    %v1633 = vunpack.c.h.b16 %v232
    %v1634 = vunpack.c.l.b16 %v233
    %v1635 = vunpack.c.h.b16 %v233
    %v1636 = vunpack.c.l.b16 %v234
    %v1637 = vunpack.c.h.b16 %v234
    %v1638 = vunpack.c.l.b16 %v235
    %v1639 = vunpack.c.h.b16 %v235
    %v1640 = vunpack.c.l.b16 %v236
    %v1641 = vunpack.c.h.b16 %v236
    %v1642 = vunpack.c.l.b16 %v237
    %v1643 = vunpack.c.h.b16 %v237
    %v1644 = vunpack.c.l.b16 %v238
    %v1645 = vunpack.c.h.b16 %v238
    %v1646 = vunpack.c.l.b16 %v239
    %v1647 = vunpack.c.h.b16 %v239
    %v1648 = vunpack.c.l.b16 %v240
    %v1649 = vunpack.c.h.b16 %v240
    %v1650 = vunpack.c.l.b16 %v241
    %v1651 = vunpack.c.h.b16 %v241
    %v1652 = vunpack.c.l.b16 %v242
    %v1653 = vunpack.c.h.b16 %v242
    %v1654 = vunpack.c.l.b16 %v243
    %v1655 = vunpack.c.h.b16 %v243
    %v1656 = vunpack.c.l.b16 %v244
    %v1657 = vunpack.c.h.b16 %v244
    %v1658 = vunpack.c.l.b16 %v245
    %v1659 = vunpack.c.h.b16 %v245
    %v1660 = vunpack.c.l.b16 %v246
    %v1661 = vunpack.c.h.b16 %v246
    %v1662 = vunpack.c.l.b16 %v247
    %v1663 = vunpack.c.h.b16 %v247
    %v1664 = vunpack.c.l.b16 %v248
    %v1665 = vunpack.c.h.b16 %v248
    %v1666 = vunpack.c.l.b16 %v249
    %v1667 = vunpack.c.h.b16 %v249
    %v1668 = vunpack.c.l.b16 %v250
    %v1669 = vunpack.c.h.b16 %v250
    %v1670 = vunpack.c.l.b16 %v251
    %v1671 = vunpack.c.h.b16 %v251
    %v1672 = vunpack.c.l.b16 %v252
    %v1673 = vunpack.c.h.b16 %v252
    %v1674 = vunpack.c.l.b16 %v253
    %v1675 = vunpack.c.h.b16 %v253
    %v1676 = vunpack.c.l.b16 %v254
    %v1677 = vunpack.c.h.b16 %v254
    %v1678 = vunpack.c.l.b16 %v255
    %v1679 = vunpack.c.h.b16 %v255
    %v1680 = vunpack.c.l.b16 %v256
    %v1681 = vunpack.c.h.b16 %v256
    %v1682 = vunpack.c.l.b16 %v257
    %v1683 = vunpack.c.h.b16 %v257
    %v1684 = vunpack.c.l.b16 %v258
    %v1685 = vunpack.c.h.b16 %v258
    %v1686 = vunpack.c.l.b16 %v259
    %v1687 = vunpack.c.h.b16 %v259
    %v1688 = vunpack.c.l.b16 %v260
    %v1689 = vunpack.c.h.b16 %v260
    %v1690 = vunpack.c.l.b16 %v261
    %v1691 = vunpack.c.h.b16 %v261
    %v1692 = vunpack.c.l.b16 %v262
    %v1693 = vunpack.c.h.b16 %v262
    %v1694 = vunpack.c.l.b16 %v263
    %v1695 = vunpack.c.h.b16 %v263
    %v1696 = vunpack.c.l.b16 %v264
    %v1697 = vunpack.c.h.b16 %v264
    %v1698 = vunpack.c.l.b16 %v265
    %v1699 = vunpack.c.h.b16 %v265
    %v1700 = vunpack.c.l.b16 %v266
    %v1701 = vunpack.c.h.b16 %v266
    %v1702 = vunpack.c.l.b16 %v267
    %v1703 = vunpack.c.h.b16 %v267
    %v1704 = vunpack.c.l.b16 %v268
    %v1705 = vunpack.c.h.b16 %v268
    %v1706 = vunpack.c.l.b16 %v269
    %v1707 = vunpack.c.h.b16 %v269
    %v1708 = vunpack.c.l.b16 %v270
    %v1709 = vunpack.c.h.b16 %v270
    %v1710 = vunpack.c.l.b16 %v271
    %v1711 = vunpack.c.h.b16 %v271
    %v1712 = vunpack.c.l.b16 %v272
    %v1713 = vunpack.c.h.b16 %v272
    %v1714 = vunpack.c.l.b16 %v273
    %v1715 = vunpack.c.h.b16 %v273
    %v1716 = vunpack.c.l.b16 %v274
    %v1717 = vunpack.c.h.b16 %v274
    %v1718 = vunpack.c.l.b16 %v275
    %v1719 = vunpack.c.h.b16 %v275
    %v1720 = vunpack.c.l.b16 %v276
    %v1721 = vunpack.c.h.b16 %v276
    %v1722 = vunpack.c.l.b16 %v277
    %v1723 = vunpack.c.h.b16 %v277
    %v1724 = vunpack.c.l.b16 %v278
    %v1725 = vunpack.c.h.b16 %v278
    %v1726 = vunpack.c.l.b16 %v279
    %v1727 = vunpack.c.h.b16 %v279
    %v1728 = vunpack.c.l.b16 %v280
    %v1729 = vunpack.c.h.b16 %v280
    %v1730 = vunpack.c.l.b16 %v281
    %v1731 = vunpack.c.h.b16 %v281
    %v1732 = vunpack.c.l.b16 %v282
    %v1733 = vunpack.c.h.b16 %v282
    %v1734 = vunpack.c.l.b16 %v283
    %v1735 = vunpack.c.h.b16 %v283
    %v1736 = vunpack.c.l.b16 %v284
    %v1737 = vunpack.c.h.b16 %v284
    %v1738 = vunpack.c.l.b16 %v285
    %v1739 = vunpack.c.h.b16 %v285
    %v1740 = vunpack.c.l.b16 %v286
    %v1741 = vunpack.c.h.b16 %v286
    %v1742 = vunpack.c.l.b16 %v287
    %v1743 = vunpack.c.h.b16 %v287
    %v1744 = vunpack.c.l.b16 %v288
    %v1745 = vunpack.c.h.b16 %v288
    %v1746 = vunpack.c.l.b16 %v289
    %v1747 = vunpack.c.h.b16 %v289
    %v1748 = vunpack.c.l.b16 %v290
    %v1749 = vunpack.c.h.b16 %v290
    %v1750 = vunpack.c.l.b16 %v291
    %v1751 = vunpack.c.h.b16 %v291
    %v1752 = vunpack.c.l.b16 %v292
    %v1753 = vunpack.c.h.b16 %v292
    %v1754 = vunpack.c.l.b16 %v293
    %v1755 = vunpack.c.h.b16 %v293
    %v1756 = vunpack.c.l.b16 %v294
    %v1757 = vunpack.c.h.b16 %v294
    %v1758 = vunpack.c.l.b16 %v295
    %v1759 = vunpack.c.h.b16 %v295
    %v1760 = vunpack.c.l.b16 %v296
    %v1761 = vunpack.c.h.b16 %v296
    %v1762 = vunpack.c.l.b16 %v297
    %v1763 = vunpack.c.h.b16 %v297
    %v1764 = vunpack.c.l.b16 %v298
    %v1765 = vunpack.c.h.b16 %v298
    %v1766 = vunpack.c.l.b16 %v299
    %v1767 = vunpack.c.h.b16 %v299
    %v1768 = vunpack.c.l.b16 %v300
    %v1769 = vunpack.c.h.b16 %v300
    %v1770 = vunpack.c.l.b16 %v301
    %v1771 = vunpack.c.h.b16 %v301
    %v1772 = vunpack.c.l.b16 %v302
    %v1773 = vunpack.c.h.b16 %v302
    %v1774 = vunpack.c.l.b16 %v303
    %v1775 = vunpack.c.h.b16 %v303
    %v1776 = vunpack.c.l.b16 %v304
    %v1777 = vunpack.c.h.b16 %v304
    %v1778 = vunpack.c.l.b16 %v305
    %v1779 = vunpack.c.h.b16 %v305
    %v1780 = vunpack.c.l.b16 %v306
    %v1781 = vunpack.c.h.b16 %v306
    %v1782 = vunpack.c.l.b16 %v307
    %v1783 = vunpack.c.h.b16 %v307
    %v1784 = vunpack.c.l.b16 %v308
    %v1785 = vunpack.c.h.b16 %v308
    %v1786 = vunpack.c.l.b16 %v309
    %v1787 = vunpack.c.h.b16 %v309
    %v1788 = vunpack.c.l.b16 %v310
    %v1789 = vunpack.c.h.b16 %v310
    %v1790 = vunpack.c.l.b16 %v311
    %v1791 = vunpack.c.h.b16 %v311
    %v1792 = vunpack.c.l.b16 %v312
    %v1793 = vunpack.c.h.b16 %v312
    %v1794 = vunpack.c.l.b16 %v313
    %v1795 = vunpack.c.h.b16 %v313
    %v1796 = vunpack.c.l.b16 %v314
    %v1797 = vunpack.c.h.b16 %v314
    %v1798 = vunpack.c.l.b16 %v315
    %v1799 = vunpack.c.h.b16 %v315
    %v1800 = vunpack.c.l.b16 %v316
    %v1801 = vunpack.c.h.b16 %v316
    %v1802 = vunpack.c.l.b16 %v317
    %v1803 = vunpack.c.h.b16 %v317
    %v1804 = vpack.c.b16 %v1552, %v1548
    %v1805 = vpack.c.b16 %v1553, %v1549
    %v1806 = vpack.c.b16 %v1554, %v1550
    %v1807 = vpack.c.b16 %v1555, %v1551
    %v1808 = vpack.c.b16 %v1560, %v1556
    %v1809 = vpack.c.b16 %v1561, %v1557
    %v1810 = vpack.c.b16 %v1562, %v1558
    %v1811 = vpack.c.b16 %v1563, %v1559
    %v1812 = vpack.c.b16 %v1568, %v1564
    %v1813 = vpack.c.b16 %v1569, %v1565
    %v1814 = vpack.c.b16 %v1570, %v1566
    %v1815 = vpack.c.b16 %v1571, %v1567
    %v1816 = vpack.c.b16 %v1576, %v1572
    %v1817 = vpack.c.b16 %v1577, %v1573
    %v1818 = vpack.c.b16 %v1578, %v1574
    %v1819 = vpack.c.b16 %v1579, %v1575
    %v1820 = vpack.c.b16 %v1584, %v1580
    %v1821 = vpack.c.b16 %v1585, %v1581
    %v1822 = vpack.c.b16 %v1586, %v1582
    %v1823 = vpack.c.b16 %v1587, %v1583
    %v1824 = vpack.c.b16 %v1592, %v1588
    %v1825 = vpack.c.b16 %v1593, %v1589
    %v1826 = vpack.c.b16 %v1594, %v1590
    %v1827 = vpack.c.b16 %v1595, %v1591
    %v1828 = vpack.c.b16 %v1600, %v1596
    %v1829 = vpack.c.b16 %v1601, %v1597
    %v1830 = vpack.c.b16 %v1602, %v1598
    %v1831 = vpack.c.b16 %v1603, %v1599
    %v1832 = vpack.c.b16 %v1608, %v1604
    %v1833 = vpack.c.b16 %v1609, %v1605
    %v1834 = vpack.c.b16 %v1610, %v1606
    %v1835 = vpack.c.b16 %v1611, %v1607
    %v1836 = vpack.c.b16 %v1616, %v1612
    %v1837 = vpack.c.b16 %v1617, %v1613
    %v1838 = vpack.c.b16 %v1618, %v1614
    %v1839 = vpack.c.b16 %v1619, %v1615
    %v1840 = vpack.c.b16 %v1624, %v1620
    %v1841 = vpack.c.b16 %v1625, %v1621
    %v1842 = vpack.c.b16 %v1626, %v1622
    %v1843 = vpack.c.b16 %v1627, %v1623
    %v1844 = vpack.c.b16 %v1632, %v1628
    %v1845 = vpack.c.b16 %v1633, %v1629
    %v1846 = vpack.c.b16 %v1634, %v1630
    %v1847 = vpack.c.b16 %v1635, %v1631
    %v1848 = vpack.c.b16 %v1640, %v1636
    %v1849 = vpack.c.b16 %v1641, %v1637
    %v1850 = vpack.c.b16 %v1642, %v1638
    %v1851 = vpack.c.b16 %v1643, %v1639
    %v1852 = vpack.c.b16 %v1648, %v1644
    %v1853 = vpack.c.b16 %v1649, %v1645
    %v1854 = vpack.c.b16 %v1650, %v1646
    %v1855 = vpack.c.b16 %v1651, %v1647
    %v1856 = vpack.c.b16 %v1656, %v1652
    %v1857 = vpack.c.b16 %v1657, %v1653
    %v1858 = vpack.c.b16 %v1658, %v1654
    %v1859 = vpack.c.b16 %v1659, %v1655
    %v1860 = vpack.c.b16 %v1664, %v1660
    %v1861 = vpack.c.b16 %v1665, %v1661
    %v1862 = vpack.c.b16 %v1666, %v1662
    %v1863 = vpack.c.b16 %v1667, %v1663
    %v1864 = vpack.c.b16 %v1672, %v1668
    %v1865 = vpack.c.b16 %v1673, %v1669
    %v1866 = vpack.c.b16 %v1674, %v1670
    %v1867 = vpack.c.b16 %v1675, %v1671
    %v1868 = vpack.c.b16 %v1680, %v1676
    %v1869 = vpack.c.b16 %v1681, %v1677
    %v1870 = vpack.c.b16 %v1682, %v1678
    %v1871 = vpack.c.b16 %v1683, %v1679
    %v1872 = vpack.c.b16 %v1688, %v1684
    %v1873 = vpack.c.b16 %v1689, %v1685
    %v1874 = vpack.c.b16 %v1690, %v1686
    %v1875 = vpack.c.b16 %v1691, %v1687
    %v1876 = vpack.c.b16 %v1696, %v1692
    %v1877 = vpack.c.b16 %v1697, %v1693
    %v1878 = vpack.c.b16 %v1698, %v1694
    %v1879 = vpack.c.b16 %v1699, %v1695
    %v1880 = vpack.c.b16 %v1704, %v1700
    %v1881 = vpack.c.b16 %v1705, %v1701
    %v1882 = vpack.c.b16 %v1706, %v1702
    %v1883 = vpack.c.b16 %v1707, %v1703
    %v1884 = vpack.c.b16 %v1712, %v1708
    %v1885 = vpack.c.b16 %v1713, %v1709
    %v1886 = vpack.c.b16 %v1714, %v1710
    %v1887 = vpack.c.b16 %v1715, %v1711
    %v1888 = vpack.c.b16 %v1720, %v1716
    %v1889 = vpack.c.b16 %v1721, %v1717
    %v1890 = vpack.c.b16 %v1722, %v1718
    %v1891 = vpack.c.b16 %v1723, %v1719
    %v1892 = vpack.c.b16 %v1728, %v1724
    %v1893 = vpack.c.b16 %v1729, %v1725
    %v1894 = vpack.c.b16 %v1730, %v1726
    %v1895 = vpack.c.b16 %v1731, %v1727
    %v1896 = vpack.c.b16 %v1736, %v1732
    %v1897 = vpack.c.b16 %v1737, %v1733
    %v1898 = vpack.c.b16 %v1738, %v1734
    %v1899 = vpack.c.b16 %v1739, %v1735
    %v1900 = vpack.c.b16 %v1744, %v1740
    %v1901 = vpack.c.b16 %v1745, %v1741
    %v1902 = vpack.c.b16 %v1746, %v1742
    %v1903 = vpack.c.b16 %v1747, %v1743
    %v1904 = vpack.c.b16 %v1752, %v1748
    %v1905 = vpack.c.b16 %v1753, %v1749
    %v1906 = vpack.c.b16 %v1754, %v1750
    %v1907 = vpack.c.b16 %v1755, %v1751
    %v1908 = vpack.c.b16 %v1760, %v1756
    %v1909 = vpack.c.b16 %v1761, %v1757
    %v1910 = vpack.c.b16 %v1762, %v1758
    %v1911 = vpack.c.b16 %v1763, %v1759
    %v1912 = vpack.c.b16 %v1768, %v1764
    %v1913 = vpack.c.b16 %v1769, %v1765
    %v1914 = vpack.c.b16 %v1770, %v1766
    %v1915 = vpack.c.b16 %v1771, %v1767
    %v1916 = vpack.c.b16 %v1776, %v1772
    %v1917 = vpack.c.b16 %v1777, %v1773
    %v1918 = vpack.c.b16 %v1778, %v1774
    %v1919 = vpack.c.b16 %v1779, %v1775
    %v1920 = vpack.c.b16 %v1784, %v1780
    %v1921 = vpack.c.b16 %v1785, %v1781
    %v1922 = vpack.c.b16 %v1786, %v1782
    %v1923 = vpack.c.b16 %v1787, %v1783
    %v1924 = vpack.c.b16 %v1792, %v1788
    %v1925 = vpack.c.b16 %v1793, %v1789
    %v1926 = vpack.c.b16 %v1794, %v1790
    %v1927 = vpack.c.b16 %v1795, %v1791
    %v1928 = vpack.c.b16 %v1800, %v1796
    %v1929 = vpack.c.b16 %v1801, %v1797
    %v1930 = vpack.c.b16 %v1802, %v1798
    %v1931 = vpack.c.b16 %v1803, %v1799
    %2060 = vmatprep.subr.bf16.mxu0 %v1805
    %2061 = vmatpush1.bf16.msra.mxu0 %v1804
    %2062 = vmatprep.subr.bf16.mxu0 %v1809
    %2063 = vmatpush1.bf16.msra.mxu0 %v1808
    %2064 = vmatprep.subr.bf16.mxu0 %v1813
    %2065 = vmatpush1.bf16.msra.mxu0 %v1812
    %2066 = vmatprep.subr.bf16.mxu0 %v1817
    %2067 = vmatpush1.bf16.msra.mxu0 %v1816
    %2068 = vmatprep.subr.bf16.mxu0 %v1821
    %2069 = vmatpush1.bf16.msra.mxu0 %v1820
    %2070 = vmatprep.subr.bf16.mxu0 %v1825
    %2071 = vmatpush1.bf16.msra.mxu0 %v1824
    %2072 = vmatprep.subr.bf16.mxu0 %v1829
    %2073 = vmatpush1.bf16.msra.mxu0 %v1828
    %2074 = vmatprep.subr.bf16.mxu0 %v1833
    %2075 = vmatpush1.bf16.msra.mxu0 %v1832
    %2076 = vmatprep.subr.bf16.mxu0 %v1837
    %2077 = vmatpush1.bf16.msra.mxu0 %v1836
    %2078 = vmatprep.subr.bf16.mxu0 %v1841
    %2079 = vmatpush1.bf16.msra.mxu0 %v1840
    %2080 = vmatprep.subr.bf16.mxu0 %v1845
    %2081 = vmatpush1.bf16.msra.mxu0 %v1844
    %2082 = vmatprep.subr.bf16.mxu0 %v1849
    %2083 = vmatpush1.bf16.msra.mxu0 %v1848
    %2084 = vmatprep.subr.bf16.mxu0 %v1853
    %2085 = vmatpush1.bf16.msra.mxu0 %v1852
    %2086 = vmatprep.subr.bf16.mxu0 %v1857
    %2087 = vmatpush1.bf16.msra.mxu0 %v1856
    %2088 = vmatprep.subr.bf16.mxu0 %v1861
    %2089 = vmatpush1.bf16.msra.mxu0 %v1860
    %2090 = vmatprep.subr.bf16.mxu0 %v1865
    %2091 = vmatpush1.bf16.msra.mxu0 %v1864
    %2092 = vmatprep.mubr.bf16.mxu0 %v1401
    %2093 = vmatmul.mubr.bf16.gmra.mrb[0].mxu0 %v1400
    %v2094 = vpop.f32.mrb[0].mxu0
    %v2095 = vadd.f32 %v1407, %v2094
    %v2096 = vpop.f32.mrb[0].mxu0
    %v2097 = vadd.f32 %v1411, %v2096
    %v2098 = vpop.f32.mrb[0].mxu0
    %v2099 = vpop.f32.mrb[0].mxu0
    %2100 = vdwg.mxu0
    %2101 = vmatprep.subr.bf16.mxu0 %v1869
    %2102 = vmatpush1.bf16.msra.mxu0 %v1868
    %2103 = vmatprep.subr.bf16.mxu0 %v1873
    %2104 = vmatpush1.bf16.msra.mxu0 %v1872
    %2105 = vmatprep.subr.bf16.mxu0 %v1877
    %2106 = vmatpush1.bf16.msra.mxu0 %v1876
    %2107 = vmatprep.subr.bf16.mxu0 %v1881
    %2108 = vmatpush1.bf16.msra.mxu0 %v1880
    %2109 = vmatprep.subr.bf16.mxu0 %v1885
    %2110 = vmatpush1.bf16.msra.mxu0 %v1884
    %2111 = vmatprep.subr.bf16.mxu0 %v1889
    %2112 = vmatpush1.bf16.msra.mxu0 %v1888
    %2113 = vmatprep.subr.bf16.mxu0 %v1893
    %2114 = vmatpush1.bf16.msra.mxu0 %v1892
    %2115 = vmatprep.subr.bf16.mxu0 %v1897
    %2116 = vmatpush1.bf16.msra.mxu0 %v1896
    %2117 = vmatprep.subr.bf16.mxu0 %v1901
    %2118 = vmatpush1.bf16.msra.mxu0 %v1900
    %2119 = vmatprep.subr.bf16.mxu0 %v1905
    %2120 = vmatpush1.bf16.msra.mxu0 %v1904
    %2121 = vmatprep.subr.bf16.mxu0 %v1909
    %2122 = vmatpush1.bf16.msra.mxu0 %v1908
    %2123 = vmatprep.subr.bf16.mxu0 %v1913
    %2124 = vmatpush1.bf16.msra.mxu0 %v1912
    %2125 = vmatprep.subr.bf16.mxu0 %v1917
    %2126 = vmatpush1.bf16.msra.mxu0 %v1916
    %2127 = vmatprep.subr.bf16.mxu0 %v1921
    %2128 = vmatpush1.bf16.msra.mxu0 %v1920
    %2129 = vmatprep.subr.bf16.mxu0 %v1925
    %2130 = vmatpush1.bf16.msra.mxu0 %v1924
    %2131 = vmatprep.subr.bf16.mxu0 %v1929
    %2132 = vmatpush1.bf16.msra.mxu0 %v1928
    %2133 = vmatprep.mubr.bf16.mxu0 %v1403
    %2134 = vmatmul.mubr.bf16.gmra.mrb[0].mxu0 %v1402
    %v2135 = vpop.f32.mrb[0].mxu0
    %v2136 = vadd.f32 %v2095, %v2135
    %v2137 = vpop.f32.mrb[0].mxu0
    %v2138 = vadd.f32 %v2097, %v2137
    %v2139 = vpop.f32.mrb[0].mxu0
    %v2140 = vpop.f32.mrb[0].mxu0
    %2141 = vdwg.mxu0
    %2142 = vmatprep.subr.bf16.mxu0 %v1807
    %2143 = vmatpush1.bf16.msra.mxu0 %v1806
    %2144 = vmatprep.subr.bf16.mxu0 %v1811
    %2145 = vmatpush1.bf16.msra.mxu0 %v1810
    %2146 = vmatprep.subr.bf16.mxu0 %v1815
    %2147 = vmatpush1.bf16.msra.mxu0 %v1814
    %2148 = vmatprep.subr.bf16.mxu0 %v1819
    %2149 = vmatpush1.bf16.msra.mxu0 %v1818
    %2150 = vmatprep.subr.bf16.mxu0 %v1823
    %2151 = vmatpush1.bf16.msra.mxu0 %v1822
    %2152 = vmatprep.subr.bf16.mxu0 %v1827
    %2153 = vmatpush1.bf16.msra.mxu0 %v1826
    %2154 = vmatprep.subr.bf16.mxu0 %v1831
    %2155 = vmatpush1.bf16.msra.mxu0 %v1830
    %2156 = vmatprep.subr.bf16.mxu0 %v1835
    %2157 = vmatpush1.bf16.msra.mxu0 %v1834
    %2158 = vmatprep.subr.bf16.mxu0 %v1839
    %2159 = vmatpush1.bf16.msra.mxu0 %v1838
    %2160 = vmatprep.subr.bf16.mxu0 %v1843
    %2161 = vmatpush1.bf16.msra.mxu0 %v1842
    %2162 = vmatprep.subr.bf16.mxu0 %v1847
    %2163 = vmatpush1.bf16.msra.mxu0 %v1846
    %2164 = vmatprep.subr.bf16.mxu0 %v1851
    %2165 = vmatpush1.bf16.msra.mxu0 %v1850
    %2166 = vmatprep.subr.bf16.mxu0 %v1855
    %2167 = vmatpush1.bf16.msra.mxu0 %v1854
    %2168 = vmatprep.subr.bf16.mxu0 %v1859
    %2169 = vmatpush1.bf16.msra.mxu0 %v1858
    %2170 = vmatprep.subr.bf16.mxu0 %v1863
    %2171 = vmatpush1.bf16.msra.mxu0 %v1862
    %2172 = vmatprep.subr.bf16.mxu0 %v1867
    %2173 = vmatpush1.bf16.msra.mxu0 %v1866
    %2174 = vmatprep.mubr.bf16.mxu0 %v1401
    %2175 = vmatmul.mubr.bf16.gmra.mrb[0].mxu0 %v1400
    %v2176 = vpop.f32.mrb[0].mxu0
    %v2177 = vadd.f32 %v1415, %v2176
    %v2178 = vpop.f32.mrb[0].mxu0
    %v2179 = vadd.f32 %v1419, %v2178
    %v2180 = vpop.f32.mrb[0].mxu0
    %v2181 = vpop.f32.mrb[0].mxu0
    %2182 = vdwg.mxu0
    %2183 = vmatprep.subr.bf16.mxu0 %v1871
    %2184 = vmatpush1.bf16.msra.mxu0 %v1870
    %2185 = vmatprep.subr.bf16.mxu0 %v1875
    %2186 = vmatpush1.bf16.msra.mxu0 %v1874
    %2187 = vmatprep.subr.bf16.mxu0 %v1879
    %2188 = vmatpush1.bf16.msra.mxu0 %v1878
    %2189 = vmatprep.subr.bf16.mxu0 %v1883
    %2190 = vmatpush1.bf16.msra.mxu0 %v1882
    %2191 = vmatprep.subr.bf16.mxu0 %v1887
    %2192 = vmatpush1.bf16.msra.mxu0 %v1886
    %2193 = vmatprep.subr.bf16.mxu0 %v1891
    %2194 = vmatpush1.bf16.msra.mxu0 %v1890
    %2195 = vmatprep.subr.bf16.mxu0 %v1895
    %2196 = vmatpush1.bf16.msra.mxu0 %v1894
    %2197 = vmatprep.subr.bf16.mxu0 %v1899
    %2198 = vmatpush1.bf16.msra.mxu0 %v1898
    %2199 = vmatprep.subr.bf16.mxu0 %v1903
    %2200 = vmatpush1.bf16.msra.mxu0 %v1902
    %2201 = vmatprep.subr.bf16.mxu0 %v1907
    %2202 = vmatpush1.bf16.msra.mxu0 %v1906
    %2203 = vmatprep.subr.bf16.mxu0 %v1911
    %2204 = vmatpush1.bf16.msra.mxu0 %v1910
    %2205 = vmatprep.subr.bf16.mxu0 %v1915
    %2206 = vmatpush1.bf16.msra.mxu0 %v1914
    %2207 = vmatprep.subr.bf16.mxu0 %v1919
    %2208 = vmatpush1.bf16.msra.mxu0 %v1918
    %2209 = vmatprep.subr.bf16.mxu0 %v1923
    %2210 = vmatpush1.bf16.msra.mxu0 %v1922
    %2211 = vmatprep.subr.bf16.mxu0 %v1927
    %2212 = vmatpush1.bf16.msra.mxu0 %v1926
    %2213 = vmatprep.subr.bf16.mxu0 %v1931
    %2214 = vmatpush1.bf16.msra.mxu0 %v1930
    %2215 = vmatprep.mubr.bf16.mxu0 %v1403
    %2216 = vmatmul.mubr.bf16.gmra.mrb[0].mxu0 %v1402
    %v2217 = vpop.f32.mrb[0].mxu0
    %v2218 = vadd.f32 %v2177, %v2217
    %v2219 = vpop.f32.mrb[0].mxu0
    %v2220 = vadd.f32 %v2179, %v2219
    %v2221 = vpop.f32.mrb[0].mxu0
    %v2222 = vpop.f32.mrb[0].mxu0
    %2223 = vdwg.mxu0
    %v2224 = vmax.f32 %v2136, 0.0
    %v2225 = vmax.f32 %v2138, 0.0
    %v2226 = vmax.f32 %v2218, 0.0
    %v2227 = vmax.f32 %v2220, 0.0
    %v2228 = vlaneseq
    %v2229 = vshrl.u32 %v2228, 7
    %v2230 = vsub.s32 3, %v2229
    %v2231 = vrot.slane %v318, %v2230
    %v2232 = vlaneseq
    %v2233 = vshrl.u32 %v2232, 7
    %v2234 = vsub.s32 3, %v2233
    %v2235 = vrot.slane %v319, %v2234
    %v2236 = vlaneseq
    %v2237 = vshrl.u32 %v2236, 7
    %v2238 = vsub.s32 3, %v2237
    %v2239 = vrot.slane %v320, %v2238
    %v2240 = vlaneseq
    %v2241 = vshrl.u32 %v2240, 7
    %v2242 = vsub.s32 3, %v2241
    %v2243 = vrot.slane %v321, %v2242
    %v2244 = vmul.f32 %v2224, %v2231
    %v2245 = vmul.f32 %v2225, %v2235
    %v2246 = vmul.f32 %v2226, %v2239
    %v2247 = vmul.f32 %v2227, %v2243
    %v2248 = vadd.f32 %v2244, %v2245
    %v2249 = vadd.f32 %v2248, %v2246
    %v2250 = vadd.f32 %v2249, %v2247
    %2251 = vadd.xlane.f32.xlu0 %v2250
    %v2252 = vpop.xlane.xlu0 %2251
    %v2253 = vlaneseq
    %v2254 = vshrl.u32 %v2253, 7
    %v2255 = vsub.s32 4, %v2254
    %v2256 = vrot.slane %v318, %v2255
    %v2257 = vadd.f32 %v2252, %v2256
    %2259 = vset.pattern.permute.xlu0 0
    %2260 = vperm.xlu0 %2259, %v2257
    %v2261 = vpop.permute.xlu0 %2260
    %2263 = vst [vmem:[%s7] sm:$0xff] %v2261
    %s2264 = scalar_lea.vmem %s2, 16
    %v2265 = vld [vmem:[%s2264] sm:$0xff]
    %v2266 = vld [vmem:[%s2264 + $0x8] sm:$0xff]
    %s2267 = scalar_lea.vmem %s3, 8
    %v2268 = vld [vmem:[%s2267] sm:$0xff]
    %s2269 = scalar_lea.vmem [#allocation2], 1024
    %v2270 = vld [vmem:[%s2269] sm:$0xff]
    %v2271 = vld [vmem:[%s2269 + $0x8] sm:$0xff]
    %v2272 = vld [vmem:[%s2269 + $0x10] sm:$0xff]
    %v2273 = vld [vmem:[%s2269 + $0x18] sm:$0xff]
    %v2274 = vld [vmem:[%s2269 + $0x20] sm:$0xff]
    %v2275 = vld [vmem:[%s2269 + $0x28] sm:$0xff]
    %v2276 = vld [vmem:[%s2269 + $0x30] sm:$0xff]
    %v2277 = vld [vmem:[%s2269 + $0x38] sm:$0xff]
    %v2278 = vld [vmem:[%s2269 + $0x40] sm:$0xff]
    %v2279 = vld [vmem:[%s2269 + $0x48] sm:$0xff]
    %v2280 = vld [vmem:[%s2269 + $0x50] sm:$0xff]
    %v2281 = vld [vmem:[%s2269 + $0x58] sm:$0xff]
    %v2282 = vld [vmem:[%s2269 + $0x60] sm:$0xff]
    %v2283 = vld [vmem:[%s2269 + $0x68] sm:$0xff]
    %v2284 = vld [vmem:[%s2269 + $0x70] sm:$0xff]
    %v2285 = vld [vmem:[%s2269 + $0x78] sm:$0xff]
    %v2286 = vld [vmem:[%s2269 + $0x80] sm:$0xff]
    %v2287 = vld [vmem:[%s2269 + $0x88] sm:$0xff]
    %v2288 = vld [vmem:[%s2269 + $0x90] sm:$0xff]
    %v2289 = vld [vmem:[%s2269 + $0x98] sm:$0xff]
    %v2290 = vld [vmem:[%s2269 + $0xa0] sm:$0xff]
    %v2291 = vld [vmem:[%s2269 + $0xa8] sm:$0xff]
    %v2292 = vld [vmem:[%s2269 + $0xb0] sm:$0xff]
    %v2293 = vld [vmem:[%s2269 + $0xb8] sm:$0xff]
    %v2294 = vld [vmem:[%s2269 + $0xc0] sm:$0xff]
    %v2295 = vld [vmem:[%s2269 + $0xc8] sm:$0xff]
    %v2296 = vld [vmem:[%s2269 + $0xd0] sm:$0xff]
    %v2297 = vld [vmem:[%s2269 + $0xd8] sm:$0xff]
    %v2298 = vld [vmem:[%s2269 + $0xe0] sm:$0xff]
    %v2299 = vld [vmem:[%s2269 + $0xe8] sm:$0xff]
    %v2300 = vld [vmem:[%s2269 + $0xf0] sm:$0xff]
    %v2301 = vld [vmem:[%s2269 + $0xf8] sm:$0xff]
    %v2302 = vld [vmem:[%s2269 + $0x100] sm:$0xff]
    %v2303 = vld [vmem:[%s2269 + $0x108] sm:$0xff]
    %v2304 = vld [vmem:[%s2269 + $0x110] sm:$0xff]
    %v2305 = vld [vmem:[%s2269 + $0x118] sm:$0xff]
    %v2306 = vld [vmem:[%s2269 + $0x120] sm:$0xff]
    %v2307 = vld [vmem:[%s2269 + $0x128] sm:$0xff]
    %v2308 = vld [vmem:[%s2269 + $0x130] sm:$0xff]
    %v2309 = vld [vmem:[%s2269 + $0x138] sm:$0xff]
    %v2310 = vld [vmem:[%s2269 + $0x140] sm:$0xff]
    %v2311 = vld [vmem:[%s2269 + $0x148] sm:$0xff]
    %v2312 = vld [vmem:[%s2269 + $0x150] sm:$0xff]
    %v2313 = vld [vmem:[%s2269 + $0x158] sm:$0xff]
    %v2314 = vld [vmem:[%s2269 + $0x160] sm:$0xff]
    %v2315 = vld [vmem:[%s2269 + $0x168] sm:$0xff]
    %v2316 = vld [vmem:[%s2269 + $0x170] sm:$0xff]
    %v2317 = vld [vmem:[%s2269 + $0x178] sm:$0xff]
    %v2318 = vld [vmem:[%s2269 + $0x180] sm:$0xff]
    %v2319 = vld [vmem:[%s2269 + $0x188] sm:$0xff]
    %v2320 = vld [vmem:[%s2269 + $0x190] sm:$0xff]
    %v2321 = vld [vmem:[%s2269 + $0x198] sm:$0xff]
    %v2322 = vld [vmem:[%s2269 + $0x1a0] sm:$0xff]
    %v2323 = vld [vmem:[%s2269 + $0x1a8] sm:$0xff]
    %v2324 = vld [vmem:[%s2269 + $0x1b0] sm:$0xff]
    %v2325 = vld [vmem:[%s2269 + $0x1b8] sm:$0xff]
    %v2326 = vld [vmem:[%s2269 + $0x1c0] sm:$0xff]
    %v2327 = vld [vmem:[%s2269 + $0x1c8] sm:$0xff]
    %v2328 = vld [vmem:[%s2269 + $0x1d0] sm:$0xff]
    %v2329 = vld [vmem:[%s2269 + $0x1d8] sm:$0xff]
    %v2330 = vld [vmem:[%s2269 + $0x1e0] sm:$0xff]
    %v2331 = vld [vmem:[%s2269 + $0x1e8] sm:$0xff]
    %v2332 = vld [vmem:[%s2269 + $0x1f0] sm:$0xff]
    %v2333 = vld [vmem:[%s2269 + $0x1f8] sm:$0xff]
    %v2334 = vld [vmem:[%s2269 + $0x200] sm:$0xff]
    %v2335 = vld [vmem:[%s2269 + $0x208] sm:$0xff]
    %v2336 = vld [vmem:[%s2269 + $0x210] sm:$0xff]
    %v2337 = vld [vmem:[%s2269 + $0x218] sm:$0xff]
    %v2338 = vld [vmem:[%s2269 + $0x220] sm:$0xff]
    %v2339 = vld [vmem:[%s2269 + $0x228] sm:$0xff]
    %v2340 = vld [vmem:[%s2269 + $0x230] sm:$0xff]
    %v2341 = vld [vmem:[%s2269 + $0x238] sm:$0xff]
    %v2342 = vld [vmem:[%s2269 + $0x240] sm:$0xff]
    %v2343 = vld [vmem:[%s2269 + $0x248] sm:$0xff]
    %v2344 = vld [vmem:[%s2269 + $0x250] sm:$0xff]
    %v2345 = vld [vmem:[%s2269 + $0x258] sm:$0xff]
    %v2346 = vld [vmem:[%s2269 + $0x260] sm:$0xff]
    %v2347 = vld [vmem:[%s2269 + $0x268] sm:$0xff]
    %v2348 = vld [vmem:[%s2269 + $0x270] sm:$0xff]
    %v2349 = vld [vmem:[%s2269 + $0x278] sm:$0xff]
    %v2350 = vld [vmem:[%s2269 + $0x280] sm:$0xff]
    %v2351 = vld [vmem:[%s2269 + $0x288] sm:$0xff]
    %v2352 = vld [vmem:[%s2269 + $0x290] sm:$0xff]
    %v2353 = vld [vmem:[%s2269 + $0x298] sm:$0xff]
    %v2354 = vld [vmem:[%s2269 + $0x2a0] sm:$0xff]
    %v2355 = vld [vmem:[%s2269 + $0x2a8] sm:$0xff]
    %v2356 = vld [vmem:[%s2269 + $0x2b0] sm:$0xff]
    %v2357 = vld [vmem:[%s2269 + $0x2b8] sm:$0xff]
    %v2358 = vld [vmem:[%s2269 + $0x2c0] sm:$0xff]
    %v2359 = vld [vmem:[%s2269 + $0x2c8] sm:$0xff]
    %v2360 = vld [vmem:[%s2269 + $0x2d0] sm:$0xff]
    %v2361 = vld [vmem:[%s2269 + $0x2d8] sm:$0xff]
    %v2362 = vld [vmem:[%s2269 + $0x2e0] sm:$0xff]
    %v2363 = vld [vmem:[%s2269 + $0x2e8] sm:$0xff]
    %v2364 = vld [vmem:[%s2269 + $0x2f0] sm:$0xff]
    %v2365 = vld [vmem:[%s2269 + $0x2f8] sm:$0xff]
    %v2366 = vld [vmem:[%s2269 + $0x300] sm:$0xff]
    %v2367 = vld [vmem:[%s2269 + $0x308] sm:$0xff]
    %v2368 = vld [vmem:[%s2269 + $0x310] sm:$0xff]
    %v2369 = vld [vmem:[%s2269 + $0x318] sm:$0xff]
    %v2370 = vld [vmem:[%s2269 + $0x320] sm:$0xff]
    %v2371 = vld [vmem:[%s2269 + $0x328] sm:$0xff]
    %v2372 = vld [vmem:[%s2269 + $0x330] sm:$0xff]
    %v2373 = vld [vmem:[%s2269 + $0x338] sm:$0xff]
    %v2374 = vld [vmem:[%s2269 + $0x340] sm:$0xff]
    %v2375 = vld [vmem:[%s2269 + $0x348] sm:$0xff]
    %v2376 = vld [vmem:[%s2269 + $0x350] sm:$0xff]
    %v2377 = vld [vmem:[%s2269 + $0x358] sm:$0xff]
    %v2378 = vld [vmem:[%s2269 + $0x360] sm:$0xff]
    %v2379 = vld [vmem:[%s2269 + $0x368] sm:$0xff]
    %v2380 = vld [vmem:[%s2269 + $0x370] sm:$0xff]
    %v2381 = vld [vmem:[%s2269 + $0x378] sm:$0xff]
    %v2382 = vld [vmem:[%s2269 + $0x380] sm:$0xff]
    %v2383 = vld [vmem:[%s2269 + $0x388] sm:$0xff]
    %v2384 = vld [vmem:[%s2269 + $0x390] sm:$0xff]
    %v2385 = vld [vmem:[%s2269 + $0x398] sm:$0xff]
    %v2386 = vld [vmem:[%s2269 + $0x3a0] sm:$0xff]
    %v2387 = vld [vmem:[%s2269 + $0x3a8] sm:$0xff]
    %v2388 = vld [vmem:[%s2269 + $0x3b0] sm:$0xff]
    %v2389 = vld [vmem:[%s2269 + $0x3b8] sm:$0xff]
    %v2390 = vld [vmem:[%s2269 + $0x3c0] sm:$0xff]
    %v2391 = vld [vmem:[%s2269 + $0x3c8] sm:$0xff]
    %v2392 = vld [vmem:[%s2269 + $0x3d0] sm:$0xff]
    %v2393 = vld [vmem:[%s2269 + $0x3d8] sm:$0xff]
    %v2394 = vld [vmem:[%s2269 + $0x3e0] sm:$0xff]
    %v2395 = vld [vmem:[%s2269 + $0x3e8] sm:$0xff]
    %v2396 = vld [vmem:[%s2269 + $0x3f0] sm:$0xff]
    %v2397 = vld [vmem:[%s2269 + $0x3f8] sm:$0xff]
    %s2398 = scalar_lea.vmem [#allocation4], 1024
    %v2399 = vld [vmem:[%s2398] sm:$0xff]
    %v2400 = vld [vmem:[%s2398 + $0x8] sm:$0xff]
    %v2401 = vld [vmem:[%s2398 + $0x10] sm:$0xff]
    %v2402 = vld [vmem:[%s2398 + $0x18] sm:$0xff]
    %v2403 = vld [vmem:[%s2398 + $0x20] sm:$0xff]
    %v2404 = vld [vmem:[%s2398 + $0x28] sm:$0xff]
    %v2405 = vld [vmem:[%s2398 + $0x30] sm:$0xff]
    %v2406 = vld [vmem:[%s2398 + $0x38] sm:$0xff]
    %v2407 = vld [vmem:[%s2398 + $0x40] sm:$0xff]
    %v2408 = vld [vmem:[%s2398 + $0x48] sm:$0xff]
    %v2409 = vld [vmem:[%s2398 + $0x50] sm:$0xff]
    %v2410 = vld [vmem:[%s2398 + $0x58] sm:$0xff]
    %v2411 = vld [vmem:[%s2398 + $0x60] sm:$0xff]
    %v2412 = vld [vmem:[%s2398 + $0x68] sm:$0xff]
    %v2413 = vld [vmem:[%s2398 + $0x70] sm:$0xff]
    %v2414 = vld [vmem:[%s2398 + $0x78] sm:$0xff]
    %v2415 = vld [vmem:[%s2398 + $0x80] sm:$0xff]
    %v2416 = vld [vmem:[%s2398 + $0x88] sm:$0xff]
    %v2417 = vld [vmem:[%s2398 + $0x90] sm:$0xff]
    %v2418 = vld [vmem:[%s2398 + $0x98] sm:$0xff]
    %v2419 = vld [vmem:[%s2398 + $0xa0] sm:$0xff]
    %v2420 = vld [vmem:[%s2398 + $0xa8] sm:$0xff]
    %v2421 = vld [vmem:[%s2398 + $0xb0] sm:$0xff]
    %v2422 = vld [vmem:[%s2398 + $0xb8] sm:$0xff]
    %v2423 = vld [vmem:[%s2398 + $0xc0] sm:$0xff]
    %v2424 = vld [vmem:[%s2398 + $0xc8] sm:$0xff]
    %v2425 = vld [vmem:[%s2398 + $0xd0] sm:$0xff]
    %v2426 = vld [vmem:[%s2398 + $0xd8] sm:$0xff]
    %v2427 = vld [vmem:[%s2398 + $0xe0] sm:$0xff]
    %v2428 = vld [vmem:[%s2398 + $0xe8] sm:$0xff]
    %v2429 = vld [vmem:[%s2398 + $0xf0] sm:$0xff]
    %v2430 = vld [vmem:[%s2398 + $0xf8] sm:$0xff]
    %v2431 = vld [vmem:[%s2398 + $0x100] sm:$0xff]
    %v2432 = vld [vmem:[%s2398 + $0x108] sm:$0xff]
    %v2433 = vld [vmem:[%s2398 + $0x110] sm:$0xff]
    %v2434 = vld [vmem:[%s2398 + $0x118] sm:$0xff]
    %v2435 = vld [vmem:[%s2398 + $0x120] sm:$0xff]
    %v2436 = vld [vmem:[%s2398 + $0x128] sm:$0xff]
    %v2437 = vld [vmem:[%s2398 + $0x130] sm:$0xff]
    %v2438 = vld [vmem:[%s2398 + $0x138] sm:$0xff]
    %v2439 = vld [vmem:[%s2398 + $0x140] sm:$0xff]
    %v2440 = vld [vmem:[%s2398 + $0x148] sm:$0xff]
    %v2441 = vld [vmem:[%s2398 + $0x150] sm:$0xff]
    %v2442 = vld [vmem:[%s2398 + $0x158] sm:$0xff]
    %v2443 = vld [vmem:[%s2398 + $0x160] sm:$0xff]
    %v2444 = vld [vmem:[%s2398 + $0x168] sm:$0xff]
    %v2445 = vld [vmem:[%s2398 + $0x170] sm:$0xff]
    %v2446 = vld [vmem:[%s2398 + $0x178] sm:$0xff]
    %v2447 = vld [vmem:[%s2398 + $0x180] sm:$0xff]
    %v2448 = vld [vmem:[%s2398 + $0x188] sm:$0xff]
    %v2449 = vld [vmem:[%s2398 + $0x190] sm:$0xff]
    %v2450 = vld [vmem:[%s2398 + $0x198] sm:$0xff]
    %v2451 = vld [vmem:[%s2398 + $0x1a0] sm:$0xff]
    %v2452 = vld [vmem:[%s2398 + $0x1a8] sm:$0xff]
    %v2453 = vld [vmem:[%s2398 + $0x1b0] sm:$0xff]
    %v2454 = vld [vmem:[%s2398 + $0x1b8] sm:$0xff]
    %v2455 = vld [vmem:[%s2398 + $0x1c0] sm:$0xff]
    %v2456 = vld [vmem:[%s2398 + $0x1c8] sm:$0xff]
    %v2457 = vld [vmem:[%s2398 + $0x1d0] sm:$0xff]
    %v2458 = vld [vmem:[%s2398 + $0x1d8] sm:$0xff]
    %v2459 = vld [vmem:[%s2398 + $0x1e0] sm:$0xff]
    %v2460 = vld [vmem:[%s2398 + $0x1e8] sm:$0xff]
    %v2461 = vld [vmem:[%s2398 + $0x1f0] sm:$0xff]
    %v2462 = vld [vmem:[%s2398 + $0x1f8] sm:$0xff]
    %v2463 = vld [vmem:[%s2398 + $0x200] sm:$0xff]
    %v2464 = vld [vmem:[%s2398 + $0x208] sm:$0xff]
    %v2465 = vld [vmem:[%s2398 + $0x210] sm:$0xff]
    %v2466 = vld [vmem:[%s2398 + $0x218] sm:$0xff]
    %v2467 = vld [vmem:[%s2398 + $0x220] sm:$0xff]
    %v2468 = vld [vmem:[%s2398 + $0x228] sm:$0xff]
    %v2469 = vld [vmem:[%s2398 + $0x230] sm:$0xff]
    %v2470 = vld [vmem:[%s2398 + $0x238] sm:$0xff]
    %v2471 = vld [vmem:[%s2398 + $0x240] sm:$0xff]
    %v2472 = vld [vmem:[%s2398 + $0x248] sm:$0xff]
    %v2473 = vld [vmem:[%s2398 + $0x250] sm:$0xff]
    %v2474 = vld [vmem:[%s2398 + $0x258] sm:$0xff]
    %v2475 = vld [vmem:[%s2398 + $0x260] sm:$0xff]
    %v2476 = vld [vmem:[%s2398 + $0x268] sm:$0xff]
    %v2477 = vld [vmem:[%s2398 + $0x270] sm:$0xff]
    %v2478 = vld [vmem:[%s2398 + $0x278] sm:$0xff]
    %v2479 = vld [vmem:[%s2398 + $0x280] sm:$0xff]
    %v2480 = vld [vmem:[%s2398 + $0x288] sm:$0xff]
    %v2481 = vld [vmem:[%s2398 + $0x290] sm:$0xff]
    %v2482 = vld [vmem:[%s2398 + $0x298] sm:$0xff]
    %v2483 = vld [vmem:[%s2398 + $0x2a0] sm:$0xff]
    %v2484 = vld [vmem:[%s2398 + $0x2a8] sm:$0xff]
    %v2485 = vld [vmem:[%s2398 + $0x2b0] sm:$0xff]
    %v2486 = vld [vmem:[%s2398 + $0x2b8] sm:$0xff]
    %v2487 = vld [vmem:[%s2398 + $0x2c0] sm:$0xff]
    %v2488 = vld [vmem:[%s2398 + $0x2c8] sm:$0xff]
    %v2489 = vld [vmem:[%s2398 + $0x2d0] sm:$0xff]
    %v2490 = vld [vmem:[%s2398 + $0x2d8] sm:$0xff]
    %v2491 = vld [vmem:[%s2398 + $0x2e0] sm:$0xff]
    %v2492 = vld [vmem:[%s2398 + $0x2e8] sm:$0xff]
    %v2493 = vld [vmem:[%s2398 + $0x2f0] sm:$0xff]
    %v2494 = vld [vmem:[%s2398 + $0x2f8] sm:$0xff]
    %v2495 = vld [vmem:[%s2398 + $0x300] sm:$0xff]
    %v2496 = vld [vmem:[%s2398 + $0x308] sm:$0xff]
    %v2497 = vld [vmem:[%s2398 + $0x310] sm:$0xff]
    %v2498 = vld [vmem:[%s2398 + $0x318] sm:$0xff]
    %v2499 = vld [vmem:[%s2398 + $0x320] sm:$0xff]
    %v2500 = vld [vmem:[%s2398 + $0x328] sm:$0xff]
    %v2501 = vld [vmem:[%s2398 + $0x330] sm:$0xff]
    %v2502 = vld [vmem:[%s2398 + $0x338] sm:$0xff]
    %v2503 = vld [vmem:[%s2398 + $0x340] sm:$0xff]
    %v2504 = vld [vmem:[%s2398 + $0x348] sm:$0xff]
    %v2505 = vld [vmem:[%s2398 + $0x350] sm:$0xff]
    %v2506 = vld [vmem:[%s2398 + $0x358] sm:$0xff]
    %v2507 = vld [vmem:[%s2398 + $0x360] sm:$0xff]
    %v2508 = vld [vmem:[%s2398 + $0x368] sm:$0xff]
    %v2509 = vld [vmem:[%s2398 + $0x370] sm:$0xff]
    %v2510 = vld [vmem:[%s2398 + $0x378] sm:$0xff]
    %v2511 = vld [vmem:[%s2398 + $0x380] sm:$0xff]
    %v2512 = vld [vmem:[%s2398 + $0x388] sm:$0xff]
    %v2513 = vld [vmem:[%s2398 + $0x390] sm:$0xff]
    %v2514 = vld [vmem:[%s2398 + $0x398] sm:$0xff]
    %v2515 = vld [vmem:[%s2398 + $0x3a0] sm:$0xff]
    %v2516 = vld [vmem:[%s2398 + $0x3a8] sm:$0xff]
    %v2517 = vld [vmem:[%s2398 + $0x3b0] sm:$0xff]
    %v2518 = vld [vmem:[%s2398 + $0x3b8] sm:$0xff]
    %v2519 = vld [vmem:[%s2398 + $0x3c0] sm:$0xff]
    %v2520 = vld [vmem:[%s2398 + $0x3c8] sm:$0xff]
    %v2521 = vld [vmem:[%s2398 + $0x3d0] sm:$0xff]
    %v2522 = vld [vmem:[%s2398 + $0x3d8] sm:$0xff]
    %v2523 = vld [vmem:[%s2398 + $0x3e0] sm:$0xff]
    %v2524 = vld [vmem:[%s2398 + $0x3e8] sm:$0xff]
    %v2525 = vld [vmem:[%s2398 + $0x3f0] sm:$0xff]
    %v2526 = vld [vmem:[%s2398 + $0x3f8] sm:$0xff]
    %s2527 = scalar_lea.vmem %s6, 32
    %v2528 = vld [vmem:[%s2527] sm:$0x1f]
    %v2529 = vld [vmem:[%s2527 + $0x8] sm:$0x1f]
    %v2530 = vld [vmem:[%s2527 + $0x10] sm:$0x1f]
    %v2531 = vld [vmem:[%s2527 + $0x18] sm:$0x1f]
    %v2533 = vcombine.high %v2268, %v2268
    %v2535 = vunpack.c.l.s4 1983009808
    %v2536 = vunpack.c.0.s8 %v2535
    %v2537 = vlaneseq
    %v2538 = vshrl.u32 %v2537, 7
    %v2539 = vsub.s32 %v2536, %v2538
    %v2540 = vrot.slane %v2268, %v2539
    %v2542 = vunpack.c.l.s4 1983009808
    %v2543 = vunpack.c.0.s8 %v2542
    %v2544 = vlaneseq
    %v2545 = vshrl.u32 %v2544, 7
    %v2546 = vsub.s32 %v2543, %v2545
    %v2547 = vrot.slane %v2533, %v2546
    %v2548 = vcombine.high %v2540, %v2540
    %v2549 = vcombine.high %v2547, %v2547
    %v2551 = vsel %vm344, %v2540, 0
    %v2554 = vsel %vm344, %v2548, 0
    %v2557 = vsel %vm344, %v2547, 0
    %v2560 = vsel %vm344, %v2549, 0
    %2562 = vmatprep.subr.bf16.mxu0 %v2554
    %2563 = vmatpush1.bf16.msra.mxu0 %v2551
    %2564 = vmatprep.subr.bf16.mxu0 0
    %2565 = vmatpush1.bf16.msra.mxu0 0
    %2566 = vmatprep.subr.bf16.mxu0 0
    %2567 = vmatpush1.bf16.msra.mxu0 0
    %2568 = vmatprep.subr.bf16.mxu0 0
    %2569 = vmatpush1.bf16.msra.mxu0 0
    %2570 = vmatprep.subr.bf16.mxu0 0
    %2571 = vmatpush1.bf16.msra.mxu0 0
    %2572 = vmatprep.subr.bf16.mxu0 0
    %2573 = vmatpush1.bf16.msra.mxu0 0
    %2574 = vmatprep.subr.bf16.mxu0 0
    %2575 = vmatpush1.bf16.msra.mxu0 0
    %2576 = vmatprep.subr.bf16.mxu0 0
    %2577 = vmatpush1.bf16.msra.mxu0 0
    %2578 = vmatprep.subr.bf16.mxu0 0
    %2579 = vmatpush1.bf16.msra.mxu0 0
    %2580 = vmatprep.subr.bf16.mxu0 0
    %2581 = vmatpush1.bf16.msra.mxu0 0
    %2582 = vmatprep.subr.bf16.mxu0 0
    %2583 = vmatpush1.bf16.msra.mxu0 0
    %2584 = vmatprep.subr.bf16.mxu0 0
    %2585 = vmatpush1.bf16.msra.mxu0 0
    %2586 = vmatprep.subr.bf16.mxu0 0
    %2587 = vmatpush1.bf16.msra.mxu0 0
    %2588 = vmatprep.subr.bf16.mxu0 0
    %2589 = vmatpush1.bf16.msra.mxu0 0
    %2590 = vmatprep.subr.bf16.mxu0 0
    %2591 = vmatpush1.bf16.msra.mxu0 0
    %2592 = vmatprep.subr.bf16.mxu0 0
    %2593 = vmatpush1.bf16.msra.mxu0 0
    %2594 = vmatprep.mubr.bf16.mxu0 0
    %2595 = vmatmul.mubr.bf16.gmra.mrb[0].mxu0 %v342
    %v2596 = vpop.f32.mrb[0].mxu0
    %v2597 = vadd.f32 0.0, %v2596
    %v2598 = vpop.f32.mrb[0].mxu0
    %v2599 = vadd.f32 0.0, %v2598
    %v2600 = vpop.f32.mrb[0].mxu0
    %v2601 = vpop.f32.mrb[0].mxu0
    %2602 = vdwg.mxu0
    %2603 = vmatprep.subr.bf16.mxu0 %v2560
    %2604 = vmatpush1.bf16.msra.mxu0 %v2557
    %2605 = vmatprep.subr.bf16.mxu0 0
    %2606 = vmatpush1.bf16.msra.mxu0 0
    %2607 = vmatprep.subr.bf16.mxu0 0
    %2608 = vmatpush1.bf16.msra.mxu0 0
    %2609 = vmatprep.subr.bf16.mxu0 0
    %2610 = vmatpush1.bf16.msra.mxu0 0
    %2611 = vmatprep.subr.bf16.mxu0 0
    %2612 = vmatpush1.bf16.msra.mxu0 0
    %2613 = vmatprep.subr.bf16.mxu0 0
    %2614 = vmatpush1.bf16.msra.mxu0 0
    %2615 = vmatprep.subr.bf16.mxu0 0
    %2616 = vmatpush1.bf16.msra.mxu0 0
    %2617 = vmatprep.subr.bf16.mxu0 0
    %2618 = vmatpush1.bf16.msra.mxu0 0
    %2619 = vmatprep.subr.bf16.mxu0 0
    %2620 = vmatpush1.bf16.msra.mxu0 0
    %2621 = vmatprep.subr.bf16.mxu0 0
    %2622 = vmatpush1.bf16.msra.mxu0 0
    %2623 = vmatprep.subr.bf16.mxu0 0
    %2624 = vmatpush1.bf16.msra.mxu0 0
    %2625 = vmatprep.subr.bf16.mxu0 0
    %2626 = vmatpush1.bf16.msra.mxu0 0
    %2627 = vmatprep.subr.bf16.mxu0 0
    %2628 = vmatpush1.bf16.msra.mxu0 0
    %2629 = vmatprep.subr.bf16.mxu0 0
    %2630 = vmatpush1.bf16.msra.mxu0 0
    %2631 = vmatprep.subr.bf16.mxu0 0
    %2632 = vmatpush1.bf16.msra.mxu0 0
    %2633 = vmatprep.subr.bf16.mxu0 0
    %2634 = vmatpush1.bf16.msra.mxu0 0
    %2635 = vmatprep.mubr.bf16.mxu0 0
    %2636 = vmatmul.mubr.bf16.gmra.mrb[0].mxu0 %v342
    %v2637 = vpop.f32.mrb[0].mxu0
    %v2638 = vadd.f32 0.0, %v2637
    %v2639 = vpop.f32.mrb[0].mxu0
    %v2640 = vadd.f32 0.0, %v2639
    %v2641 = vpop.f32.mrb[0].mxu0
    %v2642 = vpop.f32.mrb[0].mxu0
    %2643 = vdwg.mxu0
    %v2646 = vunpack.c.l.b16 %v2265
    %v2647 = vunpack.c.h.b16 %v2265
    %v2648 = vunpack.c.l.b16 %v2266
    %v2649 = vunpack.c.h.b16 %v2266
    %v2650 = vpack.c.b16 %v2646, %v2646
    %v2651 = vpack.c.b16 %v2647, %v2647
    %v2652 = vpack.c.b16 %v2648, %v2648
    %v2653 = vpack.c.b16 %v2649, %v2649
    %v2655 = vsel %vm453, %v2650, 0
    %v2658 = vsel %vm453, %v2651, 0
    %v2661 = vsel %vm453, %v2652, 0
    %v2664 = vsel %vm453, %v2653, 0
    %2666 = vmatprep.subr.bf16.mxu0 %v2658
    %2667 = vmatpush1.bf16.msra.mxu0 %v2655
    %2668 = vmatprep.subr.bf16.mxu0 0
    %2669 = vmatpush1.bf16.msra.mxu0 0
    %2670 = vmatprep.subr.bf16.mxu0 0
    %2671 = vmatpush1.bf16.msra.mxu0 0
    %2672 = vmatprep.subr.bf16.mxu0 0
    %2673 = vmatpush1.bf16.msra.mxu0 0
    %2674 = vmatprep.subr.bf16.mxu0 0
    %2675 = vmatpush1.bf16.msra.mxu0 0
    %2676 = vmatprep.subr.bf16.mxu0 0
    %2677 = vmatpush1.bf16.msra.mxu0 0
    %2678 = vmatprep.subr.bf16.mxu0 0
    %2679 = vmatpush1.bf16.msra.mxu0 0
    %2680 = vmatprep.subr.bf16.mxu0 0
    %2681 = vmatpush1.bf16.msra.mxu0 0
    %2682 = vmatprep.subr.bf16.mxu0 0
    %2683 = vmatpush1.bf16.msra.mxu0 0
    %2684 = vmatprep.subr.bf16.mxu0 0
    %2685 = vmatpush1.bf16.msra.mxu0 0
    %2686 = vmatprep.subr.bf16.mxu0 0
    %2687 = vmatpush1.bf16.msra.mxu0 0
    %2688 = vmatprep.subr.bf16.mxu0 0
    %2689 = vmatpush1.bf16.msra.mxu0 0
    %2690 = vmatprep.subr.bf16.mxu0 0
    %2691 = vmatpush1.bf16.msra.mxu0 0
    %2692 = vmatprep.subr.bf16.mxu0 0
    %2693 = vmatpush1.bf16.msra.mxu0 0
    %2694 = vmatprep.subr.bf16.mxu0 0
    %2695 = vmatpush1.bf16.msra.mxu0 0
    %2696 = vmatprep.subr.bf16.mxu0 0
    %2697 = vmatpush1.bf16.msra.mxu0 0
    %2698 = vmatprep.mubr.bf16.mxu0 0
    %2699 = vmatmul.mubr.bf16.gmra.mrb[0].mxu0 %v451
    %v2700 = vpop.f32.mrb[0].mxu0
    %v2701 = vadd.f32 %v2597, %v2700
    %v2702 = vpop.f32.mrb[0].mxu0
    %v2703 = vadd.f32 %v2599, %v2702
    %v2704 = vpop.f32.mrb[0].mxu0
    %v2705 = vpop.f32.mrb[0].mxu0
    %2706 = vdwg.mxu0
    %2707 = vmatprep.subr.bf16.mxu0 %v2664
    %2708 = vmatpush1.bf16.msra.mxu0 %v2661
    %2709 = vmatprep.subr.bf16.mxu0 0
    %2710 = vmatpush1.bf16.msra.mxu0 0
    %2711 = vmatprep.subr.bf16.mxu0 0
    %2712 = vmatpush1.bf16.msra.mxu0 0
    %2713 = vmatprep.subr.bf16.mxu0 0
    %2714 = vmatpush1.bf16.msra.mxu0 0
    %2715 = vmatprep.subr.bf16.mxu0 0
    %2716 = vmatpush1.bf16.msra.mxu0 0
    %2717 = vmatprep.subr.bf16.mxu0 0
    %2718 = vmatpush1.bf16.msra.mxu0 0
    %2719 = vmatprep.subr.bf16.mxu0 0
    %2720 = vmatpush1.bf16.msra.mxu0 0
    %2721 = vmatprep.subr.bf16.mxu0 0
    %2722 = vmatpush1.bf16.msra.mxu0 0
    %2723 = vmatprep.subr.bf16.mxu0 0
    %2724 = vmatpush1.bf16.msra.mxu0 0
    %2725 = vmatprep.subr.bf16.mxu0 0
    %2726 = vmatpush1.bf16.msra.mxu0 0
    %2727 = vmatprep.subr.bf16.mxu0 0
    %2728 = vmatpush1.bf16.msra.mxu0 0
    %2729 = vmatprep.subr.bf16.mxu0 0
    %2730 = vmatpush1.bf16.msra.mxu0 0
    %2731 = vmatprep.subr.bf16.mxu0 0
    %2732 = vmatpush1.bf16.msra.mxu0 0
    %2733 = vmatprep.subr.bf16.mxu0 0
    %2734 = vmatpush1.bf16.msra.mxu0 0
    %2735 = vmatprep.subr.bf16.mxu0 0
    %2736 = vmatpush1.bf16.msra.mxu0 0
    %2737 = vmatprep.subr.bf16.mxu0 0
    %2738 = vmatpush1.bf16.msra.mxu0 0
    %2739 = vmatprep.mubr.bf16.mxu0 0
    %2740 = vmatmul.mubr.bf16.gmra.mrb[0].mxu0 %v451
    %v2741 = vpop.f32.mrb[0].mxu0
    %v2742 = vadd.f32 %v2638, %v2741
    %v2743 = vpop.f32.mrb[0].mxu0
    %v2744 = vadd.f32 %v2640, %v2743
    %v2745 = vpop.f32.mrb[0].mxu0
    %v2746 = vpop.f32.mrb[0].mxu0
    %2747 = vdwg.mxu0
    %v2748 = vlaneseq
    %v2749 = vshrl.u32 %v2748, 7
    %v2750 = vsub.s32 0, %v2749
    %v2751 = vrot.slane %v2528, %v2750
    %v2752 = vlaneseq
    %v2753 = vshrl.u32 %v2752, 7
    %v2754 = vsub.s32 0, %v2753
    %v2755 = vrot.slane %v2529, %v2754
    %v2756 = vlaneseq
    %v2757 = vshrl.u32 %v2756, 7
    %v2758 = vsub.s32 0, %v2757
    %v2759 = vrot.slane %v2530, %v2758
    %v2760 = vlaneseq
    %v2761 = vshrl.u32 %v2760, 7
    %v2762 = vsub.s32 0, %v2761
    %v2763 = vrot.slane %v2531, %v2762
    %v2764 = vadd.f32 %v2701, %v2751
    %v2765 = vadd.f32 %v2703, %v2755
    %v2766 = vadd.f32 %v2742, %v2759
    %v2767 = vadd.f32 %v2744, %v2763
    %v2768 = vmax.f32 %v2764, 0.0
    %v2769 = vmax.f32 %v2765, 0.0
    %v2770 = vmax.f32 %v2766, 0.0
    %v2771 = vmax.f32 %v2767, 0.0
    %v2772 = vpack.c.bf16 %v2768, %v2768
    %v2773 = vpack.c.bf16 %v2769, %v2769
    %v2774 = vpack.c.bf16 %v2770, %v2770
    %v2775 = vpack.c.bf16 %v2771, %v2771
    %v2776 = vlaneseq
    %v2777 = vshrl.u32 %v2776, 7
    %v2778 = vsub.s32 1, %v2777
    %v2779 = vrot.slane %v2528, %v2778
    %v2780 = vlaneseq
    %v2781 = vshrl.u32 %v2780, 7
    %v2782 = vsub.s32 1, %v2781
    %v2783 = vrot.slane %v2529, %v2782
    %v2784 = vlaneseq
    %v2785 = vshrl.u32 %v2784, 7
    %v2786 = vsub.s32 1, %v2785
    %v2787 = vrot.slane %v2530, %v2786
    %v2788 = vlaneseq
    %v2789 = vshrl.u32 %v2788, 7
    %v2790 = vsub.s32 1, %v2789
    %v2791 = vrot.slane %v2531, %v2790
    %v2920 = vunpack.c.l.b16 %v2270
    %v2921 = vunpack.c.h.b16 %v2270
    %v2922 = vunpack.c.l.b16 %v2271
    %v2923 = vunpack.c.h.b16 %v2271
    %v2924 = vunpack.c.l.b16 %v2272
    %v2925 = vunpack.c.h.b16 %v2272
    %v2926 = vunpack.c.l.b16 %v2273
    %v2927 = vunpack.c.h.b16 %v2273
    %v2928 = vunpack.c.l.b16 %v2274
    %v2929 = vunpack.c.h.b16 %v2274
    %v2930 = vunpack.c.l.b16 %v2275
    %v2931 = vunpack.c.h.b16 %v2275
    %v2932 = vunpack.c.l.b16 %v2276
    %v2933 = vunpack.c.h.b16 %v2276
    %v2934 = vunpack.c.l.b16 %v2277
    %v2935 = vunpack.c.h.b16 %v2277
    %v2936 = vunpack.c.l.b16 %v2278
    %v2937 = vunpack.c.h.b16 %v2278
    %v2938 = vunpack.c.l.b16 %v2279
    %v2939 = vunpack.c.h.b16 %v2279
    %v2940 = vunpack.c.l.b16 %v2280
    %v2941 = vunpack.c.h.b16 %v2280
    %v2942 = vunpack.c.l.b16 %v2281
    %v2943 = vunpack.c.h.b16 %v2281
    %v2944 = vunpack.c.l.b16 %v2282
    %v2945 = vunpack.c.h.b16 %v2282
    %v2946 = vunpack.c.l.b16 %v2283
    %v2947 = vunpack.c.h.b16 %v2283
    %v2948 = vunpack.c.l.b16 %v2284
    %v2949 = vunpack.c.h.b16 %v2284
    %v2950 = vunpack.c.l.b16 %v2285
    %v2951 = vunpack.c.h.b16 %v2285
    %v2952 = vunpack.c.l.b16 %v2286
    %v2953 = vunpack.c.h.b16 %v2286
    %v2954 = vunpack.c.l.b16 %v2287
    %v2955 = vunpack.c.h.b16 %v2287
    %v2956 = vunpack.c.l.b16 %v2288
    %v2957 = vunpack.c.h.b16 %v2288
    %v2958 = vunpack.c.l.b16 %v2289
    %v2959 = vunpack.c.h.b16 %v2289
    %v2960 = vunpack.c.l.b16 %v2290
    %v2961 = vunpack.c.h.b16 %v2290
    %v2962 = vunpack.c.l.b16 %v2291
    %v2963 = vunpack.c.h.b16 %v2291
    %v2964 = vunpack.c.l.b16 %v2292
    %v2965 = vunpack.c.h.b16 %v2292
    %v2966 = vunpack.c.l.b16 %v2293
    %v2967 = vunpack.c.h.b16 %v2293
    %v2968 = vunpack.c.l.b16 %v2294
    %v2969 = vunpack.c.h.b16 %v2294
    %v2970 = vunpack.c.l.b16 %v2295
    %v2971 = vunpack.c.h.b16 %v2295
    %v2972 = vunpack.c.l.b16 %v2296
    %v2973 = vunpack.c.h.b16 %v2296
    %v2974 = vunpack.c.l.b16 %v2297
    %v2975 = vunpack.c.h.b16 %v2297
    %v2976 = vunpack.c.l.b16 %v2298
    %v2977 = vunpack.c.h.b16 %v2298
    %v2978 = vunpack.c.l.b16 %v2299
    %v2979 = vunpack.c.h.b16 %v2299
    %v2980 = vunpack.c.l.b16 %v2300
    %v2981 = vunpack.c.h.b16 %v2300
    %v2982 = vunpack.c.l.b16 %v2301
    %v2983 = vunpack.c.h.b16 %v2301
    %v2984 = vunpack.c.l.b16 %v2302
    %v2985 = vunpack.c.h.b16 %v2302
    %v2986 = vunpack.c.l.b16 %v2303
    %v2987 = vunpack.c.h.b16 %v2303
    %v2988 = vunpack.c.l.b16 %v2304
    %v2989 = vunpack.c.h.b16 %v2304
    %v2990 = vunpack.c.l.b16 %v2305
    %v2991 = vunpack.c.h.b16 %v2305
    %v2992 = vunpack.c.l.b16 %v2306
    %v2993 = vunpack.c.h.b16 %v2306
    %v2994 = vunpack.c.l.b16 %v2307
    %v2995 = vunpack.c.h.b16 %v2307
    %v2996 = vunpack.c.l.b16 %v2308
    %v2997 = vunpack.c.h.b16 %v2308
    %v2998 = vunpack.c.l.b16 %v2309
    %v2999 = vunpack.c.h.b16 %v2309
    %v3000 = vunpack.c.l.b16 %v2310
    %v3001 = vunpack.c.h.b16 %v2310
    %v3002 = vunpack.c.l.b16 %v2311
    %v3003 = vunpack.c.h.b16 %v2311
    %v3004 = vunpack.c.l.b16 %v2312
    %v3005 = vunpack.c.h.b16 %v2312
    %v3006 = vunpack.c.l.b16 %v2313
    %v3007 = vunpack.c.h.b16 %v2313
    %v3008 = vunpack.c.l.b16 %v2314
    %v3009 = vunpack.c.h.b16 %v2314
    %v3010 = vunpack.c.l.b16 %v2315
    %v3011 = vunpack.c.h.b16 %v2315
    %v3012 = vunpack.c.l.b16 %v2316
    %v3013 = vunpack.c.h.b16 %v2316
    %v3014 = vunpack.c.l.b16 %v2317
    %v3015 = vunpack.c.h.b16 %v2317
    %v3016 = vunpack.c.l.b16 %v2318
    %v3017 = vunpack.c.h.b16 %v2318
    %v3018 = vunpack.c.l.b16 %v2319
    %v3019 = vunpack.c.h.b16 %v2319
    %v3020 = vunpack.c.l.b16 %v2320
    %v3021 = vunpack.c.h.b16 %v2320
    %v3022 = vunpack.c.l.b16 %v2321
    %v3023 = vunpack.c.h.b16 %v2321
    %v3024 = vunpack.c.l.b16 %v2322
    %v3025 = vunpack.c.h.b16 %v2322
    %v3026 = vunpack.c.l.b16 %v2323
    %v3027 = vunpack.c.h.b16 %v2323
    %v3028 = vunpack.c.l.b16 %v2324
    %v3029 = vunpack.c.h.b16 %v2324
    %v3030 = vunpack.c.l.b16 %v2325
    %v3031 = vunpack.c.h.b16 %v2325
    %v3032 = vunpack.c.l.b16 %v2326
    %v3033 = vunpack.c.h.b16 %v2326
    %v3034 = vunpack.c.l.b16 %v2327
    %v3035 = vunpack.c.h.b16 %v2327
    %v3036 = vunpack.c.l.b16 %v2328
    %v3037 = vunpack.c.h.b16 %v2328
    %v3038 = vunpack.c.l.b16 %v2329
    %v3039 = vunpack.c.h.b16 %v2329
    %v3040 = vunpack.c.l.b16 %v2330
    %v3041 = vunpack.c.h.b16 %v2330
    %v3042 = vunpack.c.l.b16 %v2331
    %v3043 = vunpack.c.h.b16 %v2331
    %v3044 = vunpack.c.l.b16 %v2332
    %v3045 = vunpack.c.h.b16 %v2332
    %v3046 = vunpack.c.l.b16 %v2333
    %v3047 = vunpack.c.h.b16 %v2333
    %v3048 = vunpack.c.l.b16 %v2334
    %v3049 = vunpack.c.h.b16 %v2334
    %v3050 = vunpack.c.l.b16 %v2335
    %v3051 = vunpack.c.h.b16 %v2335
    %v3052 = vunpack.c.l.b16 %v2336
    %v3053 = vunpack.c.h.b16 %v2336
    %v3054 = vunpack.c.l.b16 %v2337
    %v3055 = vunpack.c.h.b16 %v2337
    %v3056 = vunpack.c.l.b16 %v2338
    %v3057 = vunpack.c.h.b16 %v2338
    %v3058 = vunpack.c.l.b16 %v2339
    %v3059 = vunpack.c.h.b16 %v2339
    %v3060 = vunpack.c.l.b16 %v2340
    %v3061 = vunpack.c.h.b16 %v2340
    %v3062 = vunpack.c.l.b16 %v2341
    %v3063 = vunpack.c.h.b16 %v2341
    %v3064 = vunpack.c.l.b16 %v2342
    %v3065 = vunpack.c.h.b16 %v2342
    %v3066 = vunpack.c.l.b16 %v2343
    %v3067 = vunpack.c.h.b16 %v2343
    %v3068 = vunpack.c.l.b16 %v2344
    %v3069 = vunpack.c.h.b16 %v2344
    %v3070 = vunpack.c.l.b16 %v2345
    %v3071 = vunpack.c.h.b16 %v2345
    %v3072 = vunpack.c.l.b16 %v2346
    %v3073 = vunpack.c.h.b16 %v2346
    %v3074 = vunpack.c.l.b16 %v2347
    %v3075 = vunpack.c.h.b16 %v2347
    %v3076 = vunpack.c.l.b16 %v2348
    %v3077 = vunpack.c.h.b16 %v2348
    %v3078 = vunpack.c.l.b16 %v2349
    %v3079 = vunpack.c.h.b16 %v2349
    %v3080 = vunpack.c.l.b16 %v2350
    %v3081 = vunpack.c.h.b16 %v2350
    %v3082 = vunpack.c.l.b16 %v2351
    %v3083 = vunpack.c.h.b16 %v2351
    %v3084 = vunpack.c.l.b16 %v2352
    %v3085 = vunpack.c.h.b16 %v2352
    %v3086 = vunpack.c.l.b16 %v2353
    %v3087 = vunpack.c.h.b16 %v2353
    %v3088 = vunpack.c.l.b16 %v2354
    %v3089 = vunpack.c.h.b16 %v2354
    %v3090 = vunpack.c.l.b16 %v2355
    %v3091 = vunpack.c.h.b16 %v2355
    %v3092 = vunpack.c.l.b16 %v2356
    %v3093 = vunpack.c.h.b16 %v2356
    %v3094 = vunpack.c.l.b16 %v2357
    %v3095 = vunpack.c.h.b16 %v2357
    %v3096 = vunpack.c.l.b16 %v2358
    %v3097 = vunpack.c.h.b16 %v2358
    %v3098 = vunpack.c.l.b16 %v2359
    %v3099 = vunpack.c.h.b16 %v2359
    %v3100 = vunpack.c.l.b16 %v2360
    %v3101 = vunpack.c.h.b16 %v2360
    %v3102 = vunpack.c.l.b16 %v2361
    %v3103 = vunpack.c.h.b16 %v2361
    %v3104 = vunpack.c.l.b16 %v2362
    %v3105 = vunpack.c.h.b16 %v2362
    %v3106 = vunpack.c.l.b16 %v2363
    %v3107 = vunpack.c.h.b16 %v2363
    %v3108 = vunpack.c.l.b16 %v2364
    %v3109 = vunpack.c.h.b16 %v2364
    %v3110 = vunpack.c.l.b16 %v2365
    %v3111 = vunpack.c.h.b16 %v2365
    %v3112 = vunpack.c.l.b16 %v2366
    %v3113 = vunpack.c.h.b16 %v2366
    %v3114 = vunpack.c.l.b16 %v2367
    %v3115 = vunpack.c.h.b16 %v2367
    %v3116 = vunpack.c.l.b16 %v2368
    %v3117 = vunpack.c.h.b16 %v2368
    %v3118 = vunpack.c.l.b16 %v2369
    %v3119 = vunpack.c.h.b16 %v2369
    %v3120 = vunpack.c.l.b16 %v2370
    %v3121 = vunpack.c.h.b16 %v2370
    %v3122 = vunpack.c.l.b16 %v2371
    %v3123 = vunpack.c.h.b16 %v2371
    %v3124 = vunpack.c.l.b16 %v2372
    %v3125 = vunpack.c.h.b16 %v2372
    %v3126 = vunpack.c.l.b16 %v2373
    %v3127 = vunpack.c.h.b16 %v2373
    %v3128 = vunpack.c.l.b16 %v2374
    %v3129 = vunpack.c.h.b16 %v2374
    %v3130 = vunpack.c.l.b16 %v2375
    %v3131 = vunpack.c.h.b16 %v2375
    %v3132 = vunpack.c.l.b16 %v2376
    %v3133 = vunpack.c.h.b16 %v2376
    %v3134 = vunpack.c.l.b16 %v2377
    %v3135 = vunpack.c.h.b16 %v2377
    %v3136 = vunpack.c.l.b16 %v2378
    %v3137 = vunpack.c.h.b16 %v2378
    %v3138 = vunpack.c.l.b16 %v2379
    %v3139 = vunpack.c.h.b16 %v2379
    %v3140 = vunpack.c.l.b16 %v2380
    %v3141 = vunpack.c.h.b16 %v2380
    %v3142 = vunpack.c.l.b16 %v2381
    %v3143 = vunpack.c.h.b16 %v2381
    %v3144 = vunpack.c.l.b16 %v2382
    %v3145 = vunpack.c.h.b16 %v2382
    %v3146 = vunpack.c.l.b16 %v2383
    %v3147 = vunpack.c.h.b16 %v2383
    %v3148 = vunpack.c.l.b16 %v2384
    %v3149 = vunpack.c.h.b16 %v2384
    %v3150 = vunpack.c.l.b16 %v2385
    %v3151 = vunpack.c.h.b16 %v2385
    %v3152 = vunpack.c.l.b16 %v2386
    %v3153 = vunpack.c.h.b16 %v2386
    %v3154 = vunpack.c.l.b16 %v2387
    %v3155 = vunpack.c.h.b16 %v2387
    %v3156 = vunpack.c.l.b16 %v2388
    %v3157 = vunpack.c.h.b16 %v2388
    %v3158 = vunpack.c.l.b16 %v2389
    %v3159 = vunpack.c.h.b16 %v2389
    %v3160 = vunpack.c.l.b16 %v2390
    %v3161 = vunpack.c.h.b16 %v2390
    %v3162 = vunpack.c.l.b16 %v2391
    %v3163 = vunpack.c.h.b16 %v2391
    %v3164 = vunpack.c.l.b16 %v2392
    %v3165 = vunpack.c.h.b16 %v2392
    %v3166 = vunpack.c.l.b16 %v2393
    %v3167 = vunpack.c.h.b16 %v2393
    %v3168 = vunpack.c.l.b16 %v2394
    %v3169 = vunpack.c.h.b16 %v2394
    %v3170 = vunpack.c.l.b16 %v2395
    %v3171 = vunpack.c.h.b16 %v2395
    %v3172 = vunpack.c.l.b16 %v2396
    %v3173 = vunpack.c.h.b16 %v2396
    %v3174 = vunpack.c.l.b16 %v2397
    %v3175 = vunpack.c.h.b16 %v2397
    %v3176 = vpack.c.b16 %v2924, %v2920
    %v3177 = vpack.c.b16 %v2925, %v2921
    %v3178 = vpack.c.b16 %v2926, %v2922
    %v3179 = vpack.c.b16 %v2927, %v2923
    %v3180 = vpack.c.b16 %v2932, %v2928
    %v3181 = vpack.c.b16 %v2933, %v2929
    %v3182 = vpack.c.b16 %v2934, %v2930
    %v3183 = vpack.c.b16 %v2935, %v2931
    %v3184 = vpack.c.b16 %v2940, %v2936
    %v3185 = vpack.c.b16 %v2941, %v2937
    %v3186 = vpack.c.b16 %v2942, %v2938
    %v3187 = vpack.c.b16 %v2943, %v2939
    %v3188 = vpack.c.b16 %v2948, %v2944
    %v3189 = vpack.c.b16 %v2949, %v2945
    %v3190 = vpack.c.b16 %v2950, %v2946
    %v3191 = vpack.c.b16 %v2951, %v2947
    %v3192 = vpack.c.b16 %v2956, %v2952
    %v3193 = vpack.c.b16 %v2957, %v2953
    %v3194 = vpack.c.b16 %v2958, %v2954
    %v3195 = vpack.c.b16 %v2959, %v2955
    %v3196 = vpack.c.b16 %v2964, %v2960
    %v3197 = vpack.c.b16 %v2965, %v2961
    %v3198 = vpack.c.b16 %v2966, %v2962
    %v3199 = vpack.c.b16 %v2967, %v2963
    %v3200 = vpack.c.b16 %v2972, %v2968
    %v3201 = vpack.c.b16 %v2973, %v2969
    %v3202 = vpack.c.b16 %v2974, %v2970
    %v3203 = vpack.c.b16 %v2975, %v2971
    %v3204 = vpack.c.b16 %v2980, %v2976
    %v3205 = vpack.c.b16 %v2981, %v2977
    %v3206 = vpack.c.b16 %v2982, %v2978
    %v3207 = vpack.c.b16 %v2983, %v2979
    %v3208 = vpack.c.b16 %v2988, %v2984
    %v3209 = vpack.c.b16 %v2989, %v2985
    %v3210 = vpack.c.b16 %v2990, %v2986
    %v3211 = vpack.c.b16 %v2991, %v2987
    %v3212 = vpack.c.b16 %v2996, %v2992
    %v3213 = vpack.c.b16 %v2997, %v2993
    %v3214 = vpack.c.b16 %v2998, %v2994
    %v3215 = vpack.c.b16 %v2999, %v2995
    %v3216 = vpack.c.b16 %v3004, %v3000
    %v3217 = vpack.c.b16 %v3005, %v3001
    %v3218 = vpack.c.b16 %v3006, %v3002
    %v3219 = vpack.c.b16 %v3007, %v3003
    %v3220 = vpack.c.b16 %v3012, %v3008
    %v3221 = vpack.c.b16 %v3013, %v3009
    %v3222 = vpack.c.b16 %v3014, %v3010
    %v3223 = vpack.c.b16 %v3015, %v3011
    %v3224 = vpack.c.b16 %v3020, %v3016
    %v3225 = vpack.c.b16 %v3021, %v3017
    %v3226 = vpack.c.b16 %v3022, %v3018
    %v3227 = vpack.c.b16 %v3023, %v3019
    %v3228 = vpack.c.b16 %v3028, %v3024
    %v3229 = vpack.c.b16 %v3029, %v3025
    %v3230 = vpack.c.b16 %v3030, %v3026
    %v3231 = vpack.c.b16 %v3031, %v3027
    %v3232 = vpack.c.b16 %v3036, %v3032
    %v3233 = vpack.c.b16 %v3037, %v3033
    %v3234 = vpack.c.b16 %v3038, %v3034
    %v3235 = vpack.c.b16 %v3039, %v3035
    %v3236 = vpack.c.b16 %v3044, %v3040
    %v3237 = vpack.c.b16 %v3045, %v3041
    %v3238 = vpack.c.b16 %v3046, %v3042
    %v3239 = vpack.c.b16 %v3047, %v3043
    %v3240 = vpack.c.b16 %v3052, %v3048
    %v3241 = vpack.c.b16 %v3053, %v3049
    %v3242 = vpack.c.b16 %v3054, %v3050
    %v3243 = vpack.c.b16 %v3055, %v3051
    %v3244 = vpack.c.b16 %v3060, %v3056
    %v3245 = vpack.c.b16 %v3061, %v3057
    %v3246 = vpack.c.b16 %v3062, %v3058
    %v3247 = vpack.c.b16 %v3063, %v3059
    %v3248 = vpack.c.b16 %v3068, %v3064
    %v3249 = vpack.c.b16 %v3069, %v3065
    %v3250 = vpack.c.b16 %v3070, %v3066
    %v3251 = vpack.c.b16 %v3071, %v3067
    %v3252 = vpack.c.b16 %v3076, %v3072
    %v3253 = vpack.c.b16 %v3077, %v3073
    %v3254 = vpack.c.b16 %v3078, %v3074
    %v3255 = vpack.c.b16 %v3079, %v3075
    %v3256 = vpack.c.b16 %v3084, %v3080
    %v3257 = vpack.c.b16 %v3085, %v3081
    %v3258 = vpack.c.b16 %v3086, %v3082
    %v3259 = vpack.c.b16 %v3087, %v3083
    %v3260 = vpack.c.b16 %v3092, %v3088
    %v3261 = vpack.c.b16 %v3093, %v3089
    %v3262 = vpack.c.b16 %v3094, %v3090
    %v3263 = vpack.c.b16 %v3095, %v3091
    %v3264 = vpack.c.b16 %v3100, %v3096
    %v3265 = vpack.c.b16 %v3101, %v3097
    %v3266 = vpack.c.b16 %v3102, %v3098
    %v3267 = vpack.c.b16 %v3103, %v3099
    %v3268 = vpack.c.b16 %v3108, %v3104
    %v3269 = vpack.c.b16 %v3109, %v3105
    %v3270 = vpack.c.b16 %v3110, %v3106
    %v3271 = vpack.c.b16 %v3111, %v3107
    %v3272 = vpack.c.b16 %v3116, %v3112
    %v3273 = vpack.c.b16 %v3117, %v3113
    %v3274 = vpack.c.b16 %v3118, %v3114
    %v3275 = vpack.c.b16 %v3119, %v3115
    %v3276 = vpack.c.b16 %v3124, %v3120
    %v3277 = vpack.c.b16 %v3125, %v3121
    %v3278 = vpack.c.b16 %v3126, %v3122
    %v3279 = vpack.c.b16 %v3127, %v3123
    %v3280 = vpack.c.b16 %v3132, %v3128
    %v3281 = vpack.c.b16 %v3133, %v3129
    %v3282 = vpack.c.b16 %v3134, %v3130
    %v3283 = vpack.c.b16 %v3135, %v3131
    %v3284 = vpack.c.b16 %v3140, %v3136
    %v3285 = vpack.c.b16 %v3141, %v3137
    %v3286 = vpack.c.b16 %v3142, %v3138
    %v3287 = vpack.c.b16 %v3143, %v3139
    %v3288 = vpack.c.b16 %v3148, %v3144
    %v3289 = vpack.c.b16 %v3149, %v3145
    %v3290 = vpack.c.b16 %v3150, %v3146
    %v3291 = vpack.c.b16 %v3151, %v3147
    %v3292 = vpack.c.b16 %v3156, %v3152
    %v3293 = vpack.c.b16 %v3157, %v3153
    %v3294 = vpack.c.b16 %v3158, %v3154
    %v3295 = vpack.c.b16 %v3159, %v3155
    %v3296 = vpack.c.b16 %v3164, %v3160
    %v3297 = vpack.c.b16 %v3165, %v3161
    %v3298 = vpack.c.b16 %v3166, %v3162
    %v3299 = vpack.c.b16 %v3167, %v3163
    %v3300 = vpack.c.b16 %v3172, %v3168
    %v3301 = vpack.c.b16 %v3173, %v3169
    %v3302 = vpack.c.b16 %v3174, %v3170
    %v3303 = vpack.c.b16 %v3175, %v3171
    %3432 = vmatprep.subr.bf16.mxu0 %v3177
    %3433 = vmatpush1.bf16.msra.mxu0 %v3176
    %3434 = vmatprep.subr.bf16.mxu0 %v3181
    %3435 = vmatpush1.bf16.msra.mxu0 %v3180
    %3436 = vmatprep.subr.bf16.mxu0 %v3185
    %3437 = vmatpush1.bf16.msra.mxu0 %v3184
    %3438 = vmatprep.subr.bf16.mxu0 %v3189
    %3439 = vmatpush1.bf16.msra.mxu0 %v3188
    %3440 = vmatprep.subr.bf16.mxu0 %v3193
    %3441 = vmatpush1.bf16.msra.mxu0 %v3192
    %3442 = vmatprep.subr.bf16.mxu0 %v3197
    %3443 = vmatpush1.bf16.msra.mxu0 %v3196
    %3444 = vmatprep.subr.bf16.mxu0 %v3201
    %3445 = vmatpush1.bf16.msra.mxu0 %v3200
    %3446 = vmatprep.subr.bf16.mxu0 %v3205
    %3447 = vmatpush1.bf16.msra.mxu0 %v3204
    %3448 = vmatprep.subr.bf16.mxu0 %v3209
    %3449 = vmatpush1.bf16.msra.mxu0 %v3208
    %3450 = vmatprep.subr.bf16.mxu0 %v3213
    %3451 = vmatpush1.bf16.msra.mxu0 %v3212
    %3452 = vmatprep.subr.bf16.mxu0 %v3217
    %3453 = vmatpush1.bf16.msra.mxu0 %v3216
    %3454 = vmatprep.subr.bf16.mxu0 %v3221
    %3455 = vmatpush1.bf16.msra.mxu0 %v3220
    %3456 = vmatprep.subr.bf16.mxu0 %v3225
    %3457 = vmatpush1.bf16.msra.mxu0 %v3224
    %3458 = vmatprep.subr.bf16.mxu0 %v3229
    %3459 = vmatpush1.bf16.msra.mxu0 %v3228
    %3460 = vmatprep.subr.bf16.mxu0 %v3233
    %3461 = vmatpush1.bf16.msra.mxu0 %v3232
    %3462 = vmatprep.subr.bf16.mxu0 %v3237
    %3463 = vmatpush1.bf16.msra.mxu0 %v3236
    %3464 = vmatprep.mubr.bf16.mxu0 %v2773
    %3465 = vmatmul.mubr.bf16.gmra.mrb[0].mxu0 %v2772
    %v3466 = vpop.f32.mrb[0].mxu0
    %v3467 = vadd.f32 %v2779, %v3466
    %v3468 = vpop.f32.mrb[0].mxu0
    %v3469 = vadd.f32 %v2783, %v3468
    %v3470 = vpop.f32.mrb[0].mxu0
    %v3471 = vpop.f32.mrb[0].mxu0
    %3472 = vdwg.mxu0
    %3473 = vmatprep.subr.bf16.mxu0 %v3241
    %3474 = vmatpush1.bf16.msra.mxu0 %v3240
    %3475 = vmatprep.subr.bf16.mxu0 %v3245
    %3476 = vmatpush1.bf16.msra.mxu0 %v3244
    %3477 = vmatprep.subr.bf16.mxu0 %v3249
    %3478 = vmatpush1.bf16.msra.mxu0 %v3248
    %3479 = vmatprep.subr.bf16.mxu0 %v3253
    %3480 = vmatpush1.bf16.msra.mxu0 %v3252
    %3481 = vmatprep.subr.bf16.mxu0 %v3257
    %3482 = vmatpush1.bf16.msra.mxu0 %v3256
    %3483 = vmatprep.subr.bf16.mxu0 %v3261
    %3484 = vmatpush1.bf16.msra.mxu0 %v3260
    %3485 = vmatprep.subr.bf16.mxu0 %v3265
    %3486 = vmatpush1.bf16.msra.mxu0 %v3264
    %3487 = vmatprep.subr.bf16.mxu0 %v3269
    %3488 = vmatpush1.bf16.msra.mxu0 %v3268
    %3489 = vmatprep.subr.bf16.mxu0 %v3273
    %3490 = vmatpush1.bf16.msra.mxu0 %v3272
    %3491 = vmatprep.subr.bf16.mxu0 %v3277
    %3492 = vmatpush1.bf16.msra.mxu0 %v3276
    %3493 = vmatprep.subr.bf16.mxu0 %v3281
    %3494 = vmatpush1.bf16.msra.mxu0 %v3280
    %3495 = vmatprep.subr.bf16.mxu0 %v3285
    %3496 = vmatpush1.bf16.msra.mxu0 %v3284
    %3497 = vmatprep.subr.bf16.mxu0 %v3289
    %3498 = vmatpush1.bf16.msra.mxu0 %v3288
    %3499 = vmatprep.subr.bf16.mxu0 %v3293
    %3500 = vmatpush1.bf16.msra.mxu0 %v3292
    %3501 = vmatprep.subr.bf16.mxu0 %v3297
    %3502 = vmatpush1.bf16.msra.mxu0 %v3296
    %3503 = vmatprep.subr.bf16.mxu0 %v3301
    %3504 = vmatpush1.bf16.msra.mxu0 %v3300
    %3505 = vmatprep.mubr.bf16.mxu0 %v2775
    %3506 = vmatmul.mubr.bf16.gmra.mrb[0].mxu0 %v2774
    %v3507 = vpop.f32.mrb[0].mxu0
    %v3508 = vadd.f32 %v3467, %v3507
    %v3509 = vpop.f32.mrb[0].mxu0
    %v3510 = vadd.f32 %v3469, %v3509
    %v3511 = vpop.f32.mrb[0].mxu0
    %v3512 = vpop.f32.mrb[0].mxu0
    %3513 = vdwg.mxu0
    %3514 = vmatprep.subr.bf16.mxu0 %v3179
    %3515 = vmatpush1.bf16.msra.mxu0 %v3178
    %3516 = vmatprep.subr.bf16.mxu0 %v3183
    %3517 = vmatpush1.bf16.msra.mxu0 %v3182
    %3518 = vmatprep.subr.bf16.mxu0 %v3187
    %3519 = vmatpush1.bf16.msra.mxu0 %v3186
    %3520 = vmatprep.subr.bf16.mxu0 %v3191
    %3521 = vmatpush1.bf16.msra.mxu0 %v3190
    %3522 = vmatprep.subr.bf16.mxu0 %v3195
    %3523 = vmatpush1.bf16.msra.mxu0 %v3194
    %3524 = vmatprep.subr.bf16.mxu0 %v3199
    %3525 = vmatpush1.bf16.msra.mxu0 %v3198
    %3526 = vmatprep.subr.bf16.mxu0 %v3203
    %3527 = vmatpush1.bf16.msra.mxu0 %v3202
    %3528 = vmatprep.subr.bf16.mxu0 %v3207
    %3529 = vmatpush1.bf16.msra.mxu0 %v3206
    %3530 = vmatprep.subr.bf16.mxu0 %v3211
    %3531 = vmatpush1.bf16.msra.mxu0 %v3210
    %3532 = vmatprep.subr.bf16.mxu0 %v3215
    %3533 = vmatpush1.bf16.msra.mxu0 %v3214
    %3534 = vmatprep.subr.bf16.mxu0 %v3219
    %3535 = vmatpush1.bf16.msra.mxu0 %v3218
    %3536 = vmatprep.subr.bf16.mxu0 %v3223
    %3537 = vmatpush1.bf16.msra.mxu0 %v3222
    %3538 = vmatprep.subr.bf16.mxu0 %v3227
    %3539 = vmatpush1.bf16.msra.mxu0 %v3226
    %3540 = vmatprep.subr.bf16.mxu0 %v3231
    %3541 = vmatpush1.bf16.msra.mxu0 %v3230
    %3542 = vmatprep.subr.bf16.mxu0 %v3235
    %3543 = vmatpush1.bf16.msra.mxu0 %v3234
    %3544 = vmatprep.subr.bf16.mxu0 %v3239
    %3545 = vmatpush1.bf16.msra.mxu0 %v3238
    %3546 = vmatprep.mubr.bf16.mxu0 %v2773
    %3547 = vmatmul.mubr.bf16.gmra.mrb[0].mxu0 %v2772
    %v3548 = vpop.f32.mrb[0].mxu0
    %v3549 = vadd.f32 %v2787, %v3548
    %v3550 = vpop.f32.mrb[0].mxu0
    %v3551 = vadd.f32 %v2791, %v3550
    %v3552 = vpop.f32.mrb[0].mxu0
    %v3553 = vpop.f32.mrb[0].mxu0
    %3554 = vdwg.mxu0
    %3555 = vmatprep.subr.bf16.mxu0 %v3243
    %3556 = vmatpush1.bf16.msra.mxu0 %v3242
    %3557 = vmatprep.subr.bf16.mxu0 %v3247
    %3558 = vmatpush1.bf16.msra.mxu0 %v3246
    %3559 = vmatprep.subr.bf16.mxu0 %v3251
    %3560 = vmatpush1.bf16.msra.mxu0 %v3250
    %3561 = vmatprep.subr.bf16.mxu0 %v3255
    %3562 = vmatpush1.bf16.msra.mxu0 %v3254
    %3563 = vmatprep.subr.bf16.mxu0 %v3259
    %3564 = vmatpush1.bf16.msra.mxu0 %v3258
    %3565 = vmatprep.subr.bf16.mxu0 %v3263
    %3566 = vmatpush1.bf16.msra.mxu0 %v3262
    %3567 = vmatprep.subr.bf16.mxu0 %v3267
    %3568 = vmatpush1.bf16.msra.mxu0 %v3266
    %3569 = vmatprep.subr.bf16.mxu0 %v3271
    %3570 = vmatpush1.bf16.msra.mxu0 %v3270
    %3571 = vmatprep.subr.bf16.mxu0 %v3275
    %3572 = vmatpush1.bf16.msra.mxu0 %v3274
    %3573 = vmatprep.subr.bf16.mxu0 %v3279
    %3574 = vmatpush1.bf16.msra.mxu0 %v3278
    %3575 = vmatprep.subr.bf16.mxu0 %v3283
    %3576 = vmatpush1.bf16.msra.mxu0 %v3282
    %3577 = vmatprep.subr.bf16.mxu0 %v3287
    %3578 = vmatpush1.bf16.msra.mxu0 %v3286
    %3579 = vmatprep.subr.bf16.mxu0 %v3291
    %3580 = vmatpush1.bf16.msra.mxu0 %v3290
    %3581 = vmatprep.subr.bf16.mxu0 %v3295
    %3582 = vmatpush1.bf16.msra.mxu0 %v3294
    %3583 = vmatprep.subr.bf16.mxu0 %v3299
    %3584 = vmatpush1.bf16.msra.mxu0 %v3298
    %3585 = vmatprep.subr.bf16.mxu0 %v3303
    %3586 = vmatpush1.bf16.msra.mxu0 %v3302
    %3587 = vmatprep.mubr.bf16.mxu0 %v2775
    %3588 = vmatmul.mubr.bf16.gmra.mrb[0].mxu0 %v2774
    %v3589 = vpop.f32.mrb[0].mxu0
    %v3590 = vadd.f32 %v3549, %v3589
    %v3591 = vpop.f32.mrb[0].mxu0
    %v3592 = vadd.f32 %v3551, %v3591
    %v3593 = vpop.f32.mrb[0].mxu0
    %v3594 = vpop.f32.mrb[0].mxu0
    %3595 = vdwg.mxu0
    %v3596 = vmax.f32 %v3508, 0.0
    %v3597 = vmax.f32 %v3510, 0.0
    %v3598 = vmax.f32 %v3590, 0.0
    %v3599 = vmax.f32 %v3592, 0.0
    %v3600 = vpack.c.bf16 %v3596, %v3596
    %v3601 = vpack.c.bf16 %v3597, %v3597
    %v3602 = vpack.c.bf16 %v3598, %v3598
    %v3603 = vpack.c.bf16 %v3599, %v3599
    %v3604 = vlaneseq
    %v3605 = vshrl.u32 %v3604, 7
    %v3606 = vsub.s32 2, %v3605
    %v3607 = vrot.slane %v2528, %v3606
    %v3608 = vlaneseq
    %v3609 = vshrl.u32 %v3608, 7
    %v3610 = vsub.s32 2, %v3609
    %v3611 = vrot.slane %v2529, %v3610
    %v3612 = vlaneseq
    %v3613 = vshrl.u32 %v3612, 7
    %v3614 = vsub.s32 2, %v3613
    %v3615 = vrot.slane %v2530, %v3614
    %v3616 = vlaneseq
    %v3617 = vshrl.u32 %v3616, 7
    %v3618 = vsub.s32 2, %v3617
    %v3619 = vrot.slane %v2531, %v3618
    %v3748 = vunpack.c.l.b16 %v2399
    %v3749 = vunpack.c.h.b16 %v2399
    %v3750 = vunpack.c.l.b16 %v2400
    %v3751 = vunpack.c.h.b16 %v2400
    %v3752 = vunpack.c.l.b16 %v2401
    %v3753 = vunpack.c.h.b16 %v2401
    %v3754 = vunpack.c.l.b16 %v2402
    %v3755 = vunpack.c.h.b16 %v2402
    %v3756 = vunpack.c.l.b16 %v2403
    %v3757 = vunpack.c.h.b16 %v2403
    %v3758 = vunpack.c.l.b16 %v2404
    %v3759 = vunpack.c.h.b16 %v2404
    %v3760 = vunpack.c.l.b16 %v2405
    %v3761 = vunpack.c.h.b16 %v2405
    %v3762 = vunpack.c.l.b16 %v2406
    %v3763 = vunpack.c.h.b16 %v2406
    %v3764 = vunpack.c.l.b16 %v2407
    %v3765 = vunpack.c.h.b16 %v2407
    %v3766 = vunpack.c.l.b16 %v2408
    %v3767 = vunpack.c.h.b16 %v2408
    %v3768 = vunpack.c.l.b16 %v2409
    %v3769 = vunpack.c.h.b16 %v2409
    %v3770 = vunpack.c.l.b16 %v2410
    %v3771 = vunpack.c.h.b16 %v2410
    %v3772 = vunpack.c.l.b16 %v2411
    %v3773 = vunpack.c.h.b16 %v2411
    %v3774 = vunpack.c.l.b16 %v2412
    %v3775 = vunpack.c.h.b16 %v2412
    %v3776 = vunpack.c.l.b16 %v2413
    %v3777 = vunpack.c.h.b16 %v2413
    %v3778 = vunpack.c.l.b16 %v2414
    %v3779 = vunpack.c.h.b16 %v2414
    %v3780 = vunpack.c.l.b16 %v2415
    %v3781 = vunpack.c.h.b16 %v2415
    %v3782 = vunpack.c.l.b16 %v2416
    %v3783 = vunpack.c.h.b16 %v2416
    %v3784 = vunpack.c.l.b16 %v2417
    %v3785 = vunpack.c.h.b16 %v2417
    %v3786 = vunpack.c.l.b16 %v2418
    %v3787 = vunpack.c.h.b16 %v2418
    %v3788 = vunpack.c.l.b16 %v2419
    %v3789 = vunpack.c.h.b16 %v2419
    %v3790 = vunpack.c.l.b16 %v2420
    %v3791 = vunpack.c.h.b16 %v2420
    %v3792 = vunpack.c.l.b16 %v2421
    %v3793 = vunpack.c.h.b16 %v2421
    %v3794 = vunpack.c.l.b16 %v2422
    %v3795 = vunpack.c.h.b16 %v2422
    %v3796 = vunpack.c.l.b16 %v2423
    %v3797 = vunpack.c.h.b16 %v2423
    %v3798 = vunpack.c.l.b16 %v2424
    %v3799 = vunpack.c.h.b16 %v2424
    %v3800 = vunpack.c.l.b16 %v2425
    %v3801 = vunpack.c.h.b16 %v2425
    %v3802 = vunpack.c.l.b16 %v2426
    %v3803 = vunpack.c.h.b16 %v2426
    %v3804 = vunpack.c.l.b16 %v2427
    %v3805 = vunpack.c.h.b16 %v2427
    %v3806 = vunpack.c.l.b16 %v2428
    %v3807 = vunpack.c.h.b16 %v2428
    %v3808 = vunpack.c.l.b16 %v2429
    %v3809 = vunpack.c.h.b16 %v2429
    %v3810 = vunpack.c.l.b16 %v2430
    %v3811 = vunpack.c.h.b16 %v2430
    %v3812 = vunpack.c.l.b16 %v2431
    %v3813 = vunpack.c.h.b16 %v2431
    %v3814 = vunpack.c.l.b16 %v2432
    %v3815 = vunpack.c.h.b16 %v2432
    %v3816 = vunpack.c.l.b16 %v2433
    %v3817 = vunpack.c.h.b16 %v2433
    %v3818 = vunpack.c.l.b16 %v2434
    %v3819 = vunpack.c.h.b16 %v2434
    %v3820 = vunpack.c.l.b16 %v2435
    %v3821 = vunpack.c.h.b16 %v2435
    %v3822 = vunpack.c.l.b16 %v2436
    %v3823 = vunpack.c.h.b16 %v2436
    %v3824 = vunpack.c.l.b16 %v2437
    %v3825 = vunpack.c.h.b16 %v2437
    %v3826 = vunpack.c.l.b16 %v2438
    %v3827 = vunpack.c.h.b16 %v2438
    %v3828 = vunpack.c.l.b16 %v2439
    %v3829 = vunpack.c.h.b16 %v2439
    %v3830 = vunpack.c.l.b16 %v2440
    %v3831 = vunpack.c.h.b16 %v2440
    %v3832 = vunpack.c.l.b16 %v2441
    %v3833 = vunpack.c.h.b16 %v2441
    %v3834 = vunpack.c.l.b16 %v2442
    %v3835 = vunpack.c.h.b16 %v2442
    %v3836 = vunpack.c.l.b16 %v2443
    %v3837 = vunpack.c.h.b16 %v2443
    %v3838 = vunpack.c.l.b16 %v2444
    %v3839 = vunpack.c.h.b16 %v2444
    %v3840 = vunpack.c.l.b16 %v2445
    %v3841 = vunpack.c.h.b16 %v2445
    %v3842 = vunpack.c.l.b16 %v2446
    %v3843 = vunpack.c.h.b16 %v2446
    %v3844 = vunpack.c.l.b16 %v2447
    %v3845 = vunpack.c.h.b16 %v2447
    %v3846 = vunpack.c.l.b16 %v2448
    %v3847 = vunpack.c.h.b16 %v2448
    %v3848 = vunpack.c.l.b16 %v2449
    %v3849 = vunpack.c.h.b16 %v2449
    %v3850 = vunpack.c.l.b16 %v2450
    %v3851 = vunpack.c.h.b16 %v2450
    %v3852 = vunpack.c.l.b16 %v2451
    %v3853 = vunpack.c.h.b16 %v2451
    %v3854 = vunpack.c.l.b16 %v2452
    %v3855 = vunpack.c.h.b16 %v2452
    %v3856 = vunpack.c.l.b16 %v2453
    %v3857 = vunpack.c.h.b16 %v2453
    %v3858 = vunpack.c.l.b16 %v2454
    %v3859 = vunpack.c.h.b16 %v2454
    %v3860 = vunpack.c.l.b16 %v2455
    %v3861 = vunpack.c.h.b16 %v2455
    %v3862 = vunpack.c.l.b16 %v2456
    %v3863 = vunpack.c.h.b16 %v2456
    %v3864 = vunpack.c.l.b16 %v2457
    %v3865 = vunpack.c.h.b16 %v2457
    %v3866 = vunpack.c.l.b16 %v2458
    %v3867 = vunpack.c.h.b16 %v2458
    %v3868 = vunpack.c.l.b16 %v2459
    %v3869 = vunpack.c.h.b16 %v2459
    %v3870 = vunpack.c.l.b16 %v2460
    %v3871 = vunpack.c.h.b16 %v2460
    %v3872 = vunpack.c.l.b16 %v2461
    %v3873 = vunpack.c.h.b16 %v2461
    %v3874 = vunpack.c.l.b16 %v2462
    %v3875 = vunpack.c.h.b16 %v2462
    %v3876 = vunpack.c.l.b16 %v2463
    %v3877 = vunpack.c.h.b16 %v2463
    %v3878 = vunpack.c.l.b16 %v2464
    %v3879 = vunpack.c.h.b16 %v2464
    %v3880 = vunpack.c.l.b16 %v2465
    %v3881 = vunpack.c.h.b16 %v2465
    %v3882 = vunpack.c.l.b16 %v2466
    %v3883 = vunpack.c.h.b16 %v2466
    %v3884 = vunpack.c.l.b16 %v2467
    %v3885 = vunpack.c.h.b16 %v2467
    %v3886 = vunpack.c.l.b16 %v2468
    %v3887 = vunpack.c.h.b16 %v2468
    %v3888 = vunpack.c.l.b16 %v2469
    %v3889 = vunpack.c.h.b16 %v2469
    %v3890 = vunpack.c.l.b16 %v2470
    %v3891 = vunpack.c.h.b16 %v2470
    %v3892 = vunpack.c.l.b16 %v2471
    %v3893 = vunpack.c.h.b16 %v2471
    %v3894 = vunpack.c.l.b16 %v2472
    %v3895 = vunpack.c.h.b16 %v2472
    %v3896 = vunpack.c.l.b16 %v2473
    %v3897 = vunpack.c.h.b16 %v2473
    %v3898 = vunpack.c.l.b16 %v2474
    %v3899 = vunpack.c.h.b16 %v2474
    %v3900 = vunpack.c.l.b16 %v2475
    %v3901 = vunpack.c.h.b16 %v2475
    %v3902 = vunpack.c.l.b16 %v2476
    %v3903 = vunpack.c.h.b16 %v2476
    %v3904 = vunpack.c.l.b16 %v2477
    %v3905 = vunpack.c.h.b16 %v2477
    %v3906 = vunpack.c.l.b16 %v2478
    %v3907 = vunpack.c.h.b16 %v2478
    %v3908 = vunpack.c.l.b16 %v2479
    %v3909 = vunpack.c.h.b16 %v2479
    %v3910 = vunpack.c.l.b16 %v2480
    %v3911 = vunpack.c.h.b16 %v2480
    %v3912 = vunpack.c.l.b16 %v2481
    %v3913 = vunpack.c.h.b16 %v2481
    %v3914 = vunpack.c.l.b16 %v2482
    %v3915 = vunpack.c.h.b16 %v2482
    %v3916 = vunpack.c.l.b16 %v2483
    %v3917 = vunpack.c.h.b16 %v2483
    %v3918 = vunpack.c.l.b16 %v2484
    %v3919 = vunpack.c.h.b16 %v2484
    %v3920 = vunpack.c.l.b16 %v2485
    %v3921 = vunpack.c.h.b16 %v2485
    %v3922 = vunpack.c.l.b16 %v2486
    %v3923 = vunpack.c.h.b16 %v2486
    %v3924 = vunpack.c.l.b16 %v2487
    %v3925 = vunpack.c.h.b16 %v2487
    %v3926 = vunpack.c.l.b16 %v2488
    %v3927 = vunpack.c.h.b16 %v2488
    %v3928 = vunpack.c.l.b16 %v2489
    %v3929 = vunpack.c.h.b16 %v2489
    %v3930 = vunpack.c.l.b16 %v2490
    %v3931 = vunpack.c.h.b16 %v2490
    %v3932 = vunpack.c.l.b16 %v2491
    %v3933 = vunpack.c.h.b16 %v2491
    %v3934 = vunpack.c.l.b16 %v2492
    %v3935 = vunpack.c.h.b16 %v2492
    %v3936 = vunpack.c.l.b16 %v2493
    %v3937 = vunpack.c.h.b16 %v2493
    %v3938 = vunpack.c.l.b16 %v2494
    %v3939 = vunpack.c.h.b16 %v2494
    %v3940 = vunpack.c.l.b16 %v2495
    %v3941 = vunpack.c.h.b16 %v2495
    %v3942 = vunpack.c.l.b16 %v2496
    %v3943 = vunpack.c.h.b16 %v2496
    %v3944 = vunpack.c.l.b16 %v2497
    %v3945 = vunpack.c.h.b16 %v2497
    %v3946 = vunpack.c.l.b16 %v2498
    %v3947 = vunpack.c.h.b16 %v2498
    %v3948 = vunpack.c.l.b16 %v2499
    %v3949 = vunpack.c.h.b16 %v2499
    %v3950 = vunpack.c.l.b16 %v2500
    %v3951 = vunpack.c.h.b16 %v2500
    %v3952 = vunpack.c.l.b16 %v2501
    %v3953 = vunpack.c.h.b16 %v2501
    %v3954 = vunpack.c.l.b16 %v2502
    %v3955 = vunpack.c.h.b16 %v2502
    %v3956 = vunpack.c.l.b16 %v2503
    %v3957 = vunpack.c.h.b16 %v2503
    %v3958 = vunpack.c.l.b16 %v2504
    %v3959 = vunpack.c.h.b16 %v2504
    %v3960 = vunpack.c.l.b16 %v2505
    %v3961 = vunpack.c.h.b16 %v2505
    %v3962 = vunpack.c.l.b16 %v2506
    %v3963 = vunpack.c.h.b16 %v2506
    %v3964 = vunpack.c.l.b16 %v2507
    %v3965 = vunpack.c.h.b16 %v2507
    %v3966 = vunpack.c.l.b16 %v2508
    %v3967 = vunpack.c.h.b16 %v2508
    %v3968 = vunpack.c.l.b16 %v2509
    %v3969 = vunpack.c.h.b16 %v2509
    %v3970 = vunpack.c.l.b16 %v2510
    %v3971 = vunpack.c.h.b16 %v2510
    %v3972 = vunpack.c.l.b16 %v2511
    %v3973 = vunpack.c.h.b16 %v2511
    %v3974 = vunpack.c.l.b16 %v2512
    %v3975 = vunpack.c.h.b16 %v2512
    %v3976 = vunpack.c.l.b16 %v2513
    %v3977 = vunpack.c.h.b16 %v2513
    %v3978 = vunpack.c.l.b16 %v2514
    %v3979 = vunpack.c.h.b16 %v2514
    %v3980 = vunpack.c.l.b16 %v2515
    %v3981 = vunpack.c.h.b16 %v2515
    %v3982 = vunpack.c.l.b16 %v2516
    %v3983 = vunpack.c.h.b16 %v2516
    %v3984 = vunpack.c.l.b16 %v2517
    %v3985 = vunpack.c.h.b16 %v2517
    %v3986 = vunpack.c.l.b16 %v2518
    %v3987 = vunpack.c.h.b16 %v2518
    %v3988 = vunpack.c.l.b16 %v2519
    %v3989 = vunpack.c.h.b16 %v2519
    %v3990 = vunpack.c.l.b16 %v2520
    %v3991 = vunpack.c.h.b16 %v2520
    %v3992 = vunpack.c.l.b16 %v2521
    %v3993 = vunpack.c.h.b16 %v2521
    %v3994 = vunpack.c.l.b16 %v2522
    %v3995 = vunpack.c.h.b16 %v2522
    %v3996 = vunpack.c.l.b16 %v2523
    %v3997 = vunpack.c.h.b16 %v2523
    %v3998 = vunpack.c.l.b16 %v2524
    %v3999 = vunpack.c.h.b16 %v2524
    %v4000 = vunpack.c.l.b16 %v2525
    %v4001 = vunpack.c.h.b16 %v2525
    %v4002 = vunpack.c.l.b16 %v2526
    %v4003 = vunpack.c.h.b16 %v2526
    %v4004 = vpack.c.b16 %v3752, %v3748
    %v4005 = vpack.c.b16 %v3753, %v3749
    %v4006 = vpack.c.b16 %v3754, %v3750
    %v4007 = vpack.c.b16 %v3755, %v3751
    %v4008 = vpack.c.b16 %v3760, %v3756
    %v4009 = vpack.c.b16 %v3761, %v3757
    %v4010 = vpack.c.b16 %v3762, %v3758
    %v4011 = vpack.c.b16 %v3763, %v3759
    %v4012 = vpack.c.b16 %v3768, %v3764
    %v4013 = vpack.c.b16 %v3769, %v3765
    %v4014 = vpack.c.b16 %v3770, %v3766
    %v4015 = vpack.c.b16 %v3771, %v3767
    %v4016 = vpack.c.b16 %v3776, %v3772
    %v4017 = vpack.c.b16 %v3777, %v3773
    %v4018 = vpack.c.b16 %v3778, %v3774
    %v4019 = vpack.c.b16 %v3779, %v3775
    %v4020 = vpack.c.b16 %v3784, %v3780
    %v4021 = vpack.c.b16 %v3785, %v3781
    %v4022 = vpack.c.b16 %v3786, %v3782
    %v4023 = vpack.c.b16 %v3787, %v3783
    %v4024 = vpack.c.b16 %v3792, %v3788
    %v4025 = vpack.c.b16 %v3793, %v3789
    %v4026 = vpack.c.b16 %v3794, %v3790
    %v4027 = vpack.c.b16 %v3795, %v3791
    %v4028 = vpack.c.b16 %v3800, %v3796
    %v4029 = vpack.c.b16 %v3801, %v3797
    %v4030 = vpack.c.b16 %v3802, %v3798
    %v4031 = vpack.c.b16 %v3803, %v3799
    %v4032 = vpack.c.b16 %v3808, %v3804
    %v4033 = vpack.c.b16 %v3809, %v3805
    %v4034 = vpack.c.b16 %v3810, %v3806
    %v4035 = vpack.c.b16 %v3811, %v3807
    %v4036 = vpack.c.b16 %v3816, %v3812
    %v4037 = vpack.c.b16 %v3817, %v3813
    %v4038 = vpack.c.b16 %v3818, %v3814
    %v4039 = vpack.c.b16 %v3819, %v3815
    %v4040 = vpack.c.b16 %v3824, %v3820
    %v4041 = vpack.c.b16 %v3825, %v3821
    %v4042 = vpack.c.b16 %v3826, %v3822
    %v4043 = vpack.c.b16 %v3827, %v3823
    %v4044 = vpack.c.b16 %v3832, %v3828
    %v4045 = vpack.c.b16 %v3833, %v3829
    %v4046 = vpack.c.b16 %v3834, %v3830
    %v4047 = vpack.c.b16 %v3835, %v3831
    %v4048 = vpack.c.b16 %v3840, %v3836
    %v4049 = vpack.c.b16 %v3841, %v3837
    %v4050 = vpack.c.b16 %v3842, %v3838
    %v4051 = vpack.c.b16 %v3843, %v3839
    %v4052 = vpack.c.b16 %v3848, %v3844
    %v4053 = vpack.c.b16 %v3849, %v3845
    %v4054 = vpack.c.b16 %v3850, %v3846
    %v4055 = vpack.c.b16 %v3851, %v3847
    %v4056 = vpack.c.b16 %v3856, %v3852
    %v4057 = vpack.c.b16 %v3857, %v3853
    %v4058 = vpack.c.b16 %v3858, %v3854
    %v4059 = vpack.c.b16 %v3859, %v3855
    %v4060 = vpack.c.b16 %v3864, %v3860
    %v4061 = vpack.c.b16 %v3865, %v3861
    %v4062 = vpack.c.b16 %v3866, %v3862
    %v4063 = vpack.c.b16 %v3867, %v3863
    %v4064 = vpack.c.b16 %v3872, %v3868
    %v4065 = vpack.c.b16 %v3873, %v3869
    %v4066 = vpack.c.b16 %v3874, %v3870
    %v4067 = vpack.c.b16 %v3875, %v3871
    %v4068 = vpack.c.b16 %v3880, %v3876
    %v4069 = vpack.c.b16 %v3881, %v3877
    %v4070 = vpack.c.b16 %v3882, %v3878
    %v4071 = vpack.c.b16 %v3883, %v3879
    %v4072 = vpack.c.b16 %v3888, %v3884
    %v4073 = vpack.c.b16 %v3889, %v3885
    %v4074 = vpack.c.b16 %v3890, %v3886
    %v4075 = vpack.c.b16 %v3891, %v3887
    %v4076 = vpack.c.b16 %v3896, %v3892
    %v4077 = vpack.c.b16 %v3897, %v3893
    %v4078 = vpack.c.b16 %v3898, %v3894
    %v4079 = vpack.c.b16 %v3899, %v3895
    %v4080 = vpack.c.b16 %v3904, %v3900
    %v4081 = vpack.c.b16 %v3905, %v3901
    %v4082 = vpack.c.b16 %v3906, %v3902
    %v4083 = vpack.c.b16 %v3907, %v3903
    %v4084 = vpack.c.b16 %v3912, %v3908
    %v4085 = vpack.c.b16 %v3913, %v3909
    %v4086 = vpack.c.b16 %v3914, %v3910
    %v4087 = vpack.c.b16 %v3915, %v3911
    %v4088 = vpack.c.b16 %v3920, %v3916
    %v4089 = vpack.c.b16 %v3921, %v3917
    %v4090 = vpack.c.b16 %v3922, %v3918
    %v4091 = vpack.c.b16 %v3923, %v3919
    %v4092 = vpack.c.b16 %v3928, %v3924
    %v4093 = vpack.c.b16 %v3929, %v3925
    %v4094 = vpack.c.b16 %v3930, %v3926
    %v4095 = vpack.c.b16 %v3931, %v3927
    %v4096 = vpack.c.b16 %v3936, %v3932
    %v4097 = vpack.c.b16 %v3937, %v3933
    %v4098 = vpack.c.b16 %v3938, %v3934
    %v4099 = vpack.c.b16 %v3939, %v3935
    %v4100 = vpack.c.b16 %v3944, %v3940
    %v4101 = vpack.c.b16 %v3945, %v3941
    %v4102 = vpack.c.b16 %v3946, %v3942
    %v4103 = vpack.c.b16 %v3947, %v3943
    %v4104 = vpack.c.b16 %v3952, %v3948
    %v4105 = vpack.c.b16 %v3953, %v3949
    %v4106 = vpack.c.b16 %v3954, %v3950
    %v4107 = vpack.c.b16 %v3955, %v3951
    %v4108 = vpack.c.b16 %v3960, %v3956
    %v4109 = vpack.c.b16 %v3961, %v3957
    %v4110 = vpack.c.b16 %v3962, %v3958
    %v4111 = vpack.c.b16 %v3963, %v3959
    %v4112 = vpack.c.b16 %v3968, %v3964
    %v4113 = vpack.c.b16 %v3969, %v3965
    %v4114 = vpack.c.b16 %v3970, %v3966
    %v4115 = vpack.c.b16 %v3971, %v3967
    %v4116 = vpack.c.b16 %v3976, %v3972
    %v4117 = vpack.c.b16 %v3977, %v3973
    %v4118 = vpack.c.b16 %v3978, %v3974
    %v4119 = vpack.c.b16 %v3979, %v3975
    %v4120 = vpack.c.b16 %v3984, %v3980
    %v4121 = vpack.c.b16 %v3985, %v3981
    %v4122 = vpack.c.b16 %v3986, %v3982
    %v4123 = vpack.c.b16 %v3987, %v3983
    %v4124 = vpack.c.b16 %v3992, %v3988
    %v4125 = vpack.c.b16 %v3993, %v3989
    %v4126 = vpack.c.b16 %v3994, %v3990
    %v4127 = vpack.c.b16 %v3995, %v3991
    %v4128 = vpack.c.b16 %v4000, %v3996
    %v4129 = vpack.c.b16 %v4001, %v3997
    %v4130 = vpack.c.b16 %v4002, %v3998
    %v4131 = vpack.c.b16 %v4003, %v3999
    %4260 = vmatprep.subr.bf16.mxu0 %v4005
    %4261 = vmatpush1.bf16.msra.mxu0 %v4004
    %4262 = vmatprep.subr.bf16.mxu0 %v4009
    %4263 = vmatpush1.bf16.msra.mxu0 %v4008
    %4264 = vmatprep.subr.bf16.mxu0 %v4013
    %4265 = vmatpush1.bf16.msra.mxu0 %v4012
    %4266 = vmatprep.subr.bf16.mxu0 %v4017
    %4267 = vmatpush1.bf16.msra.mxu0 %v4016
    %4268 = vmatprep.subr.bf16.mxu0 %v4021
    %4269 = vmatpush1.bf16.msra.mxu0 %v4020
    %4270 = vmatprep.subr.bf16.mxu0 %v4025
    %4271 = vmatpush1.bf16.msra.mxu0 %v4024
    %4272 = vmatprep.subr.bf16.mxu0 %v4029
    %4273 = vmatpush1.bf16.msra.mxu0 %v4028
    %4274 = vmatprep.subr.bf16.mxu0 %v4033
    %4275 = vmatpush1.bf16.msra.mxu0 %v4032
    %4276 = vmatprep.subr.bf16.mxu0 %v4037
    %4277 = vmatpush1.bf16.msra.mxu0 %v4036
    %4278 = vmatprep.subr.bf16.mxu0 %v4041
    %4279 = vmatpush1.bf16.msra.mxu0 %v4040
    %4280 = vmatprep.subr.bf16.mxu0 %v4045
    %4281 = vmatpush1.bf16.msra.mxu0 %v4044
    %4282 = vmatprep.subr.bf16.mxu0 %v4049
    %4283 = vmatpush1.bf16.msra.mxu0 %v4048
    %4284 = vmatprep.subr.bf16.mxu0 %v4053
    %4285 = vmatpush1.bf16.msra.mxu0 %v4052
    %4286 = vmatprep.subr.bf16.mxu0 %v4057
    %4287 = vmatpush1.bf16.msra.mxu0 %v4056
    %4288 = vmatprep.subr.bf16.mxu0 %v4061
    %4289 = vmatpush1.bf16.msra.mxu0 %v4060
    %4290 = vmatprep.subr.bf16.mxu0 %v4065
    %4291 = vmatpush1.bf16.msra.mxu0 %v4064
    %4292 = vmatprep.mubr.bf16.mxu0 %v3601
    %4293 = vmatmul.mubr.bf16.gmra.mrb[0].mxu0 %v3600
    %v4294 = vpop.f32.mrb[0].mxu0
    %v4295 = vadd.f32 %v3607, %v4294
    %v4296 = vpop.f32.mrb[0].mxu0
    %v4297 = vadd.f32 %v3611, %v4296
    %v4298 = vpop.f32.mrb[0].mxu0
    %v4299 = vpop.f32.mrb[0].mxu0
    %4300 = vdwg.mxu0
    %4301 = vmatprep.subr.bf16.mxu0 %v4069
    %4302 = vmatpush1.bf16.msra.mxu0 %v4068
    %4303 = vmatprep.subr.bf16.mxu0 %v4073
    %4304 = vmatpush1.bf16.msra.mxu0 %v4072
    %4305 = vmatprep.subr.bf16.mxu0 %v4077
    %4306 = vmatpush1.bf16.msra.mxu0 %v4076
    %4307 = vmatprep.subr.bf16.mxu0 %v4081
    %4308 = vmatpush1.bf16.msra.mxu0 %v4080
    %4309 = vmatprep.subr.bf16.mxu0 %v4085
    %4310 = vmatpush1.bf16.msra.mxu0 %v4084
    %4311 = vmatprep.subr.bf16.mxu0 %v4089
    %4312 = vmatpush1.bf16.msra.mxu0 %v4088
    %4313 = vmatprep.subr.bf16.mxu0 %v4093
    %4314 = vmatpush1.bf16.msra.mxu0 %v4092
    %4315 = vmatprep.subr.bf16.mxu0 %v4097
    %4316 = vmatpush1.bf16.msra.mxu0 %v4096
    %4317 = vmatprep.subr.bf16.mxu0 %v4101
    %4318 = vmatpush1.bf16.msra.mxu0 %v4100
    %4319 = vmatprep.subr.bf16.mxu0 %v4105
    %4320 = vmatpush1.bf16.msra.mxu0 %v4104
    %4321 = vmatprep.subr.bf16.mxu0 %v4109
    %4322 = vmatpush1.bf16.msra.mxu0 %v4108
    %4323 = vmatprep.subr.bf16.mxu0 %v4113
    %4324 = vmatpush1.bf16.msra.mxu0 %v4112
    %4325 = vmatprep.subr.bf16.mxu0 %v4117
    %4326 = vmatpush1.bf16.msra.mxu0 %v4116
    %4327 = vmatprep.subr.bf16.mxu0 %v4121
    %4328 = vmatpush1.bf16.msra.mxu0 %v4120
    %4329 = vmatprep.subr.bf16.mxu0 %v4125
    %4330 = vmatpush1.bf16.msra.mxu0 %v4124
    %4331 = vmatprep.subr.bf16.mxu0 %v4129
    %4332 = vmatpush1.bf16.msra.mxu0 %v4128
    %4333 = vmatprep.mubr.bf16.mxu0 %v3603
    %4334 = vmatmul.mubr.bf16.gmra.mrb[0].mxu0 %v3602
    %v4335 = vpop.f32.mrb[0].mxu0
    %v4336 = vadd.f32 %v4295, %v4335
    %v4337 = vpop.f32.mrb[0].mxu0
    %v4338 = vadd.f32 %v4297, %v4337
    %v4339 = vpop.f32.mrb[0].mxu0
    %v4340 = vpop.f32.mrb[0].mxu0
    %4341 = vdwg.mxu0
    %4342 = vmatprep.subr.bf16.mxu0 %v4007
    %4343 = vmatpush1.bf16.msra.mxu0 %v4006
    %4344 = vmatprep.subr.bf16.mxu0 %v4011
    %4345 = vmatpush1.bf16.msra.mxu0 %v4010
    %4346 = vmatprep.subr.bf16.mxu0 %v4015
    %4347 = vmatpush1.bf16.msra.mxu0 %v4014
    %4348 = vmatprep.subr.bf16.mxu0 %v4019
    %4349 = vmatpush1.bf16.msra.mxu0 %v4018
    %4350 = vmatprep.subr.bf16.mxu0 %v4023
    %4351 = vmatpush1.bf16.msra.mxu0 %v4022
    %4352 = vmatprep.subr.bf16.mxu0 %v4027
    %4353 = vmatpush1.bf16.msra.mxu0 %v4026
    %4354 = vmatprep.subr.bf16.mxu0 %v4031
    %4355 = vmatpush1.bf16.msra.mxu0 %v4030
    %4356 = vmatprep.subr.bf16.mxu0 %v4035
    %4357 = vmatpush1.bf16.msra.mxu0 %v4034
    %4358 = vmatprep.subr.bf16.mxu0 %v4039
    %4359 = vmatpush1.bf16.msra.mxu0 %v4038
    %4360 = vmatprep.subr.bf16.mxu0 %v4043
    %4361 = vmatpush1.bf16.msra.mxu0 %v4042
    %4362 = vmatprep.subr.bf16.mxu0 %v4047
    %4363 = vmatpush1.bf16.msra.mxu0 %v4046
    %4364 = vmatprep.subr.bf16.mxu0 %v4051
    %4365 = vmatpush1.bf16.msra.mxu0 %v4050
    %4366 = vmatprep.subr.bf16.mxu0 %v4055
    %4367 = vmatpush1.bf16.msra.mxu0 %v4054
    %4368 = vmatprep.subr.bf16.mxu0 %v4059
    %4369 = vmatpush1.bf16.msra.mxu0 %v4058
    %4370 = vmatprep.subr.bf16.mxu0 %v4063
    %4371 = vmatpush1.bf16.msra.mxu0 %v4062
    %4372 = vmatprep.subr.bf16.mxu0 %v4067
    %4373 = vmatpush1.bf16.msra.mxu0 %v4066
    %4374 = vmatprep.mubr.bf16.mxu0 %v3601
    %4375 = vmatmul.mubr.bf16.gmra.mrb[0].mxu0 %v3600
    %v4376 = vpop.f32.mrb[0].mxu0
    %v4377 = vadd.f32 %v3615, %v4376
    %v4378 = vpop.f32.mrb[0].mxu0
    %v4379 = vadd.f32 %v3619, %v4378
    %v4380 = vpop.f32.mrb[0].mxu0
    %v4381 = vpop.f32.mrb[0].mxu0
    %4382 = vdwg.mxu0
    %4383 = vmatprep.subr.bf16.mxu0 %v4071
    %4384 = vmatpush1.bf16.msra.mxu0 %v4070
    %4385 = vmatprep.subr.bf16.mxu0 %v4075
    %4386 = vmatpush1.bf16.msra.mxu0 %v4074
    %4387 = vmatprep.subr.bf16.mxu0 %v4079
    %4388 = vmatpush1.bf16.msra.mxu0 %v4078
    %4389 = vmatprep.subr.bf16.mxu0 %v4083
    %4390 = vmatpush1.bf16.msra.mxu0 %v4082
    %4391 = vmatprep.subr.bf16.mxu0 %v4087
    %4392 = vmatpush1.bf16.msra.mxu0 %v4086
    %4393 = vmatprep.subr.bf16.mxu0 %v4091
    %4394 = vmatpush1.bf16.msra.mxu0 %v4090
    %4395 = vmatprep.subr.bf16.mxu0 %v4095
    %4396 = vmatpush1.bf16.msra.mxu0 %v4094
    %4397 = vmatprep.subr.bf16.mxu0 %v4099
    %4398 = vmatpush1.bf16.msra.mxu0 %v4098
    %4399 = vmatprep.subr.bf16.mxu0 %v4103
    %4400 = vmatpush1.bf16.msra.mxu0 %v4102
    %4401 = vmatprep.subr.bf16.mxu0 %v4107
    %4402 = vmatpush1.bf16.msra.mxu0 %v4106
    %4403 = vmatprep.subr.bf16.mxu0 %v4111
    %4404 = vmatpush1.bf16.msra.mxu0 %v4110
    %4405 = vmatprep.subr.bf16.mxu0 %v4115
    %4406 = vmatpush1.bf16.msra.mxu0 %v4114
    %4407 = vmatprep.subr.bf16.mxu0 %v4119
    %4408 = vmatpush1.bf16.msra.mxu0 %v4118
    %4409 = vmatprep.subr.bf16.mxu0 %v4123
    %4410 = vmatpush1.bf16.msra.mxu0 %v4122
    %4411 = vmatprep.subr.bf16.mxu0 %v4127
    %4412 = vmatpush1.bf16.msra.mxu0 %v4126
    %4413 = vmatprep.subr.bf16.mxu0 %v4131
    %4414 = vmatpush1.bf16.msra.mxu0 %v4130
    %4415 = vmatprep.mubr.bf16.mxu0 %v3603
    %4416 = vmatmul.mubr.bf16.gmra.mrb[0].mxu0 %v3602
    %v4417 = vpop.f32.mrb[0].mxu0
    %v4418 = vadd.f32 %v4377, %v4417
    %v4419 = vpop.f32.mrb[0].mxu0
    %v4420 = vadd.f32 %v4379, %v4419
    %v4421 = vpop.f32.mrb[0].mxu0
    %v4422 = vpop.f32.mrb[0].mxu0
    %4423 = vdwg.mxu0
    %v4424 = vmax.f32 %v4336, 0.0
    %v4425 = vmax.f32 %v4338, 0.0
    %v4426 = vmax.f32 %v4418, 0.0
    %v4427 = vmax.f32 %v4420, 0.0
    %v4428 = vlaneseq
    %v4429 = vshrl.u32 %v4428, 7
    %v4430 = vsub.s32 3, %v4429
    %v4431 = vrot.slane %v2528, %v4430
    %v4432 = vlaneseq
    %v4433 = vshrl.u32 %v4432, 7
    %v4434 = vsub.s32 3, %v4433
    %v4435 = vrot.slane %v2529, %v4434
    %v4436 = vlaneseq
    %v4437 = vshrl.u32 %v4436, 7
    %v4438 = vsub.s32 3, %v4437
    %v4439 = vrot.slane %v2530, %v4438
    %v4440 = vlaneseq
    %v4441 = vshrl.u32 %v4440, 7
    %v4442 = vsub.s32 3, %v4441
    %v4443 = vrot.slane %v2531, %v4442
    %v4444 = vmul.f32 %v4424, %v4431
    %v4445 = vmul.f32 %v4425, %v4435
    %v4446 = vmul.f32 %v4426, %v4439
    %v4447 = vmul.f32 %v4427, %v4443
    %v4448 = vadd.f32 %v4444, %v4445
    %v4449 = vadd.f32 %v4448, %v4446
    %v4450 = vadd.f32 %v4449, %v4447
    %4451 = vadd.xlane.f32.xlu0 %v4450
    %v4452 = vpop.xlane.xlu0 %4451
    %v4453 = vlaneseq
    %v4454 = vshrl.u32 %v4453, 7
    %v4455 = vsub.s32 4, %v4454
    %v4456 = vrot.slane %v2528, %v4455
    %v4457 = vadd.f32 %v4452, %v4456
    %4459 = vset.pattern.permute.xlu0 0
    %4460 = vperm.xlu0 %4459, %v4457
    %v4461 = vpop.permute.xlu0 %4460
    %s4463 = scalar_lea.vmem %s7, 8
    %4464 = vst [vmem:[%s4463] sm:$0xff] %v4461
    // Predicated region
    $region38: #{_critic_forward_impl.1} parent=1 // pred_check
      _
    $region39: #{_critic_forward_impl.1} parent=1 // pred_check_branch
      %4466 = sbr.rel (0) target = $region41
    $region40: #{_critic_forward_impl.1} parent=1 // pred_region
      _
    $region41: #{_critic_forward_impl.1} parent=1 // pred_fallthru
      _
    // Predicated region
    $region42: #{_critic_forward_impl.1} parent=1 // pred_check
      _
    $region43: #{_critic_forward_impl.1} parent=1 // pred_check_branch
      %4468 = sbr.rel (0) target = $region45
    $region44: #{_critic_forward_impl.1} parent=1 // pred_region
      _
    $region45: #{_critic_forward_impl.1} parent=1 // pred_fallthru
      _
    %4469 = vsyncpa [#allocation3], 1
    %4470 = vsyncpa [#allocation5], 1

</llo_original>
